<compile_context>
chip_gen: v6e
topology: v6e:2x2x1
jax: 0.10.0
libtpu: 0.0.40
codegen_flags: <defaults>
</compile_context>

<pallas_src>
import jax
import jax.numpy as jnp
from jax.experimental import pallas as pl
from jax.experimental.pallas import tpu as pltpu


def _select_pool_head_kernel(sel_ref, tgt_ref, hid_ref, w_ref, b_ref,
                             inv_cnt_ref, out_ref, acc_ref):
    """One grid step = one streamed tile of `tb` walks.

    1. parse_output: one-hot masked reduce over S selects the last-token row
    2. pool_to_target numerator: per-target hidden sums via one MXU matmul
    3. final step: mean division + hoisted linear head + bias (mean(x)W+b)
    """
    j = pl.program_id(0)

    @pl.when(j == 0)
    def _init():
        acc_ref[...] = jnp.zeros_like(acc_ref)

    # ---- parse_output: last_hidden_state[b, last_idx[b], :] ----------------
    hid = hid_ref[...]                                    # (tb, S, H) f32
    sel = sel_ref[...]                                    # (tb, S)    one-hot
    rows = jnp.sum(hid * sel[:, :, None], axis=1)         # (tb, H)

    # ---- pool_to_target (mean), numerator: scatter-add per target on MXU ---
    acc_ref[...] += jax.lax.dot_general(
        tgt_ref[...], rows, (((0,), (0,)), ((), ())),
        preferred_element_type=jnp.float32)               # (T, H)

    # ---- head (hoisted): mean(x) @ W + b == (sum(x)/n) @ W + b -------------
    @pl.when(j == pl.num_programs(0) - 1)
    def _finalize():
        mean = acc_ref[...] * inv_cnt_ref[...]            # (T, H)
        out_ref[...] = jnp.dot(mean, w_ref[...],
                               preferred_element_type=jnp.float32) + b_ref[...]


def text_head_pool(input_ids, last_hidden_state, target_ids, w, b,
                   *, n_targets, pad_id=0, tb=256):
    """Pallas wrapper: parse_output -> head -> mean pool_to_target."""
    B, S = input_ids.shape
    _, _, H = last_hidden_state.shape
    O = w.shape[1]

    tb = int(min(tb, B))
    steps = -(-B // tb)
    Bp = steps * tb

    # parse_output index (cheap XLA int argmax over tiny (B, S) int data):
    # first pad position - 1; -1 wraps to the last position (torch semantics).
    first_pad = jnp.argmax((input_ids == pad_id).astype(jnp.int32), axis=-1)
    last_idx = jnp.mod(first_pad - 1, S).astype(jnp.int32)              # (B,)

    # One-hot encodings precomputed once (removes per-step iota/compare work).
    sel = (jnp.arange(S, dtype=jnp.int32)[None, :] ==
           last_idx[:, None]).astype(jnp.float32)                       # (B, S)
    tgt_oh = (jnp.arange(n_targets, dtype=jnp.int32)[None, :] ==
              target_ids.astype(jnp.int32)[:, None]).astype(jnp.float32)  # (B, T)

    # Counts depend only on target_ids -> computed once here, not per step.
    cnt = jnp.sum(tgt_oh, axis=0).reshape(n_targets, 1)
    inv_cnt = 1.0 / jnp.maximum(cnt, 1.0)                                # (T, 1)

    # TODO(synk): if the real backbone emits bf16 hidden states, stream bf16
    # blocks and accumulate in f32 instead of upcasting here.
    hid = last_hidden_state.astype(jnp.float32)
    if Bp != B:  # zero-contribution padding so walk tiles divide evenly
        pad_n = Bp - B
        hid = jnp.pad(hid, ((0, pad_n), (0, 0), (0, 0)))
        sel = jnp.pad(sel, ((0, pad_n), (0, 0)))
        tgt_oh = jnp.pad(tgt_oh, ((0, pad_n), (0, 0)))

    b2d = b.reshape(1, O).astype(jnp.float32)

    grid_spec = pltpu.PrefetchScalarGridSpec(
        num_scalar_prefetch=0,
        grid=(steps,),
        in_specs=[
            pl.BlockSpec((tb, S), lambda j: (j, 0)),            # last-token one-hot
            pl.BlockSpec((tb, n_targets), lambda j: (j, 0)),    # target one-hot
            pl.BlockSpec((tb, S, H), lambda j: (j, 0, 0)),      # hidden stream
            pl.BlockSpec((H, O), lambda j: (0, 0)),             # head weight (resident)
            pl.BlockSpec((1, O), lambda j: (0, 0)),             # head bias (resident)
            pl.BlockSpec((n_targets, 1), lambda j: (0, 0)),     # 1/count (resident)
        ],
        out_specs=pl.BlockSpec((n_targets, O), lambda j: (0, 0)),
        scratch_shapes=[pltpu.VMEM((n_targets, H), jnp.float32)],  # per-target sums
    )

    cost = pl.CostEstimate(
        flops=(2 * Bp * S * H                       # masked select reduce
               + 2 * Bp * n_targets * H             # per-target accumulation
               + 2 * n_targets * H * O),            # hoisted head matmul
        transcendentals=0,
        bytes_accessed=(Bp * S * H * 4              # streamed hidden states
                        + Bp * (S + n_targets) * 4  # one-hot encodings
                        + H * O * 4 + (1 + n_targets) * O * 4
                        + n_targets * 4))

    return pl.pallas_call(
        _select_pool_head_kernel,
        out_shape=jax.ShapeDtypeStruct((n_targets, O), jnp.float32),
        grid_spec=grid_spec,
        compiler_params=pltpu.CompilerParams(
            dimension_semantics=("arbitrary",)),
        cost_estimate=cost,
    )(sel, tgt_oh, hid, w.astype(jnp.float32), b2d, inv_cnt)


def reference(input_ids, last_hidden_state, target_ids, w, b, *, n_targets, pad_id=0):
    B, S = input_ids.shape
    seq_len = jnp.argmax((input_ids == pad_id).astype(jnp.int32), axis=-1) - 1
    seq_len = jnp.mod(seq_len, S)                               # torch -1 wrap
    walk_state = last_hidden_state[jnp.arange(B), seq_len]      # (B, H)
    walk_pred = walk_state @ w + b                              # (B, O)
    sums = jax.ops.segment_sum(walk_pred, target_ids, num_segments=n_targets)
    cnts = jax.ops.segment_sum(jnp.ones((B,), jnp.float32), target_ids,
                               num_segments=n_targets)
    return sums / jnp.maximum(cnts, 1.0)[:, None]


if __name__ == "__main__":
    # B walks, seq S, hidden H, out_dim O, T targets (small, module-consistent)
    B, S, H, O, T = 512, 16, 128, 8, 8
    PAD_ID = 0

    key = jax.random.PRNGKey(0)
    k_hid, k_tok, k_len, k_w, k_b = jax.random.split(key, 5)

    # synthetic backbone output (backbone itself is untranslatable)
    last_hidden_state = jax.random.normal(k_hid, (B, S, H), dtype=jnp.float32)

    # synthetic tokenized walks: valid tokens then PAD
    lengths = jax.random.randint(k_len, (B,), 2, S)             # >=1 pad each
    tok = jax.random.randint(k_tok, (B, S), 1, 100, dtype=jnp.int32)
    pos = jnp.arange(S)[None, :]
    input_ids = jnp.where(pos < lengths[:, None], tok, PAD_ID).astype(jnp.int32)

    # each target gets B // T walks (walker.get_start_nodes grouping)
    target_ids = (jnp.arange(B) // (B // T)).astype(jnp.int32)

    # deterministic head parameters (nn.Linear(H, walker.out_dim))
    w = jax.random.normal(k_w, (H, O), dtype=jnp.float32) * 0.05
    b = jax.random.normal(k_b, (O,), dtype=jnp.float32) * 0.05

    pred = text_head_pool(input_ids, last_hidden_state, target_ids, w, b,
                          n_targets=T, pad_id=PAD_ID, tb=256)
    pred = jax.block_until_ready(pred)

    ref = reference(input_ids, last_hidden_state, target_ids, w, b,
                    n_targets=T, pad_id=PAD_ID)
    assert pred.shape == (T, O)
    assert jnp.allclose(pred, ref, atol=1e-4, rtol=1e-4), (pred, ref)
    print("KERNEL_OK")
</pallas_src>

<mosaic_0001>
module attributes {stable_mosaic.version = 11 : i64} {
  func.func @_select_pool_head_kernel(%arg0: i32, %arg1: memref<256x16xf32, #tpu.memory_space<vmem>>, %arg2: memref<256x8xf32, #tpu.memory_space<vmem>>, %arg3: memref<256x16x128xf32, #tpu.memory_space<vmem>>, %arg4: memref<128x8xf32, #tpu.memory_space<vmem>>, %arg5: memref<1x8xf32, #tpu.memory_space<vmem>>, %arg6: memref<8x1xf32, #tpu.memory_space<vmem>>, %arg7: memref<8x8xf32, #tpu.memory_space<vmem>>, %arg8: memref<8x128xf32, #tpu.memory_space<vmem>>) attributes {dimension_semantics = [#tpu.dimension_semantics<arbitrary>], iteration_bounds = array<i64: 2>, scalar_prefetch = 0 : i64, scratch_operands = 1 : i64, tpu.core_type = #tpu.core_type<tc>, window_params = [{transform_indices = @transform_0, window_bounds = array<i64: 256, 16>}, {transform_indices = @transform_1, window_bounds = array<i64: 256, 8>}, {transform_indices = @transform_2, window_bounds = array<i64: 256, 16, 128>}, {pipeline_mode = #tpu.pipeline_mode<synchronous>, transform_indices = @transform_3, window_bounds = array<i64: 128, 8>}, {pipeline_mode = #tpu.pipeline_mode<synchronous>, transform_indices = @transform_4, window_bounds = array<i64: 1, 8>}, {pipeline_mode = #tpu.pipeline_mode<synchronous>, transform_indices = @transform_5, window_bounds = array<i64: 8, 1>}, {pipeline_mode = #tpu.pipeline_mode<synchronous>, transform_indices = @transform_6, window_bounds = array<i64: 8, 8>}]} {
    %c0_i32 = arith.constant 0 : i32
    %0 = arith.cmpi eq, %arg0, %c0_i32 : i32
    %1 = arith.extui %0 : i1 to i32
    %c0_i32_0 = arith.constant 0 : i32
    %2 = arith.cmpi ne, %1, %c0_i32_0 : i32
    scf.if %2 {
      %cst_13 = arith.constant 0.000000e+00 : f32
      %17 = vector.broadcast %cst_13 : f32 to vector<8x128xf32>
      %c0_14 = arith.constant 0 : index
      %c0_15 = arith.constant 0 : index
      %18 = vector.load %arg8[%c0_14, %c0_15] : memref<8x128xf32, #tpu.memory_space<vmem>>, vector<8x128xf32>
      tpu.vector_store %arg8[%c0_14, %c0_15], %17 {strides = array<i32>} : memref<8x128xf32, #tpu.memory_space<vmem>>, vector<8x128xf32>,
    } else {
    }
    %c0 = arith.constant 0 : index
    %c0_1 = arith.constant 0 : index
    %c0_2 = arith.constant 0 : index
    %3 = vector.load %arg3[%c0, %c0_1, %c0_2] : memref<256x16x128xf32, #tpu.memory_space<vmem>>, vector<256x16x128xf32>
    %c0_3 = arith.constant 0 : index
    %c0_4 = arith.constant 0 : index
    %4 = vector.load %arg1[%c0_3, %c0_4] : memref<256x16xf32, #tpu.memory_space<vmem>>, vector<256x16xf32>
    %5 = vector.shape_cast %4 : vector<256x16xf32> to vector<256x16x1xf32>
    %6 = vector.broadcast %5 : vector<256x16x1xf32> to vector<256x16x128xf32>
    %7 = arith.mulf %3, %6 : vector<256x16x128xf32>
    %cst = arith.constant dense<0.000000e+00> : vector<256x128xf32>
    %8 = vector.multi_reduction <add>, %7, %cst [1] : vector<256x16x128xf32> to vector<256x128xf32>
    %c0_5 = arith.constant 0 : index
    %c0_6 = arith.constant 0 : index
    %9 = vector.load %arg8[%c0_5, %c0_6] : memref<8x128xf32, #tpu.memory_space<vmem>>, vector<8x128xf32>
    %c0_7 = arith.constant 0 : index
    %c0_8 = arith.constant 0 : index
    %10 = vector.load %arg2[%c0_7, %c0_8] : memref<256x8xf32, #tpu.memory_space<vmem>>, vector<256x8xf32>
    %cst_9 = arith.constant dense<0.000000e+00> : vector<8x128xf32>
    %11 = tpu.matmul %10, %8, %cst_9 {dimension_numbers = #tpu.dot_dimension_numbers<[0], [0], [1], [1], [0, 1, 1, 1], [], []>} : vector<256x8xf32>, vector<256x128xf32>, vector<8x128xf32> -> vector<8x128xf32>
    %12 = arith.addf %9, %11 : vector<8x128xf32>
    %c0_10 = arith.constant 0 : index
    %c0_11 = arith.constant 0 : index
    %13 = vector.load %arg8[%c0_10, %c0_11] : memref<8x128xf32, #tpu.memory_space<vmem>>, vector<8x128xf32>
    tpu.vector_store %arg8[%c0_10, %c0_11], %12 {strides = array<i32>} : memref<8x128xf32, #tpu.memory_space<vmem>>, vector<8x128xf32>,
    %c1_i32 = arith.constant 1 : i32
    %14 = arith.cmpi eq, %arg0, %c1_i32 : i32
    %15 = arith.extui %14 : i1 to i32
    %c0_i32_12 = arith.constant 0 : i32
    %16 = arith.cmpi ne, %15, %c0_i32_12 : i32
    scf.if %16 {
      %c0_13 = arith.constant 0 : index
      %c0_14 = arith.constant 0 : index
      %17 = vector.load %arg8[%c0_13, %c0_14] : memref<8x128xf32, #tpu.memory_space<vmem>>, vector<8x128xf32>
      %c0_15 = arith.constant 0 : index
      %c0_16 = arith.constant 0 : index
      %18 = vector.load %arg6[%c0_15, %c0_16] : memref<8x1xf32, #tpu.memory_space<vmem>>, vector<8x1xf32>
      %19 = vector.broadcast %18 : vector<8x1xf32> to vector<8x128xf32>
      %20 = arith.mulf %17, %19 : vector<8x128xf32>
      %c0_17 = arith.constant 0 : index
      %c0_18 = arith.constant 0 : index
      %21 = vector.load %arg4[%c0_17, %c0_18] : memref<128x8xf32, #tpu.memory_space<vmem>>, vector<128x8xf32>
      %cst_19 = arith.constant dense<0.000000e+00> : vector<8x8xf32>
      %22 = tpu.matmul %20, %21, %cst_19 {dimension_numbers = #tpu.dot_dimension_numbers<[1], [0], [0], [1], [0, 0, 1, 1], [], []>} : vector<8x128xf32>, vector<128x8xf32>, vector<8x8xf32> -> vector<8x8xf32>
      %c0_20 = arith.constant 0 : index
      %c0_21 = arith.constant 0 : index
      %23 = vector.load %arg5[%c0_20, %c0_21] : memref<1x8xf32, #tpu.memory_space<vmem>>, vector<1x8xf32>
      %24 = vector.broadcast %23 : vector<1x8xf32> to vector<8x8xf32>
      %25 = arith.addf %22, %24 : vector<8x8xf32>
      %c0_22 = arith.constant 0 : index
      %c0_23 = arith.constant 0 : index
      %26 = vector.load %arg7[%c0_22, %c0_23] : memref<8x8xf32, #tpu.memory_space<vmem>>, vector<8x8xf32>
      tpu.vector_store %arg7[%c0_22, %c0_23], %25 {strides = array<i32>} : memref<8x8xf32, #tpu.memory_space<vmem>>, vector<8x8xf32>,
    } else {
    }
    return
  }
  func.func @transform_0(%arg0: i32) -> (i32, i32) {
    %c0_i32 = arith.constant 0 : i32
    %c0_i32_0 = arith.constant 0 : i32
    return %arg0, %c0_i32 : i32, i32
  }
  func.func @transform_1(%arg0: i32) -> (i32, i32) {
    %c0_i32 = arith.constant 0 : i32
    %c0_i32_0 = arith.constant 0 : i32
    return %arg0, %c0_i32 : i32, i32
  }
  func.func @transform_2(%arg0: i32) -> (i32, i32, i32) {
    %c0_i32 = arith.constant 0 : i32
    %c0_i32_0 = arith.constant 0 : i32
    %c0_i32_1 = arith.constant 0 : i32
    return %arg0, %c0_i32, %c0_i32_0 : i32, i32, i32
  }
  func.func @transform_3(%arg0: i32) -> (i32, i32) {
    %c0_i32 = arith.constant 0 : i32
    %c0_i32_0 = arith.constant 0 : i32
    %c0_i32_1 = arith.constant 0 : i32
    return %c0_i32, %c0_i32_0 : i32, i32
  }
  func.func @transform_4(%arg0: i32) -> (i32, i32) {
    %c0_i32 = arith.constant 0 : i32
    %c0_i32_0 = arith.constant 0 : i32
    %c0_i32_1 = arith.constant 0 : i32
    return %c0_i32, %c0_i32_0 : i32, i32
  }
  func.func @transform_5(%arg0: i32) -> (i32, i32) {
    %c0_i32 = arith.constant 0 : i32
    %c0_i32_0 = arith.constant 0 : i32
    %c0_i32_1 = arith.constant 0 : i32
    return %c0_i32, %c0_i32_0 : i32, i32
  }
  func.func @transform_6(%arg0: i32) -> (i32, i32) {
    %c0_i32 = arith.constant 0 : i32
    %c0_i32_0 = arith.constant 0 : i32
    %c0_i32_1 = arith.constant 0 : i32
    return %c0_i32, %c0_i32_0 : i32, i32
  }
}

</mosaic_0001>

<llo_original>
// kernel: tpu_custom_call.1
$region0: #{tpu_custom_call.1}
  #allocation0 [shape = 'u32[]', space=smem, size = 0x4, offset = 0x4, fixed_abs, tag = 'smem constant byte address 0x4 - core index']
  #allocation1 [shape = 'u32[144,128]{1,0:T(1,128)}', space=vmem, size = 0x12000, scoped, tag = 'internal scratch']
  #allocation2 [shape = 'f32[8,128]{1,0:T(8,128)}', space=vmem, size = 0x1000, scoped, tag = 'scratch operand']
  %s0 = inlined_call_operand.vmem [shape: f32[512,16], index: 0, kind: input, shape index: {}]
  %s1 = inlined_call_operand.vmem [shape: f32[512,8], index: 1, kind: input, shape index: {}]
  %s2 = inlined_call_operand.hbm [shape: f32[512,16,128], index: 2, kind: input, shape index: {}]
  %s3 = inlined_call_operand.vmem [shape: f32[128,8], index: 3, kind: input, shape index: {}]
  %s4 = inlined_call_operand.hbm [shape: f32[1,8], index: 4, kind: input, shape index: {}]
  %s5 = inlined_call_operand.vmem [shape: f32[8,1], index: 5, kind: input, shape index: {}]
  %s6 = inlined_call_operand.hbm [shape: f32[8,8], index: 6, kind: output, shape index: {}]
  %s7 = sld [smem:[#allocation0]]
  $region73: #{tpu_custom_call.1} parent=0
    _
  %s9 = ssub.s32 1, %s7
  %s10 = scalar_select 0, %s9, %s7
  $region1: #{tpu_custom_call.1} parent=0
    #allocation3 [shape = 'u8[4194304]{0}', space=vmem, size = 0x400000, scoped, tag = 'input window, operand 2']
    #allocation4 [shape = 's32[2]{0}', space=sflag, size = 0x8, scoped, tag = 'scoped memory for tpu_custom_call.1']
    #allocation5 [shape = 's32[2]{0}', space=sflag, size = 0x8, scoped, tag = 'scoped memory for tpu_custom_call.1']
    #allocation6 [shape = 'u8[512]{0}', space=vmem, size = 0x400, scoped, tag = 'input window, operand 4, single buffered']
    #allocation7 [shape = 's32[1]{0}', space=sflag, size = 0x4, scoped, tag = 'scoped memory for tpu_custom_call.1']
    #allocation8 [shape = 'u8[4096]{0}', space=vmem, size = 0x1000, scoped, tag = 'output window, operand 0, single buffered']
    %11 = vsyncpa [#allocation4], 0
    %s12 = scalar_lea.sflag [#allocation4], 1
    %13 = vsyncpa %s12, 0
    %14 = vsyncpa [#allocation7], 0
    %15 = vsyncpa [#allocation5], 0
    loop: start=0, step=1, limit=4
    $region2: #{tpu_custom_call.1} parent=1 // loop_pre_header
      _
    $region3: #{tpu_custom_call.1} parent=1 // loop_header
      %s17 = sphi 0, %s21
      %p18 = scmp.ge.s32.totalorder %s17, 4
      %s27 = sphi 0, %s29
      %s30 = sphi 0, %s27
      %s31 = sphi 0, %s30
      %s47 = sphi 0, %s31
      %s53 = sphi 0, %s55
      %s56 = sphi 0, %s53
      %s57 = sphi 0, %s56
      %s73 = sphi 0, %s57
      %s79 = sphi 0, %s81
      %s82 = sphi 0, %s79
      %s83 = sphi 0, %s82
      %s99 = sphi 0, %s83
      %s103 = sphi 0, %s103
      %s105 = sphi 0, %s103
      %s106 = sphi 0, %s105
      %s120 = sphi 0, %s106
      %s124 = sphi 0, %s124
      %s126 = sphi 0, %s124
      %s127 = sphi 0, %s126
      %s141 = sphi 0, %s127
      %s145 = sphi 0, %s145
      %s147 = sphi 0, %s145
      %s148 = sphi 0, %s147
      %s162 = sphi 0, %s148
      %s166 = sphi 0, %s166
      %s168 = sphi 0, %s166
      %s169 = sphi 0, %s168
      %s183 = sphi 0, %s169
    $region4: #{tpu_custom_call.1} parent=1 // loop_header_branch
      %20 = sbr.rel (%p18) target = $region8
    $region5: #{tpu_custom_call.1} parent=1 // loop_body
      %s22 = ssub.s32 %s17, 1
      %s23 = ssub.s32 %s17, 2
      %s24 = sadd.s32 %s17, 1
      %s25 = ssub.s32 %s17, %s24
      %p26 = scmp.eq.s32.totalorder %s25, 0
      %s28 = sadd.s32 %s27, 1
      %s29 = scalar_select %p26, %s27, %s28
      %p32 = pneg %p26
      %p33 = scmp.eq.s32.totalorder %s17, 1
      %p34 = por %p32, %p33
      %p35 = scmp.ne.s32.totalorder %s27, %s30
      %p36 = scmp.eq.s32.totalorder %s17, 0
      %p37 = por %p35, %p36
      %p38 = scmp.ne.s32.totalorder %s27, %s30
      %p39 = scmp.eq.s32.totalorder %s22, 1
      %p40 = por %p38, %p39
      %p41 = scmp.ne.s32.totalorder %s30, %s31
      %p42 = scmp.eq.s32.totalorder %s22, 0
      %p43 = por %p41, %p42
      %p44 = scmp.ne.s32.totalorder %s30, %s31
      %p45 = scmp.eq.s32.totalorder %s23, 1
      %p46 = por %p44, %p45
      %p48 = scmp.ne.s32.totalorder %s31, %s47
      %p49 = scmp.eq.s32.totalorder %s23, 0
      %p50 = por %p48, %p49
      %s51 = ssub.s32 %s17, %s24
      %p52 = scmp.eq.s32.totalorder %s51, 0
      %s54 = sadd.s32 %s53, 1
      %s55 = scalar_select %p52, %s53, %s54
      %p58 = pneg %p52
      %p59 = scmp.eq.s32.totalorder %s17, 1
      %p60 = por %p58, %p59
      %p61 = scmp.ne.s32.totalorder %s53, %s56
      %p62 = scmp.eq.s32.totalorder %s17, 0
      %p63 = por %p61, %p62
      %p64 = scmp.ne.s32.totalorder %s53, %s56
      %p65 = scmp.eq.s32.totalorder %s22, 1
      %p66 = por %p64, %p65
      %p67 = scmp.ne.s32.totalorder %s56, %s57
      %p68 = scmp.eq.s32.totalorder %s22, 0
      %p69 = por %p67, %p68
      %p70 = scmp.ne.s32.totalorder %s56, %s57
      %p71 = scmp.eq.s32.totalorder %s23, 1
      %p72 = por %p70, %p71
      %p74 = scmp.ne.s32.totalorder %s57, %s73
      %p75 = scmp.eq.s32.totalorder %s23, 0
      %p76 = por %p74, %p75
      %s77 = ssub.s32 %s17, %s24
      %p78 = scmp.eq.s32.totalorder %s77, 0
      %s80 = sadd.s32 %s79, 1
      %s81 = scalar_select %p78, %s79, %s80
      %p84 = pneg %p78
      %p85 = scmp.eq.s32.totalorder %s17, 1
      %p86 = por %p84, %p85
      %p87 = scmp.ne.s32.totalorder %s79, %s82
      %p88 = scmp.eq.s32.totalorder %s17, 0
      %p89 = por %p87, %p88
      %p90 = scmp.ne.s32.totalorder %s79, %s82
      %p91 = scmp.eq.s32.totalorder %s22, 1
      %p92 = por %p90, %p91
      %p93 = scmp.ne.s32.totalorder %s82, %s83
      %p94 = scmp.eq.s32.totalorder %s22, 0
      %p95 = por %p93, %p94
      %p96 = scmp.ne.s32.totalorder %s82, %s83
      %p97 = scmp.eq.s32.totalorder %s23, 1
      %p98 = por %p96, %p97
      %p100 = scmp.ne.s32.totalorder %s83, %s99
      %p101 = scmp.eq.s32.totalorder %s23, 0
      %p102 = por %p100, %p101
      %s104 = sadd.s32 %s103, 1
      %p107 = scmp.eq.s32.totalorder %s17, 1
      %p108 = scmp.ne.s32.totalorder %s103, %s105
      %p109 = scmp.eq.s32.totalorder %s17, 0
      %p110 = por %p108, %p109
      %p111 = scmp.ne.s32.totalorder %s103, %s105
      %p112 = scmp.eq.s32.totalorder %s22, 1
      %p113 = por %p111, %p112
      %p114 = scmp.ne.s32.totalorder %s105, %s106
      %p115 = scmp.eq.s32.totalorder %s22, 0
      %p116 = por %p114, %p115
      %p117 = scmp.ne.s32.totalorder %s105, %s106
      %p118 = scmp.eq.s32.totalorder %s23, 1
      %p119 = por %p117, %p118
      %p121 = scmp.ne.s32.totalorder %s106, %s120
      %p122 = scmp.eq.s32.totalorder %s23, 0
      %p123 = por %p121, %p122
      %s125 = sadd.s32 %s124, 1
      %p128 = scmp.eq.s32.totalorder %s17, 1
      %p129 = scmp.ne.s32.totalorder %s124, %s126
      %p130 = scmp.eq.s32.totalorder %s17, 0
      %p131 = por %p129, %p130
      %p132 = scmp.ne.s32.totalorder %s124, %s126
      %p133 = scmp.eq.s32.totalorder %s22, 1
      %p134 = por %p132, %p133
      %p135 = scmp.ne.s32.totalorder %s126, %s127
      %p136 = scmp.eq.s32.totalorder %s22, 0
      %p137 = por %p135, %p136
      %p138 = scmp.ne.s32.totalorder %s126, %s127
      %p139 = scmp.eq.s32.totalorder %s23, 1
      %p140 = por %p138, %p139
      %p142 = scmp.ne.s32.totalorder %s127, %s141
      %p143 = scmp.eq.s32.totalorder %s23, 0
      %p144 = por %p142, %p143
      %s146 = sadd.s32 %s145, 1
      %p149 = scmp.eq.s32.totalorder %s17, 1
      %p150 = scmp.ne.s32.totalorder %s145, %s147
      %p151 = scmp.eq.s32.totalorder %s17, 0
      %p152 = por %p150, %p151
      %p153 = scmp.ne.s32.totalorder %s145, %s147
      %p154 = scmp.eq.s32.totalorder %s22, 1
      %p155 = por %p153, %p154
      %p156 = scmp.ne.s32.totalorder %s147, %s148
      %p157 = scmp.eq.s32.totalorder %s22, 0
      %p158 = por %p156, %p157
      %p159 = scmp.ne.s32.totalorder %s147, %s148
      %p160 = scmp.eq.s32.totalorder %s23, 1
      %p161 = por %p159, %p160
      %p163 = scmp.ne.s32.totalorder %s148, %s162
      %p164 = scmp.eq.s32.totalorder %s23, 0
      %p165 = por %p163, %p164
      %s167 = sadd.s32 %s166, 1
      %p170 = scmp.eq.s32.totalorder %s17, 1
      %p171 = scmp.ne.s32.totalorder %s166, %s168
      %p172 = scmp.eq.s32.totalorder %s17, 0
      %p173 = por %p171, %p172
      %p174 = scmp.ne.s32.totalorder %s166, %s168
      %p175 = scmp.eq.s32.totalorder %s22, 1
      %p176 = por %p174, %p175
      %p177 = scmp.ne.s32.totalorder %s168, %s169
      %p178 = scmp.eq.s32.totalorder %s22, 0
      %p179 = por %p177, %p178
      %p180 = scmp.ne.s32.totalorder %s168, %s169
      %p181 = scmp.eq.s32.totalorder %s23, 1
      %p182 = por %p180, %p181
      %p184 = scmp.ne.s32.totalorder %s169, %s183
      %p185 = scmp.eq.s32.totalorder %s23, 0
      %p186 = por %p184, %p185
      %p187 = scmp.le.s32.totalorder 1, %s17
      %p188 = scmp.lt.s32.totalorder %s17, 3
      %p189 = pnand %p187, %p188
      %p190 = pneg %p189
      // Predicated region
      $region9: #{tpu_custom_call.1} parent=5 // pred_check
        _
      $region10: #{tpu_custom_call.1} parent=5 // pred_check_branch
        %192 = sbr.rel (%p189) target = $region12
      $region11: #{tpu_custom_call.1} parent=5 // pred_region
        %s193 = ssub.s32 %s17, 1
        // Predicated region
        $region13: #{tpu_custom_call.1} parent=11 // pred_check
          %p194 = pneg %p116
        $region14: #{tpu_custom_call.1} parent=11 // pred_check_branch
          %196 = sbr.rel (%p194) target = $region16
        $region15: #{tpu_custom_call.1} parent=11 // pred_region
          _
        $region16: #{tpu_custom_call.1} parent=11 // pred_fallthru
          _
        // Predicated region
        $region17: #{tpu_custom_call.1} parent=11 // pred_check
          %p197 = pneg %p137
        $region18: #{tpu_custom_call.1} parent=11 // pred_check_branch
          %199 = sbr.rel (%p197) target = $region20
        $region19: #{tpu_custom_call.1} parent=11 // pred_region
          %s201 = ssub.s32 16, 16
          %202 = vsyncadd [#allocation7], %s201
          %s204 = sshll.u32 [#allocation6], 4
          %s205 = int_to_ptr.vmem [resolvable:$true] %s204
          %207 = dma.hbm_to_vmem [thread:$0]  %s4, 16, %s205, [#allocation7]
        $region20: #{tpu_custom_call.1} parent=11 // pred_fallthru
          _
        // Predicated region
        $region21: #{tpu_custom_call.1} parent=11 // pred_check
          %p208 = pneg %p158
        $region22: #{tpu_custom_call.1} parent=11 // pred_check_branch
          %210 = sbr.rel (%p208) target = $region24
        $region23: #{tpu_custom_call.1} parent=11 // pred_region
          _
        $region24: #{tpu_custom_call.1} parent=11 // pred_fallthru
          _
      $region12: #{tpu_custom_call.1} parent=5 // pred_fallthru
        _
      %p211 = scmp.lt.s32.totalorder %s17, 2
      // Predicated region
      $region25: #{tpu_custom_call.1} parent=5 // pred_check
        %p212 = pneg %p211
      $region26: #{tpu_custom_call.1} parent=5 // pred_check_branch
        %214 = sbr.rel (%p212) target = $region28
      $region27: #{tpu_custom_call.1} parent=5 // pred_region
        // Predicated region
        $region29: #{tpu_custom_call.1} parent=27 // pred_check
          %p215 = pneg %p37
        $region30: #{tpu_custom_call.1} parent=27 // pred_check_branch
          %217 = sbr.rel (%p215) target = $region32
        $region31: #{tpu_custom_call.1} parent=27 // pred_region
          %s218 = smul.u32 32, %s17
          %p219 = scmp.lt.s32.totalorder %s218, 63
          %s220 = scalar_select %p219, %s218, 63
          %s221 = smul.addr %s220, 8
          %s222 = scalar_lea.vmem %s0, %s221
          %s223 = smul.u32 32, %s17
        $region32: #{tpu_custom_call.1} parent=27 // pred_fallthru
          _
        // Predicated region
        $region33: #{tpu_custom_call.1} parent=27 // pred_check
          %p224 = pneg %p63
        $region34: #{tpu_custom_call.1} parent=27 // pred_check_branch
          %226 = sbr.rel (%p224) target = $region36
        $region35: #{tpu_custom_call.1} parent=27 // pred_region
          %s227 = smul.u32 32, %s17
          %p228 = scmp.lt.s32.totalorder %s227, 63
          %s229 = scalar_select %p228, %s227, 63
          %s230 = smul.addr %s229, 8
          %s231 = scalar_lea.vmem %s1, %s230
          %s232 = smul.u32 32, %s17
        $region36: #{tpu_custom_call.1} parent=27 // pred_fallthru
          _
        // Predicated region
        $region37: #{tpu_custom_call.1} parent=27 // pred_check
          %p233 = pneg %p89
        $region38: #{tpu_custom_call.1} parent=27 // pred_check_branch
          %235 = sbr.rel (%p233) target = $region40
        $region39: #{tpu_custom_call.1} parent=27 // pred_region
          %s236 = sand.u32 %s79, 1
          %s237 = scalar_lea.sflag [#allocation4], %s236
          %s238 = sand.u32 %s79, 1
          %s239 = smul.addr %s238, 4096
          %s240 = scalar_lea.vmem [#allocation3], %s239
          %s241 = smul.u32 256, %s17
          %s243 = ssub.s32 65536, 65536
          %244 = vsyncadd %s237, %s243
          %s245 = smul.addr %s241, 2
          %s246 = smul.addr %s245, 128
          %s247 = scalar_lea.hbm %s2, %s246
          %s248 = sshll.u32 %s240, 4
          %s249 = int_to_ptr.vmem [resolvable:$true] %s248
          %254 = dma.hbm_to_vmem [thread:$0]  %s247, 65536, %s249, %s237, 128, 128, 8
        $region40: #{tpu_custom_call.1} parent=27 // pred_fallthru
          _
      $region28: #{tpu_custom_call.1} parent=5 // pred_fallthru
        _
      %p255 = scmp.le.s32.totalorder 1, %s17
      %p256 = scmp.lt.s32.totalorder %s17, 3
      %p257 = pnand %p255, %p256
      %p258 = pneg %p257
      // Predicated region
      $region41: #{tpu_custom_call.1} parent=5 // pred_check
        _
      $region42: #{tpu_custom_call.1} parent=5 // pred_check_branch
        %260 = sbr.rel (%p257) target = $region44
      $region43: #{tpu_custom_call.1} parent=5 // pred_region
        %s261 = ssub.s32 %s17, 1
        %s262 = sand.u32 %s82, 1
        %s263 = scalar_lea.sflag [#allocation4], %s262
        %s264 = sand.u32 %s82, 1
        %s265 = smul.addr %s264, 4096
        %s266 = scalar_lea.vmem [#allocation3], %s265
        // Predicated region
        $region45: #{tpu_custom_call.1} parent=43 // pred_check
          %p267 = pneg %p95
        $region46: #{tpu_custom_call.1} parent=43 // pred_check_branch
          %269 = sbr.rel (%p267) target = $region48
        $region47: #{tpu_custom_call.1} parent=43 // pred_region
          %270 = dma.done %s263, 65536
        $region48: #{tpu_custom_call.1} parent=43 // pred_fallthru
          _
        // Predicated region
        $region49: #{tpu_custom_call.1} parent=43 // pred_check
          %p271 = pneg %p137
        $region50: #{tpu_custom_call.1} parent=43 // pred_check_branch
          %273 = sbr.rel (%p271) target = $region52
        $region51: #{tpu_custom_call.1} parent=43 // pred_region
          %274 = dma.done [#allocation7], 16
        $region52: #{tpu_custom_call.1} parent=43 // pred_fallthru
          _
        %s275 = smul.u32 32, %s22
        %p276 = scmp.lt.s32.totalorder %s275, 63
        %s277 = scalar_select %p276, %s275, 63
        %s278 = smul.addr %s277, 8
        %s279 = scalar_lea.vmem %s0, %s278
        %p280 = pneg %p43
        %p281 = pneg %p40
        %s282 = smul.u32 32, %s22
        %p283 = scmp.lt.s32.totalorder %s282, 63
        %s284 = scalar_select %p283, %s282, 63
        %s285 = smul.addr %s284, 8
        %s286 = scalar_lea.vmem %s1, %s285
        %p287 = pneg %p69
        %p288 = pneg %p66
        %s289 = sand.u32 %s82, 1
        %s290 = scalar_lea.sflag [#allocation4], %s289
        %s291 = sand.u32 %s82, 1
        %s292 = smul.addr %s291, 4096
        %s293 = scalar_lea.vmem [#allocation3], %s292
        %p294 = pneg %p95
        %p295 = pneg %p92
        %p296 = pneg %p116
        %p297 = pneg %p113
        %p298 = pneg %p137
        %p299 = pneg %p134
        %p300 = pneg %p158
        %p301 = pneg %p155
        %p302 = pneg %p179
        %p303 = pneg %p176
        %s304 = smul.u32 32, %s22
        %p305 = scmp.lt.s32.totalorder %s304, 63
        %s306 = scalar_select %p305, %s304, 63
        %s307 = smul.addr %s306, 8
        %s308 = scalar_lea.vmem %s0, %s307
        %s309 = smul.u32 32, %s22
        %s310 = smul.u32 32, %s22
        %p311 = scmp.lt.s32.totalorder %s310, 63
        %s312 = scalar_select %p311, %s310, 63
        %s313 = smul.addr %s312, 8
        %s314 = scalar_lea.vmem %s1, %s313
        %s315 = smul.u32 32, %s22
        %s316 = smul.u32 256, %s22
        %p317 = scmp.eq.s32.totalorder %s22, 0
        // Predicated region
        $region53: #{tpu_custom_call.1} parent=43 // pred_check
          %p318 = pneg %p317
        $region54: #{tpu_custom_call.1} parent=43 // pred_check_branch
          %320 = sbr.rel (%p318) target = $region56
        $region55: #{tpu_custom_call.1} parent=43 // pred_region
          %321 = vst [vmem:[#allocation2] sm:$0xff] 0.0
        $region56: #{tpu_custom_call.1} parent=43 // pred_fallthru
          _
        %v322 = vld [vmem:[%s266] sm:$0xff]
        %v323 = vld [vmem:[%s266 + $0x8] sm:$0xff]
        %v324 = vld [vmem:[%s266 + $0x10] sm:$0xff]
        %v325 = vld [vmem:[%s266 + $0x18] sm:$0xff]
        %v326 = vld [vmem:[%s266 + $0x20] sm:$0xff]
        %v327 = vld [vmem:[%s266 + $0x28] sm:$0xff]
        %v328 = vld [vmem:[%s266 + $0x30] sm:$0xff]
        %v329 = vld [vmem:[%s266 + $0x38] sm:$0xff]
        %v330 = vld [vmem:[%s266 + $0x40] sm:$0xff]
        %v331 = vld [vmem:[%s266 + $0x48] sm:$0xff]
        %v332 = vld [vmem:[%s266 + $0x50] sm:$0xff]
        %v333 = vld [vmem:[%s266 + $0x58] sm:$0xff]
        %v334 = vld [vmem:[%s266 + $0x60] sm:$0xff]
        %v335 = vld [vmem:[%s266 + $0x68] sm:$0xff]
        %v336 = vld [vmem:[%s266 + $0x70] sm:$0xff]
        %v337 = vld [vmem:[%s266 + $0x78] sm:$0xff]
        %v338 = vld [vmem:[%s266 + $0x80] sm:$0xff]
        %v339 = vld [vmem:[%s266 + $0x88] sm:$0xff]
        %v340 = vld [vmem:[%s266 + $0x90] sm:$0xff]
        %v341 = vld [vmem:[%s266 + $0x98] sm:$0xff]
        %v342 = vld [vmem:[%s266 + $0xa0] sm:$0xff]
        %v343 = vld [vmem:[%s266 + $0xa8] sm:$0xff]
        %v344 = vld [vmem:[%s266 + $0xb0] sm:$0xff]
        %v345 = vld [vmem:[%s266 + $0xb8] sm:$0xff]
        %v346 = vld [vmem:[%s266 + $0xc0] sm:$0xff]
        %v347 = vld [vmem:[%s266 + $0xc8] sm:$0xff]
        %v348 = vld [vmem:[%s266 + $0xd0] sm:$0xff]
        %v349 = vld [vmem:[%s266 + $0xd8] sm:$0xff]
        %v350 = vld [vmem:[%s266 + $0xe0] sm:$0xff]
        %v351 = vld [vmem:[%s266 + $0xe8] sm:$0xff]
        %v352 = vld [vmem:[%s266 + $0xf0] sm:$0xff]
        %v353 = vld [vmem:[%s266 + $0xf8] sm:$0xff]
        %v354 = vld [vmem:[%s266 + $0x100] sm:$0xff]
        %v355 = vld [vmem:[%s266 + $0x108] sm:$0xff]
        %v356 = vld [vmem:[%s266 + $0x110] sm:$0xff]
        %v357 = vld [vmem:[%s266 + $0x118] sm:$0xff]
        %v358 = vld [vmem:[%s266 + $0x120] sm:$0xff]
        %v359 = vld [vmem:[%s266 + $0x128] sm:$0xff]
        %v360 = vld [vmem:[%s266 + $0x130] sm:$0xff]
        %v361 = vld [vmem:[%s266 + $0x138] sm:$0xff]
        %v362 = vld [vmem:[%s266 + $0x140] sm:$0xff]
        %v363 = vld [vmem:[%s266 + $0x148] sm:$0xff]
        %v364 = vld [vmem:[%s266 + $0x150] sm:$0xff]
        %v365 = vld [vmem:[%s266 + $0x158] sm:$0xff]
        %v366 = vld [vmem:[%s266 + $0x160] sm:$0xff]
        %v367 = vld [vmem:[%s266 + $0x168] sm:$0xff]
        %v368 = vld [vmem:[%s266 + $0x170] sm:$0xff]
        %v369 = vld [vmem:[%s266 + $0x178] sm:$0xff]
        %v370 = vld [vmem:[%s266 + $0x180] sm:$0xff]
        %v371 = vld [vmem:[%s266 + $0x188] sm:$0xff]
        %v372 = vld [vmem:[%s266 + $0x190] sm:$0xff]
        %v373 = vld [vmem:[%s266 + $0x198] sm:$0xff]
        %v374 = vld [vmem:[%s266 + $0x1a0] sm:$0xff]
        %v375 = vld [vmem:[%s266 + $0x1a8] sm:$0xff]
        %v376 = vld [vmem:[%s266 + $0x1b0] sm:$0xff]
        %v377 = vld [vmem:[%s266 + $0x1b8] sm:$0xff]
        %v378 = vld [vmem:[%s266 + $0x1c0] sm:$0xff]
        %v379 = vld [vmem:[%s266 + $0x1c8] sm:$0xff]
        %v380 = vld [vmem:[%s266 + $0x1d0] sm:$0xff]
        %v381 = vld [vmem:[%s266 + $0x1d8] sm:$0xff]
        %v382 = vld [vmem:[%s266 + $0x1e0] sm:$0xff]
        %v383 = vld [vmem:[%s266 + $0x1e8] sm:$0xff]
        %v384 = vld [vmem:[%s266 + $0x1f0] sm:$0xff]
        %v385 = vld [vmem:[%s266 + $0x1f8] sm:$0xff]
        %v386 = vld [vmem:[%s266 + $0x200] sm:$0xff]
        %v387 = vld [vmem:[%s266 + $0x208] sm:$0xff]
        %v388 = vld [vmem:[%s266 + $0x210] sm:$0xff]
        %v389 = vld [vmem:[%s266 + $0x218] sm:$0xff]
        %v390 = vld [vmem:[%s266 + $0x220] sm:$0xff]
        %v391 = vld [vmem:[%s266 + $0x228] sm:$0xff]
        %v392 = vld [vmem:[%s266 + $0x230] sm:$0xff]
        %v393 = vld [vmem:[%s266 + $0x238] sm:$0xff]
        %v394 = vld [vmem:[%s266 + $0x240] sm:$0xff]
        %v395 = vld [vmem:[%s266 + $0x248] sm:$0xff]
        %v396 = vld [vmem:[%s266 + $0x250] sm:$0xff]
        %v397 = vld [vmem:[%s266 + $0x258] sm:$0xff]
        %v398 = vld [vmem:[%s266 + $0x260] sm:$0xff]
        %v399 = vld [vmem:[%s266 + $0x268] sm:$0xff]
        %v400 = vld [vmem:[%s266 + $0x270] sm:$0xff]
        %v401 = vld [vmem:[%s266 + $0x278] sm:$0xff]
        %v402 = vld [vmem:[%s266 + $0x280] sm:$0xff]
        %v403 = vld [vmem:[%s266 + $0x288] sm:$0xff]
        %v404 = vld [vmem:[%s266 + $0x290] sm:$0xff]
        %v405 = vld [vmem:[%s266 + $0x298] sm:$0xff]
        %v406 = vld [vmem:[%s266 + $0x2a0] sm:$0xff]
        %v407 = vld [vmem:[%s266 + $0x2a8] sm:$0xff]
        %v408 = vld [vmem:[%s266 + $0x2b0] sm:$0xff]
        %v409 = vld [vmem:[%s266 + $0x2b8] sm:$0xff]
        %v410 = vld [vmem:[%s266 + $0x2c0] sm:$0xff]
        %v411 = vld [vmem:[%s266 + $0x2c8] sm:$0xff]
        %v412 = vld [vmem:[%s266 + $0x2d0] sm:$0xff]
        %v413 = vld [vmem:[%s266 + $0x2d8] sm:$0xff]
        %v414 = vld [vmem:[%s266 + $0x2e0] sm:$0xff]
        %v415 = vld [vmem:[%s266 + $0x2e8] sm:$0xff]
        %v416 = vld [vmem:[%s266 + $0x2f0] sm:$0xff]
        %v417 = vld [vmem:[%s266 + $0x2f8] sm:$0xff]
        %v418 = vld [vmem:[%s266 + $0x300] sm:$0xff]
        %v419 = vld [vmem:[%s266 + $0x308] sm:$0xff]
        %v420 = vld [vmem:[%s266 + $0x310] sm:$0xff]
        %v421 = vld [vmem:[%s266 + $0x318] sm:$0xff]
        %v422 = vld [vmem:[%s266 + $0x320] sm:$0xff]
        %v423 = vld [vmem:[%s266 + $0x328] sm:$0xff]
        %v424 = vld [vmem:[%s266 + $0x330] sm:$0xff]
        %v425 = vld [vmem:[%s266 + $0x338] sm:$0xff]
        %v426 = vld [vmem:[%s266 + $0x340] sm:$0xff]
        %v427 = vld [vmem:[%s266 + $0x348] sm:$0xff]
        %v428 = vld [vmem:[%s266 + $0x350] sm:$0xff]
        %v429 = vld [vmem:[%s266 + $0x358] sm:$0xff]
        %v430 = vld [vmem:[%s266 + $0x360] sm:$0xff]
        %v431 = vld [vmem:[%s266 + $0x368] sm:$0xff]
        %v432 = vld [vmem:[%s266 + $0x370] sm:$0xff]
        %v433 = vld [vmem:[%s266 + $0x378] sm:$0xff]
        %v434 = vld [vmem:[%s266 + $0x380] sm:$0xff]
        %v435 = vld [vmem:[%s266 + $0x388] sm:$0xff]
        %v436 = vld [vmem:[%s266 + $0x390] sm:$0xff]
        %v437 = vld [vmem:[%s266 + $0x398] sm:$0xff]
        %v438 = vld [vmem:[%s266 + $0x3a0] sm:$0xff]
        %v439 = vld [vmem:[%s266 + $0x3a8] sm:$0xff]
        %v440 = vld [vmem:[%s266 + $0x3b0] sm:$0xff]
        %v441 = vld [vmem:[%s266 + $0x3b8] sm:$0xff]
        %v442 = vld [vmem:[%s266 + $0x3c0] sm:$0xff]
        %v443 = vld [vmem:[%s266 + $0x3c8] sm:$0xff]
        %v444 = vld [vmem:[%s266 + $0x3d0] sm:$0xff]
        %v445 = vld [vmem:[%s266 + $0x3d8] sm:$0xff]
        %v446 = vld [vmem:[%s266 + $0x3e0] sm:$0xff]
        %v447 = vld [vmem:[%s266 + $0x3e8] sm:$0xff]
        %v448 = vld [vmem:[%s266 + $0x3f0] sm:$0xff]
        %v449 = vld [vmem:[%s266 + $0x3f8] sm:$0xff]
        %v450 = vld [vmem:[%s266 + $0x400] sm:$0xff]
        %v451 = vld [vmem:[%s266 + $0x408] sm:$0xff]
        %v452 = vld [vmem:[%s266 + $0x410] sm:$0xff]
        %v453 = vld [vmem:[%s266 + $0x418] sm:$0xff]
        %v454 = vld [vmem:[%s266 + $0x420] sm:$0xff]
        %v455 = vld [vmem:[%s266 + $0x428] sm:$0xff]
        %v456 = vld [vmem:[%s266 + $0x430] sm:$0xff]
        %v457 = vld [vmem:[%s266 + $0x438] sm:$0xff]
        %v458 = vld [vmem:[%s266 + $0x440] sm:$0xff]
        %v459 = vld [vmem:[%s266 + $0x448] sm:$0xff]
        %v460 = vld [vmem:[%s266 + $0x450] sm:$0xff]
        %v461 = vld [vmem:[%s266 + $0x458] sm:$0xff]
        %v462 = vld [vmem:[%s266 + $0x460] sm:$0xff]
        %v463 = vld [vmem:[%s266 + $0x468] sm:$0xff]
        %v464 = vld [vmem:[%s266 + $0x470] sm:$0xff]
        %v465 = vld [vmem:[%s266 + $0x478] sm:$0xff]
        %v466 = vld [vmem:[%s266 + $0x480] sm:$0xff]
        %v467 = vld [vmem:[%s266 + $0x488] sm:$0xff]
        %v468 = vld [vmem:[%s266 + $0x490] sm:$0xff]
        %v469 = vld [vmem:[%s266 + $0x498] sm:$0xff]
        %v470 = vld [vmem:[%s266 + $0x4a0] sm:$0xff]
        %v471 = vld [vmem:[%s266 + $0x4a8] sm:$0xff]
        %v472 = vld [vmem:[%s266 + $0x4b0] sm:$0xff]
        %v473 = vld [vmem:[%s266 + $0x4b8] sm:$0xff]
        %v474 = vld [vmem:[%s266 + $0x4c0] sm:$0xff]
        %v475 = vld [vmem:[%s266 + $0x4c8] sm:$0xff]
        %v476 = vld [vmem:[%s266 + $0x4d0] sm:$0xff]
        %v477 = vld [vmem:[%s266 + $0x4d8] sm:$0xff]
        %v478 = vld [vmem:[%s266 + $0x4e0] sm:$0xff]
        %v479 = vld [vmem:[%s266 + $0x4e8] sm:$0xff]
        %v480 = vld [vmem:[%s266 + $0x4f0] sm:$0xff]
        %v481 = vld [vmem:[%s266 + $0x4f8] sm:$0xff]
        %v482 = vld [vmem:[%s266 + $0x500] sm:$0xff]
        %v483 = vld [vmem:[%s266 + $0x508] sm:$0xff]
        %v484 = vld [vmem:[%s266 + $0x510] sm:$0xff]
        %v485 = vld [vmem:[%s266 + $0x518] sm:$0xff]
        %v486 = vld [vmem:[%s266 + $0x520] sm:$0xff]
        %v487 = vld [vmem:[%s266 + $0x528] sm:$0xff]
        %v488 = vld [vmem:[%s266 + $0x530] sm:$0xff]
        %v489 = vld [vmem:[%s266 + $0x538] sm:$0xff]
        %v490 = vld [vmem:[%s266 + $0x540] sm:$0xff]
        %v491 = vld [vmem:[%s266 + $0x548] sm:$0xff]
        %v492 = vld [vmem:[%s266 + $0x550] sm:$0xff]
        %v493 = vld [vmem:[%s266 + $0x558] sm:$0xff]
        %v494 = vld [vmem:[%s266 + $0x560] sm:$0xff]
        %v495 = vld [vmem:[%s266 + $0x568] sm:$0xff]
        %v496 = vld [vmem:[%s266 + $0x570] sm:$0xff]
        %v497 = vld [vmem:[%s266 + $0x578] sm:$0xff]
        %v498 = vld [vmem:[%s266 + $0x580] sm:$0xff]
        %v499 = vld [vmem:[%s266 + $0x588] sm:$0xff]
        %v500 = vld [vmem:[%s266 + $0x590] sm:$0xff]
        %v501 = vld [vmem:[%s266 + $0x598] sm:$0xff]
        %v502 = vld [vmem:[%s266 + $0x5a0] sm:$0xff]
        %v503 = vld [vmem:[%s266 + $0x5a8] sm:$0xff]
        %v504 = vld [vmem:[%s266 + $0x5b0] sm:$0xff]
        %v505 = vld [vmem:[%s266 + $0x5b8] sm:$0xff]
        %v506 = vld [vmem:[%s266 + $0x5c0] sm:$0xff]
        %v507 = vld [vmem:[%s266 + $0x5c8] sm:$0xff]
        %v508 = vld [vmem:[%s266 + $0x5d0] sm:$0xff]
        %v509 = vld [vmem:[%s266 + $0x5d8] sm:$0xff]
        %v510 = vld [vmem:[%s266 + $0x5e0] sm:$0xff]
        %v511 = vld [vmem:[%s266 + $0x5e8] sm:$0xff]
        %v512 = vld [vmem:[%s266 + $0x5f0] sm:$0xff]
        %v513 = vld [vmem:[%s266 + $0x5f8] sm:$0xff]
        %v514 = vld [vmem:[%s266 + $0x600] sm:$0xff]
        %v515 = vld [vmem:[%s266 + $0x608] sm:$0xff]
        %v516 = vld [vmem:[%s266 + $0x610] sm:$0xff]
        %v517 = vld [vmem:[%s266 + $0x618] sm:$0xff]
        %v518 = vld [vmem:[%s266 + $0x620] sm:$0xff]
        %v519 = vld [vmem:[%s266 + $0x628] sm:$0xff]
        %v520 = vld [vmem:[%s266 + $0x630] sm:$0xff]
        %v521 = vld [vmem:[%s266 + $0x638] sm:$0xff]
        %v522 = vld [vmem:[%s266 + $0x640] sm:$0xff]
        %v523 = vld [vmem:[%s266 + $0x648] sm:$0xff]
        %v524 = vld [vmem:[%s266 + $0x650] sm:$0xff]
        %v525 = vld [vmem:[%s266 + $0x658] sm:$0xff]
        %v526 = vld [vmem:[%s266 + $0x660] sm:$0xff]
        %v527 = vld [vmem:[%s266 + $0x668] sm:$0xff]
        %v528 = vld [vmem:[%s266 + $0x670] sm:$0xff]
        %v529 = vld [vmem:[%s266 + $0x678] sm:$0xff]
        %v530 = vld [vmem:[%s266 + $0x680] sm:$0xff]
        %v531 = vld [vmem:[%s266 + $0x688] sm:$0xff]
        %v532 = vld [vmem:[%s266 + $0x690] sm:$0xff]
        %v533 = vld [vmem:[%s266 + $0x698] sm:$0xff]
        %v534 = vld [vmem:[%s266 + $0x6a0] sm:$0xff]
        %v535 = vld [vmem:[%s266 + $0x6a8] sm:$0xff]
        %v536 = vld [vmem:[%s266 + $0x6b0] sm:$0xff]
        %v537 = vld [vmem:[%s266 + $0x6b8] sm:$0xff]
        %v538 = vld [vmem:[%s266 + $0x6c0] sm:$0xff]
        %v539 = vld [vmem:[%s266 + $0x6c8] sm:$0xff]
        %v540 = vld [vmem:[%s266 + $0x6d0] sm:$0xff]
        %v541 = vld [vmem:[%s266 + $0x6d8] sm:$0xff]
        %v542 = vld [vmem:[%s266 + $0x6e0] sm:$0xff]
        %v543 = vld [vmem:[%s266 + $0x6e8] sm:$0xff]
        %v544 = vld [vmem:[%s266 + $0x6f0] sm:$0xff]
        %v545 = vld [vmem:[%s266 + $0x6f8] sm:$0xff]
        %v546 = vld [vmem:[%s266 + $0x700] sm:$0xff]
        %v547 = vld [vmem:[%s266 + $0x708] sm:$0xff]
        %v548 = vld [vmem:[%s266 + $0x710] sm:$0xff]
        %v549 = vld [vmem:[%s266 + $0x718] sm:$0xff]
        %v550 = vld [vmem:[%s266 + $0x720] sm:$0xff]
        %v551 = vld [vmem:[%s266 + $0x728] sm:$0xff]
        %v552 = vld [vmem:[%s266 + $0x730] sm:$0xff]
        %v553 = vld [vmem:[%s266 + $0x738] sm:$0xff]
        %v554 = vld [vmem:[%s266 + $0x740] sm:$0xff]
        %v555 = vld [vmem:[%s266 + $0x748] sm:$0xff]
        %v556 = vld [vmem:[%s266 + $0x750] sm:$0xff]
        %v557 = vld [vmem:[%s266 + $0x758] sm:$0xff]
        %v558 = vld [vmem:[%s266 + $0x760] sm:$0xff]
        %v559 = vld [vmem:[%s266 + $0x768] sm:$0xff]
        %v560 = vld [vmem:[%s266 + $0x770] sm:$0xff]
        %v561 = vld [vmem:[%s266 + $0x778] sm:$0xff]
        %v562 = vld [vmem:[%s266 + $0x780] sm:$0xff]
        %v563 = vld [vmem:[%s266 + $0x788] sm:$0xff]
        %v564 = vld [vmem:[%s266 + $0x790] sm:$0xff]
        %v565 = vld [vmem:[%s266 + $0x798] sm:$0xff]
        %v566 = vld [vmem:[%s266 + $0x7a0] sm:$0xff]
        %v567 = vld [vmem:[%s266 + $0x7a8] sm:$0xff]
        %v568 = vld [vmem:[%s266 + $0x7b0] sm:$0xff]
        %v569 = vld [vmem:[%s266 + $0x7b8] sm:$0xff]
        %v570 = vld [vmem:[%s266 + $0x7c0] sm:$0xff]
        %v571 = vld [vmem:[%s266 + $0x7c8] sm:$0xff]
        %v572 = vld [vmem:[%s266 + $0x7d0] sm:$0xff]
        %v573 = vld [vmem:[%s266 + $0x7d8] sm:$0xff]
        %v574 = vld [vmem:[%s266 + $0x7e0] sm:$0xff]
        %v575 = vld [vmem:[%s266 + $0x7e8] sm:$0xff]
        %v576 = vld [vmem:[%s266 + $0x7f0] sm:$0xff]
        %v577 = vld [vmem:[%s266 + $0x7f8] sm:$0xff]
        %v578 = vld [vmem:[%s266 + $0x800] sm:$0xff]
        %v579 = vld [vmem:[%s266 + $0x808] sm:$0xff]
        %v580 = vld [vmem:[%s266 + $0x810] sm:$0xff]
        %v581 = vld [vmem:[%s266 + $0x818] sm:$0xff]
        %v582 = vld [vmem:[%s266 + $0x820] sm:$0xff]
        %v583 = vld [vmem:[%s266 + $0x828] sm:$0xff]
        %v584 = vld [vmem:[%s266 + $0x830] sm:$0xff]
        %v585 = vld [vmem:[%s266 + $0x838] sm:$0xff]
        %v586 = vld [vmem:[%s266 + $0x840] sm:$0xff]
        %v587 = vld [vmem:[%s266 + $0x848] sm:$0xff]
        %v588 = vld [vmem:[%s266 + $0x850] sm:$0xff]
        %v589 = vld [vmem:[%s266 + $0x858] sm:$0xff]
        %v590 = vld [vmem:[%s266 + $0x860] sm:$0xff]
        %v591 = vld [vmem:[%s266 + $0x868] sm:$0xff]
        %v592 = vld [vmem:[%s266 + $0x870] sm:$0xff]
        %v593 = vld [vmem:[%s266 + $0x878] sm:$0xff]
        %v594 = vld [vmem:[%s266 + $0x880] sm:$0xff]
        %v595 = vld [vmem:[%s266 + $0x888] sm:$0xff]
        %v596 = vld [vmem:[%s266 + $0x890] sm:$0xff]
        %v597 = vld [vmem:[%s266 + $0x898] sm:$0xff]
        %v598 = vld [vmem:[%s266 + $0x8a0] sm:$0xff]
        %v599 = vld [vmem:[%s266 + $0x8a8] sm:$0xff]
        %v600 = vld [vmem:[%s266 + $0x8b0] sm:$0xff]
        %v601 = vld [vmem:[%s266 + $0x8b8] sm:$0xff]
        %v602 = vld [vmem:[%s266 + $0x8c0] sm:$0xff]
        %v603 = vld [vmem:[%s266 + $0x8c8] sm:$0xff]
        %v604 = vld [vmem:[%s266 + $0x8d0] sm:$0xff]
        %v605 = vld [vmem:[%s266 + $0x8d8] sm:$0xff]
        %v606 = vld [vmem:[%s266 + $0x8e0] sm:$0xff]
        %v607 = vld [vmem:[%s266 + $0x8e8] sm:$0xff]
        %v608 = vld [vmem:[%s266 + $0x8f0] sm:$0xff]
        %v609 = vld [vmem:[%s266 + $0x8f8] sm:$0xff]
        %v610 = vld [vmem:[%s266 + $0x900] sm:$0xff]
        %v611 = vld [vmem:[%s266 + $0x908] sm:$0xff]
        %v612 = vld [vmem:[%s266 + $0x910] sm:$0xff]
        %v613 = vld [vmem:[%s266 + $0x918] sm:$0xff]
        %v614 = vld [vmem:[%s266 + $0x920] sm:$0xff]
        %v615 = vld [vmem:[%s266 + $0x928] sm:$0xff]
        %v616 = vld [vmem:[%s266 + $0x930] sm:$0xff]
        %v617 = vld [vmem:[%s266 + $0x938] sm:$0xff]
        %v618 = vld [vmem:[%s266 + $0x940] sm:$0xff]
        %v619 = vld [vmem:[%s266 + $0x948] sm:$0xff]
        %v620 = vld [vmem:[%s266 + $0x950] sm:$0xff]
        %v621 = vld [vmem:[%s266 + $0x958] sm:$0xff]
        %v622 = vld [vmem:[%s266 + $0x960] sm:$0xff]
        %v623 = vld [vmem:[%s266 + $0x968] sm:$0xff]
        %v624 = vld [vmem:[%s266 + $0x970] sm:$0xff]
        %v625 = vld [vmem:[%s266 + $0x978] sm:$0xff]
        %v626 = vld [vmem:[%s266 + $0x980] sm:$0xff]
        %v627 = vld [vmem:[%s266 + $0x988] sm:$0xff]
        %v628 = vld [vmem:[%s266 + $0x990] sm:$0xff]
        %v629 = vld [vmem:[%s266 + $0x998] sm:$0xff]
        %v630 = vld [vmem:[%s266 + $0x9a0] sm:$0xff]
        %v631 = vld [vmem:[%s266 + $0x9a8] sm:$0xff]
        %v632 = vld [vmem:[%s266 + $0x9b0] sm:$0xff]
        %v633 = vld [vmem:[%s266 + $0x9b8] sm:$0xff]
        %v634 = vld [vmem:[%s266 + $0x9c0] sm:$0xff]
        %v635 = vld [vmem:[%s266 + $0x9c8] sm:$0xff]
        %v636 = vld [vmem:[%s266 + $0x9d0] sm:$0xff]
        %v637 = vld [vmem:[%s266 + $0x9d8] sm:$0xff]
        %v638 = vld [vmem:[%s266 + $0x9e0] sm:$0xff]
        %v639 = vld [vmem:[%s266 + $0x9e8] sm:$0xff]
        %v640 = vld [vmem:[%s266 + $0x9f0] sm:$0xff]
        %v641 = vld [vmem:[%s266 + $0x9f8] sm:$0xff]
        %v642 = vld [vmem:[%s266 + $0xa00] sm:$0xff]
        %v643 = vld [vmem:[%s266 + $0xa08] sm:$0xff]
        %v644 = vld [vmem:[%s266 + $0xa10] sm:$0xff]
        %v645 = vld [vmem:[%s266 + $0xa18] sm:$0xff]
        %v646 = vld [vmem:[%s266 + $0xa20] sm:$0xff]
        %v647 = vld [vmem:[%s266 + $0xa28] sm:$0xff]
        %v648 = vld [vmem:[%s266 + $0xa30] sm:$0xff]
        %v649 = vld [vmem:[%s266 + $0xa38] sm:$0xff]
        %v650 = vld [vmem:[%s266 + $0xa40] sm:$0xff]
        %v651 = vld [vmem:[%s266 + $0xa48] sm:$0xff]
        %v652 = vld [vmem:[%s266 + $0xa50] sm:$0xff]
        %v653 = vld [vmem:[%s266 + $0xa58] sm:$0xff]
        %v654 = vld [vmem:[%s266 + $0xa60] sm:$0xff]
        %v655 = vld [vmem:[%s266 + $0xa68] sm:$0xff]
        %v656 = vld [vmem:[%s266 + $0xa70] sm:$0xff]
        %v657 = vld [vmem:[%s266 + $0xa78] sm:$0xff]
        %v658 = vld [vmem:[%s266 + $0xa80] sm:$0xff]
        %v659 = vld [vmem:[%s266 + $0xa88] sm:$0xff]
        %v660 = vld [vmem:[%s266 + $0xa90] sm:$0xff]
        %v661 = vld [vmem:[%s266 + $0xa98] sm:$0xff]
        %v662 = vld [vmem:[%s266 + $0xaa0] sm:$0xff]
        %v663 = vld [vmem:[%s266 + $0xaa8] sm:$0xff]
        %v664 = vld [vmem:[%s266 + $0xab0] sm:$0xff]
        %v665 = vld [vmem:[%s266 + $0xab8] sm:$0xff]
        %v666 = vld [vmem:[%s266 + $0xac0] sm:$0xff]
        %v667 = vld [vmem:[%s266 + $0xac8] sm:$0xff]
        %v668 = vld [vmem:[%s266 + $0xad0] sm:$0xff]
        %v669 = vld [vmem:[%s266 + $0xad8] sm:$0xff]
        %v670 = vld [vmem:[%s266 + $0xae0] sm:$0xff]
        %v671 = vld [vmem:[%s266 + $0xae8] sm:$0xff]
        %v672 = vld [vmem:[%s266 + $0xaf0] sm:$0xff]
        %v673 = vld [vmem:[%s266 + $0xaf8] sm:$0xff]
        %v674 = vld [vmem:[%s266 + $0xb00] sm:$0xff]
        %v675 = vld [vmem:[%s266 + $0xb08] sm:$0xff]
        %v676 = vld [vmem:[%s266 + $0xb10] sm:$0xff]
        %v677 = vld [vmem:[%s266 + $0xb18] sm:$0xff]
        %v678 = vld [vmem:[%s266 + $0xb20] sm:$0xff]
        %v679 = vld [vmem:[%s266 + $0xb28] sm:$0xff]
        %v680 = vld [vmem:[%s266 + $0xb30] sm:$0xff]
        %v681 = vld [vmem:[%s266 + $0xb38] sm:$0xff]
        %v682 = vld [vmem:[%s266 + $0xb40] sm:$0xff]
        %v683 = vld [vmem:[%s266 + $0xb48] sm:$0xff]
        %v684 = vld [vmem:[%s266 + $0xb50] sm:$0xff]
        %v685 = vld [vmem:[%s266 + $0xb58] sm:$0xff]
        %v686 = vld [vmem:[%s266 + $0xb60] sm:$0xff]
        %v687 = vld [vmem:[%s266 + $0xb68] sm:$0xff]
        %v688 = vld [vmem:[%s266 + $0xb70] sm:$0xff]
        %v689 = vld [vmem:[%s266 + $0xb78] sm:$0xff]
        %v690 = vld [vmem:[%s266 + $0xb80] sm:$0xff]
        %v691 = vld [vmem:[%s266 + $0xb88] sm:$0xff]
        %v692 = vld [vmem:[%s266 + $0xb90] sm:$0xff]
        %v693 = vld [vmem:[%s266 + $0xb98] sm:$0xff]
        %v694 = vld [vmem:[%s266 + $0xba0] sm:$0xff]
        %v695 = vld [vmem:[%s266 + $0xba8] sm:$0xff]
        %v696 = vld [vmem:[%s266 + $0xbb0] sm:$0xff]
        %v697 = vld [vmem:[%s266 + $0xbb8] sm:$0xff]
        %v698 = vld [vmem:[%s266 + $0xbc0] sm:$0xff]
        %v699 = vld [vmem:[%s266 + $0xbc8] sm:$0xff]
        %v700 = vld [vmem:[%s266 + $0xbd0] sm:$0xff]
        %v701 = vld [vmem:[%s266 + $0xbd8] sm:$0xff]
        %v702 = vld [vmem:[%s266 + $0xbe0] sm:$0xff]
        %v703 = vld [vmem:[%s266 + $0xbe8] sm:$0xff]
        %v704 = vld [vmem:[%s266 + $0xbf0] sm:$0xff]
        %v705 = vld [vmem:[%s266 + $0xbf8] sm:$0xff]
        %v706 = vld [vmem:[%s266 + $0xc00] sm:$0xff]
        %v707 = vld [vmem:[%s266 + $0xc08] sm:$0xff]
        %v708 = vld [vmem:[%s266 + $0xc10] sm:$0xff]
        %v709 = vld [vmem:[%s266 + $0xc18] sm:$0xff]
        %v710 = vld [vmem:[%s266 + $0xc20] sm:$0xff]
        %v711 = vld [vmem:[%s266 + $0xc28] sm:$0xff]
        %v712 = vld [vmem:[%s266 + $0xc30] sm:$0xff]
        %v713 = vld [vmem:[%s266 + $0xc38] sm:$0xff]
        %v714 = vld [vmem:[%s266 + $0xc40] sm:$0xff]
        %v715 = vld [vmem:[%s266 + $0xc48] sm:$0xff]
        %v716 = vld [vmem:[%s266 + $0xc50] sm:$0xff]
        %v717 = vld [vmem:[%s266 + $0xc58] sm:$0xff]
        %v718 = vld [vmem:[%s266 + $0xc60] sm:$0xff]
        %v719 = vld [vmem:[%s266 + $0xc68] sm:$0xff]
        %v720 = vld [vmem:[%s266 + $0xc70] sm:$0xff]
        %v721 = vld [vmem:[%s266 + $0xc78] sm:$0xff]
        %v722 = vld [vmem:[%s266 + $0xc80] sm:$0xff]
        %v723 = vld [vmem:[%s266 + $0xc88] sm:$0xff]
        %v724 = vld [vmem:[%s266 + $0xc90] sm:$0xff]
        %v725 = vld [vmem:[%s266 + $0xc98] sm:$0xff]
        %v726 = vld [vmem:[%s266 + $0xca0] sm:$0xff]
        %v727 = vld [vmem:[%s266 + $0xca8] sm:$0xff]
        %v728 = vld [vmem:[%s266 + $0xcb0] sm:$0xff]
        %v729 = vld [vmem:[%s266 + $0xcb8] sm:$0xff]
        %v730 = vld [vmem:[%s266 + $0xcc0] sm:$0xff]
        %v731 = vld [vmem:[%s266 + $0xcc8] sm:$0xff]
        %v732 = vld [vmem:[%s266 + $0xcd0] sm:$0xff]
        %v733 = vld [vmem:[%s266 + $0xcd8] sm:$0xff]
        %v734 = vld [vmem:[%s266 + $0xce0] sm:$0xff]
        %v735 = vld [vmem:[%s266 + $0xce8] sm:$0xff]
        %v736 = vld [vmem:[%s266 + $0xcf0] sm:$0xff]
        %v737 = vld [vmem:[%s266 + $0xcf8] sm:$0xff]
        %v738 = vld [vmem:[%s266 + $0xd00] sm:$0xff]
        %v739 = vld [vmem:[%s266 + $0xd08] sm:$0xff]
        %v740 = vld [vmem:[%s266 + $0xd10] sm:$0xff]
        %v741 = vld [vmem:[%s266 + $0xd18] sm:$0xff]
        %v742 = vld [vmem:[%s266 + $0xd20] sm:$0xff]
        %v743 = vld [vmem:[%s266 + $0xd28] sm:$0xff]
        %v744 = vld [vmem:[%s266 + $0xd30] sm:$0xff]
        %v745 = vld [vmem:[%s266 + $0xd38] sm:$0xff]
        %v746 = vld [vmem:[%s266 + $0xd40] sm:$0xff]
        %v747 = vld [vmem:[%s266 + $0xd48] sm:$0xff]
        %v748 = vld [vmem:[%s266 + $0xd50] sm:$0xff]
        %v749 = vld [vmem:[%s266 + $0xd58] sm:$0xff]
        %v750 = vld [vmem:[%s266 + $0xd60] sm:$0xff]
        %v751 = vld [vmem:[%s266 + $0xd68] sm:$0xff]
        %v752 = vld [vmem:[%s266 + $0xd70] sm:$0xff]
        %v753 = vld [vmem:[%s266 + $0xd78] sm:$0xff]
        %v754 = vld [vmem:[%s266 + $0xd80] sm:$0xff]
        %v755 = vld [vmem:[%s266 + $0xd88] sm:$0xff]
        %v756 = vld [vmem:[%s266 + $0xd90] sm:$0xff]
        %v757 = vld [vmem:[%s266 + $0xd98] sm:$0xff]
        %v758 = vld [vmem:[%s266 + $0xda0] sm:$0xff]
        %v759 = vld [vmem:[%s266 + $0xda8] sm:$0xff]
        %v760 = vld [vmem:[%s266 + $0xdb0] sm:$0xff]
        %v761 = vld [vmem:[%s266 + $0xdb8] sm:$0xff]
        %v762 = vld [vmem:[%s266 + $0xdc0] sm:$0xff]
        %v763 = vld [vmem:[%s266 + $0xdc8] sm:$0xff]
        %v764 = vld [vmem:[%s266 + $0xdd0] sm:$0xff]
        %v765 = vld [vmem:[%s266 + $0xdd8] sm:$0xff]
        %v766 = vld [vmem:[%s266 + $0xde0] sm:$0xff]
        %v767 = vld [vmem:[%s266 + $0xde8] sm:$0xff]
        %v768 = vld [vmem:[%s266 + $0xdf0] sm:$0xff]
        %v769 = vld [vmem:[%s266 + $0xdf8] sm:$0xff]
        %v770 = vld [vmem:[%s266 + $0xe00] sm:$0xff]
        %v771 = vld [vmem:[%s266 + $0xe08] sm:$0xff]
        %v772 = vld [vmem:[%s266 + $0xe10] sm:$0xff]
        %v773 = vld [vmem:[%s266 + $0xe18] sm:$0xff]
        %v774 = vld [vmem:[%s266 + $0xe20] sm:$0xff]
        %v775 = vld [vmem:[%s266 + $0xe28] sm:$0xff]
        %v776 = vld [vmem:[%s266 + $0xe30] sm:$0xff]
        %v777 = vld [vmem:[%s266 + $0xe38] sm:$0xff]
        %v778 = vld [vmem:[%s266 + $0xe40] sm:$0xff]
        %v779 = vld [vmem:[%s266 + $0xe48] sm:$0xff]
        %v780 = vld [vmem:[%s266 + $0xe50] sm:$0xff]
        %v781 = vld [vmem:[%s266 + $0xe58] sm:$0xff]
        %v782 = vld [vmem:[%s266 + $0xe60] sm:$0xff]
        %v783 = vld [vmem:[%s266 + $0xe68] sm:$0xff]
        %v784 = vld [vmem:[%s266 + $0xe70] sm:$0xff]
        %v785 = vld [vmem:[%s266 + $0xe78] sm:$0xff]
        %v786 = vld [vmem:[%s266 + $0xe80] sm:$0xff]
        %v787 = vld [vmem:[%s266 + $0xe88] sm:$0xff]
        %v788 = vld [vmem:[%s266 + $0xe90] sm:$0xff]
        %v789 = vld [vmem:[%s266 + $0xe98] sm:$0xff]
        %v790 = vld [vmem:[%s266 + $0xea0] sm:$0xff]
        %v791 = vld [vmem:[%s266 + $0xea8] sm:$0xff]
        %v792 = vld [vmem:[%s266 + $0xeb0] sm:$0xff]
        %v793 = vld [vmem:[%s266 + $0xeb8] sm:$0xff]
        %v794 = vld [vmem:[%s266 + $0xec0] sm:$0xff]
        %v795 = vld [vmem:[%s266 + $0xec8] sm:$0xff]
        %v796 = vld [vmem:[%s266 + $0xed0] sm:$0xff]
        %v797 = vld [vmem:[%s266 + $0xed8] sm:$0xff]
        %v798 = vld [vmem:[%s266 + $0xee0] sm:$0xff]
        %v799 = vld [vmem:[%s266 + $0xee8] sm:$0xff]
        %v800 = vld [vmem:[%s266 + $0xef0] sm:$0xff]
        %v801 = vld [vmem:[%s266 + $0xef8] sm:$0xff]
        %v802 = vld [vmem:[%s266 + $0xf00] sm:$0xff]
        %v803 = vld [vmem:[%s266 + $0xf08] sm:$0xff]
        %v804 = vld [vmem:[%s266 + $0xf10] sm:$0xff]
        %v805 = vld [vmem:[%s266 + $0xf18] sm:$0xff]
        %v806 = vld [vmem:[%s266 + $0xf20] sm:$0xff]
        %v807 = vld [vmem:[%s266 + $0xf28] sm:$0xff]
        %v808 = vld [vmem:[%s266 + $0xf30] sm:$0xff]
        %v809 = vld [vmem:[%s266 + $0xf38] sm:$0xff]
        %v810 = vld [vmem:[%s266 + $0xf40] sm:$0xff]
        %v811 = vld [vmem:[%s266 + $0xf48] sm:$0xff]
        %v812 = vld [vmem:[%s266 + $0xf50] sm:$0xff]
        %v813 = vld [vmem:[%s266 + $0xf58] sm:$0xff]
        %v814 = vld [vmem:[%s266 + $0xf60] sm:$0xff]
        %v815 = vld [vmem:[%s266 + $0xf68] sm:$0xff]
        %v816 = vld [vmem:[%s266 + $0xf70] sm:$0xff]
        %v817 = vld [vmem:[%s266 + $0xf78] sm:$0xff]
        %v818 = vld [vmem:[%s266 + $0xf80] sm:$0xff]
        %v819 = vld [vmem:[%s266 + $0xf88] sm:$0xff]
        %v820 = vld [vmem:[%s266 + $0xf90] sm:$0xff]
        %v821 = vld [vmem:[%s266 + $0xf98] sm:$0xff]
        %v822 = vld [vmem:[%s266 + $0xfa0] sm:$0xff]
        %v823 = vld [vmem:[%s266 + $0xfa8] sm:$0xff]
        %v824 = vld [vmem:[%s266 + $0xfb0] sm:$0xff]
        %v825 = vld [vmem:[%s266 + $0xfb8] sm:$0xff]
        %v826 = vld [vmem:[%s266 + $0xfc0] sm:$0xff]
        %v827 = vld [vmem:[%s266 + $0xfc8] sm:$0xff]
        %v828 = vld [vmem:[%s266 + $0xfd0] sm:$0xff]
        %v829 = vld [vmem:[%s266 + $0xfd8] sm:$0xff]
        %v830 = vld [vmem:[%s266 + $0xfe0] sm:$0xff]
        %v831 = vld [vmem:[%s266 + $0xfe8] sm:$0xff]
        %v832 = vld [vmem:[%s266 + $0xff0] sm:$0xff]
        %v833 = vld [vmem:[%s266 + $0xff8] sm:$0xff]
        %v834 = vld [vmem:[%s308] sm:$0xff]
        %v835 = vld [vmem:[%s308 + $0x8] sm:$0xff]
        %v836 = vld [vmem:[%s308 + $0x10] sm:$0xff]
        %v837 = vld [vmem:[%s308 + $0x18] sm:$0xff]
        %v838 = vld [vmem:[%s308 + $0x20] sm:$0xff]
        %v839 = vld [vmem:[%s308 + $0x28] sm:$0xff]
        %v840 = vld [vmem:[%s308 + $0x30] sm:$0xff]
        %v841 = vld [vmem:[%s308 + $0x38] sm:$0xff]
        %v842 = vld [vmem:[%s308 + $0x40] sm:$0xff]
        %v843 = vld [vmem:[%s308 + $0x48] sm:$0xff]
        %v844 = vld [vmem:[%s308 + $0x50] sm:$0xff]
        %v845 = vld [vmem:[%s308 + $0x58] sm:$0xff]
        %v846 = vld [vmem:[%s308 + $0x60] sm:$0xff]
        %v847 = vld [vmem:[%s308 + $0x68] sm:$0xff]
        %v848 = vld [vmem:[%s308 + $0x70] sm:$0xff]
        %v849 = vld [vmem:[%s308 + $0x78] sm:$0xff]
        %v850 = vld [vmem:[%s308 + $0x80] sm:$0xff]
        %v851 = vld [vmem:[%s308 + $0x88] sm:$0xff]
        %v852 = vld [vmem:[%s308 + $0x90] sm:$0xff]
        %v853 = vld [vmem:[%s308 + $0x98] sm:$0xff]
        %v854 = vld [vmem:[%s308 + $0xa0] sm:$0xff]
        %v855 = vld [vmem:[%s308 + $0xa8] sm:$0xff]
        %v856 = vld [vmem:[%s308 + $0xb0] sm:$0xff]
        %v857 = vld [vmem:[%s308 + $0xb8] sm:$0xff]
        %v858 = vld [vmem:[%s308 + $0xc0] sm:$0xff]
        %v859 = vld [vmem:[%s308 + $0xc8] sm:$0xff]
        %v860 = vld [vmem:[%s308 + $0xd0] sm:$0xff]
        %v861 = vld [vmem:[%s308 + $0xd8] sm:$0xff]
        %v862 = vld [vmem:[%s308 + $0xe0] sm:$0xff]
        %v863 = vld [vmem:[%s308 + $0xe8] sm:$0xff]
        %v864 = vld [vmem:[%s308 + $0xf0] sm:$0xff]
        %v865 = vld [vmem:[%s308 + $0xf8] sm:$0xff]
        %v866 = vlaneseq
        %v867 = vshrl.u32 %v866, 7
        %v868 = vsub.s32 0, %v867
        %v869 = vrot.slane %v834, %v868
        %871 = vbcast.lane.b32.xlu0 %v869, 256
        %v872 = vpop.permute.xlu0 %871
        %s874 = sor.u32 256, 8
        %875 = vbcast.lane.b32.xlu0 %v869, %s874
        %v876 = vpop.permute.xlu0 %875
        %v877 = vlaneseq
        %v878 = vshrl.u32 %v877, 7
        %v879 = vsub.s32 1, %v878
        %v880 = vrot.slane %v834, %v879
        %882 = vbcast.lane.b32.xlu0 %v880, 256
        %v883 = vpop.permute.xlu0 %882
        %s885 = sor.u32 256, 8
        %886 = vbcast.lane.b32.xlu0 %v880, %s885
        %v887 = vpop.permute.xlu0 %886
        %v888 = vlaneseq
        %v889 = vshrl.u32 %v888, 7
        %v890 = vsub.s32 2, %v889
        %v891 = vrot.slane %v834, %v890
        %893 = vbcast.lane.b32.xlu0 %v891, 256
        %v894 = vpop.permute.xlu0 %893
        %s896 = sor.u32 256, 8
        %897 = vbcast.lane.b32.xlu0 %v891, %s896
        %v898 = vpop.permute.xlu0 %897
        %v899 = vlaneseq
        %v900 = vshrl.u32 %v899, 7
        %v901 = vsub.s32 3, %v900
        %v902 = vrot.slane %v834, %v901
        %904 = vbcast.lane.b32.xlu0 %v902, 256
        %v905 = vpop.permute.xlu0 %904
        %s907 = sor.u32 256, 8
        %908 = vbcast.lane.b32.xlu0 %v902, %s907
        %v909 = vpop.permute.xlu0 %908
        %v910 = vlaneseq
        %v911 = vshrl.u32 %v910, 7
        %v912 = vsub.s32 4, %v911
        %v913 = vrot.slane %v834, %v912
        %915 = vbcast.lane.b32.xlu0 %v913, 256
        %v916 = vpop.permute.xlu0 %915
        %s918 = sor.u32 256, 8
        %919 = vbcast.lane.b32.xlu0 %v913, %s918
        %v920 = vpop.permute.xlu0 %919
        %v921 = vlaneseq
        %v922 = vshrl.u32 %v921, 7
        %v923 = vsub.s32 5, %v922
        %v924 = vrot.slane %v834, %v923
        %926 = vbcast.lane.b32.xlu0 %v924, 256
        %v927 = vpop.permute.xlu0 %926
        %s929 = sor.u32 256, 8
        %930 = vbcast.lane.b32.xlu0 %v924, %s929
        %v931 = vpop.permute.xlu0 %930
        %v932 = vlaneseq
        %v933 = vshrl.u32 %v932, 7
        %v934 = vsub.s32 6, %v933
        %v935 = vrot.slane %v834, %v934
        %937 = vbcast.lane.b32.xlu0 %v935, 256
        %v938 = vpop.permute.xlu0 %937
        %s940 = sor.u32 256, 8
        %941 = vbcast.lane.b32.xlu0 %v935, %s940
        %v942 = vpop.permute.xlu0 %941
        %v943 = vlaneseq
        %v944 = vshrl.u32 %v943, 7
        %v945 = vsub.s32 7, %v944
        %v946 = vrot.slane %v834, %v945
        %948 = vbcast.lane.b32.xlu0 %v946, 256
        %v949 = vpop.permute.xlu0 %948
        %s951 = sor.u32 256, 8
        %952 = vbcast.lane.b32.xlu0 %v946, %s951
        %v953 = vpop.permute.xlu0 %952
        %v954 = vlaneseq
        %v955 = vshrl.u32 %v954, 7
        %v956 = vsub.s32 0, %v955
        %v957 = vrot.slane %v835, %v956
        %959 = vbcast.lane.b32.xlu0 %v957, 256
        %v960 = vpop.permute.xlu0 %959
        %s962 = sor.u32 256, 8
        %963 = vbcast.lane.b32.xlu0 %v957, %s962
        %v964 = vpop.permute.xlu0 %963
        %v965 = vlaneseq
        %v966 = vshrl.u32 %v965, 7
        %v967 = vsub.s32 1, %v966
        %v968 = vrot.slane %v835, %v967
        %970 = vbcast.lane.b32.xlu0 %v968, 256
        %v971 = vpop.permute.xlu0 %970
        %s973 = sor.u32 256, 8
        %974 = vbcast.lane.b32.xlu0 %v968, %s973
        %v975 = vpop.permute.xlu0 %974
        %v976 = vlaneseq
        %v977 = vshrl.u32 %v976, 7
        %v978 = vsub.s32 2, %v977
        %v979 = vrot.slane %v835, %v978
        %981 = vbcast.lane.b32.xlu0 %v979, 256
        %v982 = vpop.permute.xlu0 %981
        %s984 = sor.u32 256, 8
        %985 = vbcast.lane.b32.xlu0 %v979, %s984
        %v986 = vpop.permute.xlu0 %985
        %v987 = vlaneseq
        %v988 = vshrl.u32 %v987, 7
        %v989 = vsub.s32 3, %v988
        %v990 = vrot.slane %v835, %v989
        %992 = vbcast.lane.b32.xlu0 %v990, 256
        %v993 = vpop.permute.xlu0 %992
        %s995 = sor.u32 256, 8
        %996 = vbcast.lane.b32.xlu0 %v990, %s995
        %v997 = vpop.permute.xlu0 %996
        %v998 = vlaneseq
        %v999 = vshrl.u32 %v998, 7
        %v1000 = vsub.s32 4, %v999
        %v1001 = vrot.slane %v835, %v1000
        %1003 = vbcast.lane.b32.xlu0 %v1001, 256
        %v1004 = vpop.permute.xlu0 %1003
        %s1006 = sor.u32 256, 8
        %1007 = vbcast.lane.b32.xlu0 %v1001, %s1006
        %v1008 = vpop.permute.xlu0 %1007
        %v1009 = vlaneseq
        %v1010 = vshrl.u32 %v1009, 7
        %v1011 = vsub.s32 5, %v1010
        %v1012 = vrot.slane %v835, %v1011
        %1014 = vbcast.lane.b32.xlu0 %v1012, 256
        %v1015 = vpop.permute.xlu0 %1014
        %s1017 = sor.u32 256, 8
        %1018 = vbcast.lane.b32.xlu0 %v1012, %s1017
        %v1019 = vpop.permute.xlu0 %1018
        %v1020 = vlaneseq
        %v1021 = vshrl.u32 %v1020, 7
        %v1022 = vsub.s32 6, %v1021
        %v1023 = vrot.slane %v835, %v1022
        %1025 = vbcast.lane.b32.xlu0 %v1023, 256
        %v1026 = vpop.permute.xlu0 %1025
        %s1028 = sor.u32 256, 8
        %1029 = vbcast.lane.b32.xlu0 %v1023, %s1028
        %v1030 = vpop.permute.xlu0 %1029
        %v1031 = vlaneseq
        %v1032 = vshrl.u32 %v1031, 7
        %v1033 = vsub.s32 7, %v1032
        %v1034 = vrot.slane %v835, %v1033
        %1036 = vbcast.lane.b32.xlu0 %v1034, 256
        %v1037 = vpop.permute.xlu0 %1036
        %s1039 = sor.u32 256, 8
        %1040 = vbcast.lane.b32.xlu0 %v1034, %s1039
        %v1041 = vpop.permute.xlu0 %1040
        %v1042 = vlaneseq
        %v1043 = vshrl.u32 %v1042, 7
        %v1044 = vsub.s32 0, %v1043
        %v1045 = vrot.slane %v836, %v1044
        %1047 = vbcast.lane.b32.xlu0 %v1045, 256
        %v1048 = vpop.permute.xlu0 %1047
        %s1050 = sor.u32 256, 8
        %1051 = vbcast.lane.b32.xlu0 %v1045, %s1050
        %v1052 = vpop.permute.xlu0 %1051
        %v1053 = vlaneseq
        %v1054 = vshrl.u32 %v1053, 7
        %v1055 = vsub.s32 1, %v1054
        %v1056 = vrot.slane %v836, %v1055
        %1058 = vbcast.lane.b32.xlu0 %v1056, 256
        %v1059 = vpop.permute.xlu0 %1058
        %s1061 = sor.u32 256, 8
        %1062 = vbcast.lane.b32.xlu0 %v1056, %s1061
        %v1063 = vpop.permute.xlu0 %1062
        %v1064 = vlaneseq
        %v1065 = vshrl.u32 %v1064, 7
        %v1066 = vsub.s32 2, %v1065
        %v1067 = vrot.slane %v836, %v1066
        %1069 = vbcast.lane.b32.xlu0 %v1067, 256
        %v1070 = vpop.permute.xlu0 %1069
        %s1072 = sor.u32 256, 8
        %1073 = vbcast.lane.b32.xlu0 %v1067, %s1072
        %v1074 = vpop.permute.xlu0 %1073
        %v1075 = vlaneseq
        %v1076 = vshrl.u32 %v1075, 7
        %v1077 = vsub.s32 3, %v1076
        %v1078 = vrot.slane %v836, %v1077
        %1080 = vbcast.lane.b32.xlu0 %v1078, 256
        %v1081 = vpop.permute.xlu0 %1080
        %s1083 = sor.u32 256, 8
        %1084 = vbcast.lane.b32.xlu0 %v1078, %s1083
        %v1085 = vpop.permute.xlu0 %1084
        %v1086 = vlaneseq
        %v1087 = vshrl.u32 %v1086, 7
        %v1088 = vsub.s32 4, %v1087
        %v1089 = vrot.slane %v836, %v1088
        %1091 = vbcast.lane.b32.xlu0 %v1089, 256
        %v1092 = vpop.permute.xlu0 %1091
        %s1094 = sor.u32 256, 8
        %1095 = vbcast.lane.b32.xlu0 %v1089, %s1094
        %v1096 = vpop.permute.xlu0 %1095
        %v1097 = vlaneseq
        %v1098 = vshrl.u32 %v1097, 7
        %v1099 = vsub.s32 5, %v1098
        %v1100 = vrot.slane %v836, %v1099
        %1102 = vbcast.lane.b32.xlu0 %v1100, 256
        %v1103 = vpop.permute.xlu0 %1102
        %s1105 = sor.u32 256, 8
        %1106 = vbcast.lane.b32.xlu0 %v1100, %s1105
        %v1107 = vpop.permute.xlu0 %1106
        %v1108 = vlaneseq
        %v1109 = vshrl.u32 %v1108, 7
        %v1110 = vsub.s32 6, %v1109
        %v1111 = vrot.slane %v836, %v1110
        %1113 = vbcast.lane.b32.xlu0 %v1111, 256
        %v1114 = vpop.permute.xlu0 %1113
        %s1116 = sor.u32 256, 8
        %1117 = vbcast.lane.b32.xlu0 %v1111, %s1116
        %v1118 = vpop.permute.xlu0 %1117
        %v1119 = vlaneseq
        %v1120 = vshrl.u32 %v1119, 7
        %v1121 = vsub.s32 7, %v1120
        %v1122 = vrot.slane %v836, %v1121
        %1124 = vbcast.lane.b32.xlu0 %v1122, 256
        %v1125 = vpop.permute.xlu0 %1124
        %s1127 = sor.u32 256, 8
        %1128 = vbcast.lane.b32.xlu0 %v1122, %s1127
        %v1129 = vpop.permute.xlu0 %1128
        %v1130 = vlaneseq
        %v1131 = vshrl.u32 %v1130, 7
        %v1132 = vsub.s32 0, %v1131
        %v1133 = vrot.slane %v837, %v1132
        %1135 = vbcast.lane.b32.xlu0 %v1133, 256
        %v1136 = vpop.permute.xlu0 %1135
        %s1138 = sor.u32 256, 8
        %1139 = vbcast.lane.b32.xlu0 %v1133, %s1138
        %v1140 = vpop.permute.xlu0 %1139
        %v1141 = vlaneseq
        %v1142 = vshrl.u32 %v1141, 7
        %v1143 = vsub.s32 1, %v1142
        %v1144 = vrot.slane %v837, %v1143
        %1146 = vbcast.lane.b32.xlu0 %v1144, 256
        %v1147 = vpop.permute.xlu0 %1146
        %s1149 = sor.u32 256, 8
        %1150 = vbcast.lane.b32.xlu0 %v1144, %s1149
        %v1151 = vpop.permute.xlu0 %1150
        %v1152 = vlaneseq
        %v1153 = vshrl.u32 %v1152, 7
        %v1154 = vsub.s32 2, %v1153
        %v1155 = vrot.slane %v837, %v1154
        %1157 = vbcast.lane.b32.xlu0 %v1155, 256
        %v1158 = vpop.permute.xlu0 %1157
        %s1160 = sor.u32 256, 8
        %1161 = vbcast.lane.b32.xlu0 %v1155, %s1160
        %v1162 = vpop.permute.xlu0 %1161
        %v1163 = vlaneseq
        %v1164 = vshrl.u32 %v1163, 7
        %v1165 = vsub.s32 3, %v1164
        %v1166 = vrot.slane %v837, %v1165
        %1168 = vbcast.lane.b32.xlu0 %v1166, 256
        %v1169 = vpop.permute.xlu0 %1168
        %s1171 = sor.u32 256, 8
        %1172 = vbcast.lane.b32.xlu0 %v1166, %s1171
        %v1173 = vpop.permute.xlu0 %1172
        %v1174 = vlaneseq
        %v1175 = vshrl.u32 %v1174, 7
        %v1176 = vsub.s32 4, %v1175
        %v1177 = vrot.slane %v837, %v1176
        %1179 = vbcast.lane.b32.xlu0 %v1177, 256
        %v1180 = vpop.permute.xlu0 %1179
        %s1182 = sor.u32 256, 8
        %1183 = vbcast.lane.b32.xlu0 %v1177, %s1182
        %v1184 = vpop.permute.xlu0 %1183
        %v1185 = vlaneseq
        %v1186 = vshrl.u32 %v1185, 7
        %v1187 = vsub.s32 5, %v1186
        %v1188 = vrot.slane %v837, %v1187
        %1190 = vbcast.lane.b32.xlu0 %v1188, 256
        %v1191 = vpop.permute.xlu0 %1190
        %s1193 = sor.u32 256, 8
        %1194 = vbcast.lane.b32.xlu0 %v1188, %s1193
        %v1195 = vpop.permute.xlu0 %1194
        %v1196 = vlaneseq
        %v1197 = vshrl.u32 %v1196, 7
        %v1198 = vsub.s32 6, %v1197
        %v1199 = vrot.slane %v837, %v1198
        %1201 = vbcast.lane.b32.xlu0 %v1199, 256
        %v1202 = vpop.permute.xlu0 %1201
        %s1204 = sor.u32 256, 8
        %1205 = vbcast.lane.b32.xlu0 %v1199, %s1204
        %v1206 = vpop.permute.xlu0 %1205
        %v1207 = vlaneseq
        %v1208 = vshrl.u32 %v1207, 7
        %v1209 = vsub.s32 7, %v1208
        %v1210 = vrot.slane %v837, %v1209
        %1212 = vbcast.lane.b32.xlu0 %v1210, 256
        %v1213 = vpop.permute.xlu0 %1212
        %s1215 = sor.u32 256, 8
        %1216 = vbcast.lane.b32.xlu0 %v1210, %s1215
        %v1217 = vpop.permute.xlu0 %1216
        %v1218 = vlaneseq
        %v1219 = vshrl.u32 %v1218, 7
        %v1220 = vsub.s32 0, %v1219
        %v1221 = vrot.slane %v838, %v1220
        %1223 = vbcast.lane.b32.xlu0 %v1221, 256
        %v1224 = vpop.permute.xlu0 %1223
        %s1226 = sor.u32 256, 8
        %1227 = vbcast.lane.b32.xlu0 %v1221, %s1226
        %v1228 = vpop.permute.xlu0 %1227
        %v1229 = vlaneseq
        %v1230 = vshrl.u32 %v1229, 7
        %v1231 = vsub.s32 1, %v1230
        %v1232 = vrot.slane %v838, %v1231
        %1234 = vbcast.lane.b32.xlu0 %v1232, 256
        %v1235 = vpop.permute.xlu0 %1234
        %s1237 = sor.u32 256, 8
        %1238 = vbcast.lane.b32.xlu0 %v1232, %s1237
        %v1239 = vpop.permute.xlu0 %1238
        %v1240 = vlaneseq
        %v1241 = vshrl.u32 %v1240, 7
        %v1242 = vsub.s32 2, %v1241
        %v1243 = vrot.slane %v838, %v1242
        %1245 = vbcast.lane.b32.xlu0 %v1243, 256
        %v1246 = vpop.permute.xlu0 %1245
        %s1248 = sor.u32 256, 8
        %1249 = vbcast.lane.b32.xlu0 %v1243, %s1248
        %v1250 = vpop.permute.xlu0 %1249
        %v1251 = vlaneseq
        %v1252 = vshrl.u32 %v1251, 7
        %v1253 = vsub.s32 3, %v1252
        %v1254 = vrot.slane %v838, %v1253
        %1256 = vbcast.lane.b32.xlu0 %v1254, 256
        %v1257 = vpop.permute.xlu0 %1256
        %s1259 = sor.u32 256, 8
        %1260 = vbcast.lane.b32.xlu0 %v1254, %s1259
        %v1261 = vpop.permute.xlu0 %1260
        %v1262 = vlaneseq
        %v1263 = vshrl.u32 %v1262, 7
        %v1264 = vsub.s32 4, %v1263
        %v1265 = vrot.slane %v838, %v1264
        %1267 = vbcast.lane.b32.xlu0 %v1265, 256
        %v1268 = vpop.permute.xlu0 %1267
        %s1270 = sor.u32 256, 8
        %1271 = vbcast.lane.b32.xlu0 %v1265, %s1270
        %v1272 = vpop.permute.xlu0 %1271
        %v1273 = vlaneseq
        %v1274 = vshrl.u32 %v1273, 7
        %v1275 = vsub.s32 5, %v1274
        %v1276 = vrot.slane %v838, %v1275
        %1278 = vbcast.lane.b32.xlu0 %v1276, 256
        %v1279 = vpop.permute.xlu0 %1278
        %s1281 = sor.u32 256, 8
        %1282 = vbcast.lane.b32.xlu0 %v1276, %s1281
        %v1283 = vpop.permute.xlu0 %1282
        %v1284 = vlaneseq
        %v1285 = vshrl.u32 %v1284, 7
        %v1286 = vsub.s32 6, %v1285
        %v1287 = vrot.slane %v838, %v1286
        %1289 = vbcast.lane.b32.xlu0 %v1287, 256
        %v1290 = vpop.permute.xlu0 %1289
        %s1292 = sor.u32 256, 8
        %1293 = vbcast.lane.b32.xlu0 %v1287, %s1292
        %v1294 = vpop.permute.xlu0 %1293
        %v1295 = vlaneseq
        %v1296 = vshrl.u32 %v1295, 7
        %v1297 = vsub.s32 7, %v1296
        %v1298 = vrot.slane %v838, %v1297
        %1300 = vbcast.lane.b32.xlu0 %v1298, 256
        %v1301 = vpop.permute.xlu0 %1300
        %s1303 = sor.u32 256, 8
        %1304 = vbcast.lane.b32.xlu0 %v1298, %s1303
        %v1305 = vpop.permute.xlu0 %1304
        %v1306 = vlaneseq
        %v1307 = vshrl.u32 %v1306, 7
        %v1308 = vsub.s32 0, %v1307
        %v1309 = vrot.slane %v839, %v1308
        %1311 = vbcast.lane.b32.xlu0 %v1309, 256
        %v1312 = vpop.permute.xlu0 %1311
        %s1314 = sor.u32 256, 8
        %1315 = vbcast.lane.b32.xlu0 %v1309, %s1314
        %v1316 = vpop.permute.xlu0 %1315
        %v1317 = vlaneseq
        %v1318 = vshrl.u32 %v1317, 7
        %v1319 = vsub.s32 1, %v1318
        %v1320 = vrot.slane %v839, %v1319
        %1322 = vbcast.lane.b32.xlu0 %v1320, 256
        %v1323 = vpop.permute.xlu0 %1322
        %s1325 = sor.u32 256, 8
        %1326 = vbcast.lane.b32.xlu0 %v1320, %s1325
        %v1327 = vpop.permute.xlu0 %1326
        %v1328 = vlaneseq
        %v1329 = vshrl.u32 %v1328, 7
        %v1330 = vsub.s32 2, %v1329
        %v1331 = vrot.slane %v839, %v1330
        %1333 = vbcast.lane.b32.xlu0 %v1331, 256
        %v1334 = vpop.permute.xlu0 %1333
        %s1336 = sor.u32 256, 8
        %1337 = vbcast.lane.b32.xlu0 %v1331, %s1336
        %v1338 = vpop.permute.xlu0 %1337
        %v1339 = vlaneseq
        %v1340 = vshrl.u32 %v1339, 7
        %v1341 = vsub.s32 3, %v1340
        %v1342 = vrot.slane %v839, %v1341
        %1344 = vbcast.lane.b32.xlu0 %v1342, 256
        %v1345 = vpop.permute.xlu0 %1344
        %s1347 = sor.u32 256, 8
        %1348 = vbcast.lane.b32.xlu0 %v1342, %s1347
        %v1349 = vpop.permute.xlu0 %1348
        %v1350 = vlaneseq
        %v1351 = vshrl.u32 %v1350, 7
        %v1352 = vsub.s32 4, %v1351
        %v1353 = vrot.slane %v839, %v1352
        %1355 = vbcast.lane.b32.xlu0 %v1353, 256
        %v1356 = vpop.permute.xlu0 %1355
        %s1358 = sor.u32 256, 8
        %1359 = vbcast.lane.b32.xlu0 %v1353, %s1358
        %v1360 = vpop.permute.xlu0 %1359
        %v1361 = vlaneseq
        %v1362 = vshrl.u32 %v1361, 7
        %v1363 = vsub.s32 5, %v1362
        %v1364 = vrot.slane %v839, %v1363
        %1366 = vbcast.lane.b32.xlu0 %v1364, 256
        %v1367 = vpop.permute.xlu0 %1366
        %s1369 = sor.u32 256, 8
        %1370 = vbcast.lane.b32.xlu0 %v1364, %s1369
        %v1371 = vpop.permute.xlu0 %1370
        %v1372 = vlaneseq
        %v1373 = vshrl.u32 %v1372, 7
        %v1374 = vsub.s32 6, %v1373
        %v1375 = vrot.slane %v839, %v1374
        %1377 = vbcast.lane.b32.xlu0 %v1375, 256
        %v1378 = vpop.permute.xlu0 %1377
        %s1380 = sor.u32 256, 8
        %1381 = vbcast.lane.b32.xlu0 %v1375, %s1380
        %v1382 = vpop.permute.xlu0 %1381
        %v1383 = vlaneseq
        %v1384 = vshrl.u32 %v1383, 7
        %v1385 = vsub.s32 7, %v1384
        %v1386 = vrot.slane %v839, %v1385
        %1388 = vbcast.lane.b32.xlu0 %v1386, 256
        %v1389 = vpop.permute.xlu0 %1388
        %s1391 = sor.u32 256, 8
        %1392 = vbcast.lane.b32.xlu0 %v1386, %s1391
        %v1393 = vpop.permute.xlu0 %1392
        %v1394 = vlaneseq
        %v1395 = vshrl.u32 %v1394, 7
        %v1396 = vsub.s32 0, %v1395
        %v1397 = vrot.slane %v840, %v1396
        %1399 = vbcast.lane.b32.xlu0 %v1397, 256
        %v1400 = vpop.permute.xlu0 %1399
        %s1402 = sor.u32 256, 8
        %1403 = vbcast.lane.b32.xlu0 %v1397, %s1402
        %v1404 = vpop.permute.xlu0 %1403
        %v1405 = vlaneseq
        %v1406 = vshrl.u32 %v1405, 7
        %v1407 = vsub.s32 1, %v1406
        %v1408 = vrot.slane %v840, %v1407
        %1410 = vbcast.lane.b32.xlu0 %v1408, 256
        %v1411 = vpop.permute.xlu0 %1410
        %s1413 = sor.u32 256, 8
        %1414 = vbcast.lane.b32.xlu0 %v1408, %s1413
        %v1415 = vpop.permute.xlu0 %1414
        %v1416 = vlaneseq
        %v1417 = vshrl.u32 %v1416, 7
        %v1418 = vsub.s32 2, %v1417
        %v1419 = vrot.slane %v840, %v1418
        %1421 = vbcast.lane.b32.xlu0 %v1419, 256
        %v1422 = vpop.permute.xlu0 %1421
        %s1424 = sor.u32 256, 8
        %1425 = vbcast.lane.b32.xlu0 %v1419, %s1424
        %v1426 = vpop.permute.xlu0 %1425
        %v1427 = vlaneseq
        %v1428 = vshrl.u32 %v1427, 7
        %v1429 = vsub.s32 3, %v1428
        %v1430 = vrot.slane %v840, %v1429
        %1432 = vbcast.lane.b32.xlu0 %v1430, 256
        %v1433 = vpop.permute.xlu0 %1432
        %s1435 = sor.u32 256, 8
        %1436 = vbcast.lane.b32.xlu0 %v1430, %s1435
        %v1437 = vpop.permute.xlu0 %1436
        %v1438 = vlaneseq
        %v1439 = vshrl.u32 %v1438, 7
        %v1440 = vsub.s32 4, %v1439
        %v1441 = vrot.slane %v840, %v1440
        %1443 = vbcast.lane.b32.xlu0 %v1441, 256
        %v1444 = vpop.permute.xlu0 %1443
        %s1446 = sor.u32 256, 8
        %1447 = vbcast.lane.b32.xlu0 %v1441, %s1446
        %v1448 = vpop.permute.xlu0 %1447
        %v1449 = vlaneseq
        %v1450 = vshrl.u32 %v1449, 7
        %v1451 = vsub.s32 5, %v1450
        %v1452 = vrot.slane %v840, %v1451
        %1454 = vbcast.lane.b32.xlu0 %v1452, 256
        %v1455 = vpop.permute.xlu0 %1454
        %s1457 = sor.u32 256, 8
        %1458 = vbcast.lane.b32.xlu0 %v1452, %s1457
        %v1459 = vpop.permute.xlu0 %1458
        %v1460 = vlaneseq
        %v1461 = vshrl.u32 %v1460, 7
        %v1462 = vsub.s32 6, %v1461
        %v1463 = vrot.slane %v840, %v1462
        %1465 = vbcast.lane.b32.xlu0 %v1463, 256
        %v1466 = vpop.permute.xlu0 %1465
        %s1468 = sor.u32 256, 8
        %1469 = vbcast.lane.b32.xlu0 %v1463, %s1468
        %v1470 = vpop.permute.xlu0 %1469
        %v1471 = vlaneseq
        %v1472 = vshrl.u32 %v1471, 7
        %v1473 = vsub.s32 7, %v1472
        %v1474 = vrot.slane %v840, %v1473
        %1476 = vbcast.lane.b32.xlu0 %v1474, 256
        %v1477 = vpop.permute.xlu0 %1476
        %s1479 = sor.u32 256, 8
        %1480 = vbcast.lane.b32.xlu0 %v1474, %s1479
        %v1481 = vpop.permute.xlu0 %1480
        %v1482 = vlaneseq
        %v1483 = vshrl.u32 %v1482, 7
        %v1484 = vsub.s32 0, %v1483
        %v1485 = vrot.slane %v841, %v1484
        %1487 = vbcast.lane.b32.xlu0 %v1485, 256
        %v1488 = vpop.permute.xlu0 %1487
        %s1490 = sor.u32 256, 8
        %1491 = vbcast.lane.b32.xlu0 %v1485, %s1490
        %v1492 = vpop.permute.xlu0 %1491
        %v1493 = vlaneseq
        %v1494 = vshrl.u32 %v1493, 7
        %v1495 = vsub.s32 1, %v1494
        %v1496 = vrot.slane %v841, %v1495
        %1498 = vbcast.lane.b32.xlu0 %v1496, 256
        %v1499 = vpop.permute.xlu0 %1498
        %s1501 = sor.u32 256, 8
        %1502 = vbcast.lane.b32.xlu0 %v1496, %s1501
        %v1503 = vpop.permute.xlu0 %1502
        %v1504 = vlaneseq
        %v1505 = vshrl.u32 %v1504, 7
        %v1506 = vsub.s32 2, %v1505
        %v1507 = vrot.slane %v841, %v1506
        %1509 = vbcast.lane.b32.xlu0 %v1507, 256
        %v1510 = vpop.permute.xlu0 %1509
        %s1512 = sor.u32 256, 8
        %1513 = vbcast.lane.b32.xlu0 %v1507, %s1512
        %v1514 = vpop.permute.xlu0 %1513
        %v1515 = vlaneseq
        %v1516 = vshrl.u32 %v1515, 7
        %v1517 = vsub.s32 3, %v1516
        %v1518 = vrot.slane %v841, %v1517
        %1520 = vbcast.lane.b32.xlu0 %v1518, 256
        %v1521 = vpop.permute.xlu0 %1520
        %s1523 = sor.u32 256, 8
        %1524 = vbcast.lane.b32.xlu0 %v1518, %s1523
        %v1525 = vpop.permute.xlu0 %1524
        %v1526 = vlaneseq
        %v1527 = vshrl.u32 %v1526, 7
        %v1528 = vsub.s32 4, %v1527
        %v1529 = vrot.slane %v841, %v1528
        %1531 = vbcast.lane.b32.xlu0 %v1529, 256
        %v1532 = vpop.permute.xlu0 %1531
        %s1534 = sor.u32 256, 8
        %1535 = vbcast.lane.b32.xlu0 %v1529, %s1534
        %v1536 = vpop.permute.xlu0 %1535
        %v1537 = vlaneseq
        %v1538 = vshrl.u32 %v1537, 7
        %v1539 = vsub.s32 5, %v1538
        %v1540 = vrot.slane %v841, %v1539
        %1542 = vbcast.lane.b32.xlu0 %v1540, 256
        %v1543 = vpop.permute.xlu0 %1542
        %s1545 = sor.u32 256, 8
        %1546 = vbcast.lane.b32.xlu0 %v1540, %s1545
        %v1547 = vpop.permute.xlu0 %1546
        %v1548 = vlaneseq
        %v1549 = vshrl.u32 %v1548, 7
        %v1550 = vsub.s32 6, %v1549
        %v1551 = vrot.slane %v841, %v1550
        %1553 = vbcast.lane.b32.xlu0 %v1551, 256
        %v1554 = vpop.permute.xlu0 %1553
        %s1556 = sor.u32 256, 8
        %1557 = vbcast.lane.b32.xlu0 %v1551, %s1556
        %v1558 = vpop.permute.xlu0 %1557
        %v1559 = vlaneseq
        %v1560 = vshrl.u32 %v1559, 7
        %v1561 = vsub.s32 7, %v1560
        %v1562 = vrot.slane %v841, %v1561
        %1564 = vbcast.lane.b32.xlu0 %v1562, 256
        %v1565 = vpop.permute.xlu0 %1564
        %s1567 = sor.u32 256, 8
        %1568 = vbcast.lane.b32.xlu0 %v1562, %s1567
        %v1569 = vpop.permute.xlu0 %1568
        %v1570 = vlaneseq
        %v1571 = vshrl.u32 %v1570, 7
        %v1572 = vsub.s32 0, %v1571
        %v1573 = vrot.slane %v842, %v1572
        %1575 = vbcast.lane.b32.xlu0 %v1573, 256
        %v1576 = vpop.permute.xlu0 %1575
        %s1578 = sor.u32 256, 8
        %1579 = vbcast.lane.b32.xlu0 %v1573, %s1578
        %v1580 = vpop.permute.xlu0 %1579
        %v1581 = vlaneseq
        %v1582 = vshrl.u32 %v1581, 7
        %v1583 = vsub.s32 1, %v1582
        %v1584 = vrot.slane %v842, %v1583
        %1586 = vbcast.lane.b32.xlu0 %v1584, 256
        %v1587 = vpop.permute.xlu0 %1586
        %s1589 = sor.u32 256, 8
        %1590 = vbcast.lane.b32.xlu0 %v1584, %s1589
        %v1591 = vpop.permute.xlu0 %1590
        %v1592 = vlaneseq
        %v1593 = vshrl.u32 %v1592, 7
        %v1594 = vsub.s32 2, %v1593
        %v1595 = vrot.slane %v842, %v1594
        %1597 = vbcast.lane.b32.xlu0 %v1595, 256
        %v1598 = vpop.permute.xlu0 %1597
        %s1600 = sor.u32 256, 8
        %1601 = vbcast.lane.b32.xlu0 %v1595, %s1600
        %v1602 = vpop.permute.xlu0 %1601
        %v1603 = vlaneseq
        %v1604 = vshrl.u32 %v1603, 7
        %v1605 = vsub.s32 3, %v1604
        %v1606 = vrot.slane %v842, %v1605
        %1608 = vbcast.lane.b32.xlu0 %v1606, 256
        %v1609 = vpop.permute.xlu0 %1608
        %s1611 = sor.u32 256, 8
        %1612 = vbcast.lane.b32.xlu0 %v1606, %s1611
        %v1613 = vpop.permute.xlu0 %1612
        %v1614 = vlaneseq
        %v1615 = vshrl.u32 %v1614, 7
        %v1616 = vsub.s32 4, %v1615
        %v1617 = vrot.slane %v842, %v1616
        %1619 = vbcast.lane.b32.xlu0 %v1617, 256
        %v1620 = vpop.permute.xlu0 %1619
        %s1622 = sor.u32 256, 8
        %1623 = vbcast.lane.b32.xlu0 %v1617, %s1622
        %v1624 = vpop.permute.xlu0 %1623
        %v1625 = vlaneseq
        %v1626 = vshrl.u32 %v1625, 7
        %v1627 = vsub.s32 5, %v1626
        %v1628 = vrot.slane %v842, %v1627
        %1630 = vbcast.lane.b32.xlu0 %v1628, 256
        %v1631 = vpop.permute.xlu0 %1630
        %s1633 = sor.u32 256, 8
        %1634 = vbcast.lane.b32.xlu0 %v1628, %s1633
        %v1635 = vpop.permute.xlu0 %1634
        %v1636 = vlaneseq
        %v1637 = vshrl.u32 %v1636, 7
        %v1638 = vsub.s32 6, %v1637
        %v1639 = vrot.slane %v842, %v1638
        %1641 = vbcast.lane.b32.xlu0 %v1639, 256
        %v1642 = vpop.permute.xlu0 %1641
        %s1644 = sor.u32 256, 8
        %1645 = vbcast.lane.b32.xlu0 %v1639, %s1644
        %v1646 = vpop.permute.xlu0 %1645
        %v1647 = vlaneseq
        %v1648 = vshrl.u32 %v1647, 7
        %v1649 = vsub.s32 7, %v1648
        %v1650 = vrot.slane %v842, %v1649
        %1652 = vbcast.lane.b32.xlu0 %v1650, 256
        %v1653 = vpop.permute.xlu0 %1652
        %s1655 = sor.u32 256, 8
        %1656 = vbcast.lane.b32.xlu0 %v1650, %s1655
        %v1657 = vpop.permute.xlu0 %1656
        %v1658 = vlaneseq
        %v1659 = vshrl.u32 %v1658, 7
        %v1660 = vsub.s32 0, %v1659
        %v1661 = vrot.slane %v843, %v1660
        %1663 = vbcast.lane.b32.xlu0 %v1661, 256
        %v1664 = vpop.permute.xlu0 %1663
        %s1666 = sor.u32 256, 8
        %1667 = vbcast.lane.b32.xlu0 %v1661, %s1666
        %v1668 = vpop.permute.xlu0 %1667
        %v1669 = vlaneseq
        %v1670 = vshrl.u32 %v1669, 7
        %v1671 = vsub.s32 1, %v1670
        %v1672 = vrot.slane %v843, %v1671
        %1674 = vbcast.lane.b32.xlu0 %v1672, 256
        %v1675 = vpop.permute.xlu0 %1674
        %s1677 = sor.u32 256, 8
        %1678 = vbcast.lane.b32.xlu0 %v1672, %s1677
        %v1679 = vpop.permute.xlu0 %1678
        %v1680 = vlaneseq
        %v1681 = vshrl.u32 %v1680, 7
        %v1682 = vsub.s32 2, %v1681
        %v1683 = vrot.slane %v843, %v1682
        %1685 = vbcast.lane.b32.xlu0 %v1683, 256
        %v1686 = vpop.permute.xlu0 %1685
        %s1688 = sor.u32 256, 8
        %1689 = vbcast.lane.b32.xlu0 %v1683, %s1688
        %v1690 = vpop.permute.xlu0 %1689
        %v1691 = vlaneseq
        %v1692 = vshrl.u32 %v1691, 7
        %v1693 = vsub.s32 3, %v1692
        %v1694 = vrot.slane %v843, %v1693
        %1696 = vbcast.lane.b32.xlu0 %v1694, 256
        %v1697 = vpop.permute.xlu0 %1696
        %s1699 = sor.u32 256, 8
        %1700 = vbcast.lane.b32.xlu0 %v1694, %s1699
        %v1701 = vpop.permute.xlu0 %1700
        %v1702 = vlaneseq
        %v1703 = vshrl.u32 %v1702, 7
        %v1704 = vsub.s32 4, %v1703
        %v1705 = vrot.slane %v843, %v1704
        %1707 = vbcast.lane.b32.xlu0 %v1705, 256
        %v1708 = vpop.permute.xlu0 %1707
        %s1710 = sor.u32 256, 8
        %1711 = vbcast.lane.b32.xlu0 %v1705, %s1710
        %v1712 = vpop.permute.xlu0 %1711
        %v1713 = vlaneseq
        %v1714 = vshrl.u32 %v1713, 7
        %v1715 = vsub.s32 5, %v1714
        %v1716 = vrot.slane %v843, %v1715
        %1718 = vbcast.lane.b32.xlu0 %v1716, 256
        %v1719 = vpop.permute.xlu0 %1718
        %s1721 = sor.u32 256, 8
        %1722 = vbcast.lane.b32.xlu0 %v1716, %s1721
        %v1723 = vpop.permute.xlu0 %1722
        %v1724 = vlaneseq
        %v1725 = vshrl.u32 %v1724, 7
        %v1726 = vsub.s32 6, %v1725
        %v1727 = vrot.slane %v843, %v1726
        %1729 = vbcast.lane.b32.xlu0 %v1727, 256
        %v1730 = vpop.permute.xlu0 %1729
        %s1732 = sor.u32 256, 8
        %1733 = vbcast.lane.b32.xlu0 %v1727, %s1732
        %v1734 = vpop.permute.xlu0 %1733
        %v1735 = vlaneseq
        %v1736 = vshrl.u32 %v1735, 7
        %v1737 = vsub.s32 7, %v1736
        %v1738 = vrot.slane %v843, %v1737
        %1740 = vbcast.lane.b32.xlu0 %v1738, 256
        %v1741 = vpop.permute.xlu0 %1740
        %s1743 = sor.u32 256, 8
        %1744 = vbcast.lane.b32.xlu0 %v1738, %s1743
        %v1745 = vpop.permute.xlu0 %1744
        %v1746 = vlaneseq
        %v1747 = vshrl.u32 %v1746, 7
        %v1748 = vsub.s32 0, %v1747
        %v1749 = vrot.slane %v844, %v1748
        %1751 = vbcast.lane.b32.xlu0 %v1749, 256
        %v1752 = vpop.permute.xlu0 %1751
        %s1754 = sor.u32 256, 8
        %1755 = vbcast.lane.b32.xlu0 %v1749, %s1754
        %v1756 = vpop.permute.xlu0 %1755
        %v1757 = vlaneseq
        %v1758 = vshrl.u32 %v1757, 7
        %v1759 = vsub.s32 1, %v1758
        %v1760 = vrot.slane %v844, %v1759
        %1762 = vbcast.lane.b32.xlu0 %v1760, 256
        %v1763 = vpop.permute.xlu0 %1762
        %s1765 = sor.u32 256, 8
        %1766 = vbcast.lane.b32.xlu0 %v1760, %s1765
        %v1767 = vpop.permute.xlu0 %1766
        %v1768 = vlaneseq
        %v1769 = vshrl.u32 %v1768, 7
        %v1770 = vsub.s32 2, %v1769
        %v1771 = vrot.slane %v844, %v1770
        %1773 = vbcast.lane.b32.xlu0 %v1771, 256
        %v1774 = vpop.permute.xlu0 %1773
        %s1776 = sor.u32 256, 8
        %1777 = vbcast.lane.b32.xlu0 %v1771, %s1776
        %v1778 = vpop.permute.xlu0 %1777
        %v1779 = vlaneseq
        %v1780 = vshrl.u32 %v1779, 7
        %v1781 = vsub.s32 3, %v1780
        %v1782 = vrot.slane %v844, %v1781
        %1784 = vbcast.lane.b32.xlu0 %v1782, 256
        %v1785 = vpop.permute.xlu0 %1784
        %s1787 = sor.u32 256, 8
        %1788 = vbcast.lane.b32.xlu0 %v1782, %s1787
        %v1789 = vpop.permute.xlu0 %1788
        %v1790 = vlaneseq
        %v1791 = vshrl.u32 %v1790, 7
        %v1792 = vsub.s32 4, %v1791
        %v1793 = vrot.slane %v844, %v1792
        %1795 = vbcast.lane.b32.xlu0 %v1793, 256
        %v1796 = vpop.permute.xlu0 %1795
        %s1798 = sor.u32 256, 8
        %1799 = vbcast.lane.b32.xlu0 %v1793, %s1798
        %v1800 = vpop.permute.xlu0 %1799
        %v1801 = vlaneseq
        %v1802 = vshrl.u32 %v1801, 7
        %v1803 = vsub.s32 5, %v1802
        %v1804 = vrot.slane %v844, %v1803
        %1806 = vbcast.lane.b32.xlu0 %v1804, 256
        %v1807 = vpop.permute.xlu0 %1806
        %s1809 = sor.u32 256, 8
        %1810 = vbcast.lane.b32.xlu0 %v1804, %s1809
        %v1811 = vpop.permute.xlu0 %1810
        %v1812 = vlaneseq
        %v1813 = vshrl.u32 %v1812, 7
        %v1814 = vsub.s32 6, %v1813
        %v1815 = vrot.slane %v844, %v1814
        %1817 = vbcast.lane.b32.xlu0 %v1815, 256
        %v1818 = vpop.permute.xlu0 %1817
        %s1820 = sor.u32 256, 8
        %1821 = vbcast.lane.b32.xlu0 %v1815, %s1820
        %v1822 = vpop.permute.xlu0 %1821
        %v1823 = vlaneseq
        %v1824 = vshrl.u32 %v1823, 7
        %v1825 = vsub.s32 7, %v1824
        %v1826 = vrot.slane %v844, %v1825
        %1828 = vbcast.lane.b32.xlu0 %v1826, 256
        %v1829 = vpop.permute.xlu0 %1828
        %s1831 = sor.u32 256, 8
        %1832 = vbcast.lane.b32.xlu0 %v1826, %s1831
        %v1833 = vpop.permute.xlu0 %1832
        %v1834 = vlaneseq
        %v1835 = vshrl.u32 %v1834, 7
        %v1836 = vsub.s32 0, %v1835
        %v1837 = vrot.slane %v845, %v1836
        %1839 = vbcast.lane.b32.xlu0 %v1837, 256
        %v1840 = vpop.permute.xlu0 %1839
        %s1842 = sor.u32 256, 8
        %1843 = vbcast.lane.b32.xlu0 %v1837, %s1842
        %v1844 = vpop.permute.xlu0 %1843
        %v1845 = vlaneseq
        %v1846 = vshrl.u32 %v1845, 7
        %v1847 = vsub.s32 1, %v1846
        %v1848 = vrot.slane %v845, %v1847
        %1850 = vbcast.lane.b32.xlu0 %v1848, 256
        %v1851 = vpop.permute.xlu0 %1850
        %s1853 = sor.u32 256, 8
        %1854 = vbcast.lane.b32.xlu0 %v1848, %s1853
        %v1855 = vpop.permute.xlu0 %1854
        %v1856 = vlaneseq
        %v1857 = vshrl.u32 %v1856, 7
        %v1858 = vsub.s32 2, %v1857
        %v1859 = vrot.slane %v845, %v1858
        %1861 = vbcast.lane.b32.xlu0 %v1859, 256
        %v1862 = vpop.permute.xlu0 %1861
        %s1864 = sor.u32 256, 8
        %1865 = vbcast.lane.b32.xlu0 %v1859, %s1864
        %v1866 = vpop.permute.xlu0 %1865
        %v1867 = vlaneseq
        %v1868 = vshrl.u32 %v1867, 7
        %v1869 = vsub.s32 3, %v1868
        %v1870 = vrot.slane %v845, %v1869
        %1872 = vbcast.lane.b32.xlu0 %v1870, 256
        %v1873 = vpop.permute.xlu0 %1872
        %s1875 = sor.u32 256, 8
        %1876 = vbcast.lane.b32.xlu0 %v1870, %s1875
        %v1877 = vpop.permute.xlu0 %1876
        %v1878 = vlaneseq
        %v1879 = vshrl.u32 %v1878, 7
        %v1880 = vsub.s32 4, %v1879
        %v1881 = vrot.slane %v845, %v1880
        %1883 = vbcast.lane.b32.xlu0 %v1881, 256
        %v1884 = vpop.permute.xlu0 %1883
        %s1886 = sor.u32 256, 8
        %1887 = vbcast.lane.b32.xlu0 %v1881, %s1886
        %v1888 = vpop.permute.xlu0 %1887
        %v1889 = vlaneseq
        %v1890 = vshrl.u32 %v1889, 7
        %v1891 = vsub.s32 5, %v1890
        %v1892 = vrot.slane %v845, %v1891
        %1894 = vbcast.lane.b32.xlu0 %v1892, 256
        %v1895 = vpop.permute.xlu0 %1894
        %s1897 = sor.u32 256, 8
        %1898 = vbcast.lane.b32.xlu0 %v1892, %s1897
        %v1899 = vpop.permute.xlu0 %1898
        %v1900 = vlaneseq
        %v1901 = vshrl.u32 %v1900, 7
        %v1902 = vsub.s32 6, %v1901
        %v1903 = vrot.slane %v845, %v1902
        %1905 = vbcast.lane.b32.xlu0 %v1903, 256
        %v1906 = vpop.permute.xlu0 %1905
        %s1908 = sor.u32 256, 8
        %1909 = vbcast.lane.b32.xlu0 %v1903, %s1908
        %v1910 = vpop.permute.xlu0 %1909
        %v1911 = vlaneseq
        %v1912 = vshrl.u32 %v1911, 7
        %v1913 = vsub.s32 7, %v1912
        %v1914 = vrot.slane %v845, %v1913
        %1916 = vbcast.lane.b32.xlu0 %v1914, 256
        %v1917 = vpop.permute.xlu0 %1916
        %s1919 = sor.u32 256, 8
        %1920 = vbcast.lane.b32.xlu0 %v1914, %s1919
        %v1921 = vpop.permute.xlu0 %1920
        %v1922 = vlaneseq
        %v1923 = vshrl.u32 %v1922, 7
        %v1924 = vsub.s32 0, %v1923
        %v1925 = vrot.slane %v846, %v1924
        %1927 = vbcast.lane.b32.xlu0 %v1925, 256
        %v1928 = vpop.permute.xlu0 %1927
        %s1930 = sor.u32 256, 8
        %1931 = vbcast.lane.b32.xlu0 %v1925, %s1930
        %v1932 = vpop.permute.xlu0 %1931
        %v1933 = vlaneseq
        %v1934 = vshrl.u32 %v1933, 7
        %v1935 = vsub.s32 1, %v1934
        %v1936 = vrot.slane %v846, %v1935
        %1938 = vbcast.lane.b32.xlu0 %v1936, 256
        %v1939 = vpop.permute.xlu0 %1938
        %s1941 = sor.u32 256, 8
        %1942 = vbcast.lane.b32.xlu0 %v1936, %s1941
        %v1943 = vpop.permute.xlu0 %1942
        %v1944 = vlaneseq
        %v1945 = vshrl.u32 %v1944, 7
        %v1946 = vsub.s32 2, %v1945
        %v1947 = vrot.slane %v846, %v1946
        %1949 = vbcast.lane.b32.xlu0 %v1947, 256
        %v1950 = vpop.permute.xlu0 %1949
        %s1952 = sor.u32 256, 8
        %1953 = vbcast.lane.b32.xlu0 %v1947, %s1952
        %v1954 = vpop.permute.xlu0 %1953
        %v1955 = vlaneseq
        %v1956 = vshrl.u32 %v1955, 7
        %v1957 = vsub.s32 3, %v1956
        %v1958 = vrot.slane %v846, %v1957
        %1960 = vbcast.lane.b32.xlu0 %v1958, 256
        %v1961 = vpop.permute.xlu0 %1960
        %s1963 = sor.u32 256, 8
        %1964 = vbcast.lane.b32.xlu0 %v1958, %s1963
        %v1965 = vpop.permute.xlu0 %1964
        %v1966 = vlaneseq
        %v1967 = vshrl.u32 %v1966, 7
        %v1968 = vsub.s32 4, %v1967
        %v1969 = vrot.slane %v846, %v1968
        %1971 = vbcast.lane.b32.xlu0 %v1969, 256
        %v1972 = vpop.permute.xlu0 %1971
        %s1974 = sor.u32 256, 8
        %1975 = vbcast.lane.b32.xlu0 %v1969, %s1974
        %v1976 = vpop.permute.xlu0 %1975
        %v1977 = vlaneseq
        %v1978 = vshrl.u32 %v1977, 7
        %v1979 = vsub.s32 5, %v1978
        %v1980 = vrot.slane %v846, %v1979
        %1982 = vbcast.lane.b32.xlu0 %v1980, 256
        %v1983 = vpop.permute.xlu0 %1982
        %s1985 = sor.u32 256, 8
        %1986 = vbcast.lane.b32.xlu0 %v1980, %s1985
        %v1987 = vpop.permute.xlu0 %1986
        %v1988 = vlaneseq
        %v1989 = vshrl.u32 %v1988, 7
        %v1990 = vsub.s32 6, %v1989
        %v1991 = vrot.slane %v846, %v1990
        %1993 = vbcast.lane.b32.xlu0 %v1991, 256
        %v1994 = vpop.permute.xlu0 %1993
        %s1996 = sor.u32 256, 8
        %1997 = vbcast.lane.b32.xlu0 %v1991, %s1996
        %v1998 = vpop.permute.xlu0 %1997
        %v1999 = vlaneseq
        %v2000 = vshrl.u32 %v1999, 7
        %v2001 = vsub.s32 7, %v2000
        %v2002 = vrot.slane %v846, %v2001
        %2004 = vbcast.lane.b32.xlu0 %v2002, 256
        %v2005 = vpop.permute.xlu0 %2004
        %s2007 = sor.u32 256, 8
        %2008 = vbcast.lane.b32.xlu0 %v2002, %s2007
        %v2009 = vpop.permute.xlu0 %2008
        %v2010 = vlaneseq
        %v2011 = vshrl.u32 %v2010, 7
        %v2012 = vsub.s32 0, %v2011
        %v2013 = vrot.slane %v847, %v2012
        %2015 = vbcast.lane.b32.xlu0 %v2013, 256
        %v2016 = vpop.permute.xlu0 %2015
        %s2018 = sor.u32 256, 8
        %2019 = vbcast.lane.b32.xlu0 %v2013, %s2018
        %v2020 = vpop.permute.xlu0 %2019
        %v2021 = vlaneseq
        %v2022 = vshrl.u32 %v2021, 7
        %v2023 = vsub.s32 1, %v2022
        %v2024 = vrot.slane %v847, %v2023
        %2026 = vbcast.lane.b32.xlu0 %v2024, 256
        %v2027 = vpop.permute.xlu0 %2026
        %s2029 = sor.u32 256, 8
        %2030 = vbcast.lane.b32.xlu0 %v2024, %s2029
        %v2031 = vpop.permute.xlu0 %2030
        %v2032 = vlaneseq
        %v2033 = vshrl.u32 %v2032, 7
        %v2034 = vsub.s32 2, %v2033
        %v2035 = vrot.slane %v847, %v2034
        %2037 = vbcast.lane.b32.xlu0 %v2035, 256
        %v2038 = vpop.permute.xlu0 %2037
        %s2040 = sor.u32 256, 8
        %2041 = vbcast.lane.b32.xlu0 %v2035, %s2040
        %v2042 = vpop.permute.xlu0 %2041
        %v2043 = vlaneseq
        %v2044 = vshrl.u32 %v2043, 7
        %v2045 = vsub.s32 3, %v2044
        %v2046 = vrot.slane %v847, %v2045
        %2048 = vbcast.lane.b32.xlu0 %v2046, 256
        %v2049 = vpop.permute.xlu0 %2048
        %s2051 = sor.u32 256, 8
        %2052 = vbcast.lane.b32.xlu0 %v2046, %s2051
        %v2053 = vpop.permute.xlu0 %2052
        %v2054 = vlaneseq
        %v2055 = vshrl.u32 %v2054, 7
        %v2056 = vsub.s32 4, %v2055
        %v2057 = vrot.slane %v847, %v2056
        %2059 = vbcast.lane.b32.xlu0 %v2057, 256
        %v2060 = vpop.permute.xlu0 %2059
        %s2062 = sor.u32 256, 8
        %2063 = vbcast.lane.b32.xlu0 %v2057, %s2062
        %v2064 = vpop.permute.xlu0 %2063
        %v2065 = vlaneseq
        %v2066 = vshrl.u32 %v2065, 7
        %v2067 = vsub.s32 5, %v2066
        %v2068 = vrot.slane %v847, %v2067
        %2070 = vbcast.lane.b32.xlu0 %v2068, 256
        %v2071 = vpop.permute.xlu0 %2070
        %s2073 = sor.u32 256, 8
        %2074 = vbcast.lane.b32.xlu0 %v2068, %s2073
        %v2075 = vpop.permute.xlu0 %2074
        %v2076 = vlaneseq
        %v2077 = vshrl.u32 %v2076, 7
        %v2078 = vsub.s32 6, %v2077
        %v2079 = vrot.slane %v847, %v2078
        %2081 = vbcast.lane.b32.xlu0 %v2079, 256
        %v2082 = vpop.permute.xlu0 %2081
        %s2084 = sor.u32 256, 8
        %2085 = vbcast.lane.b32.xlu0 %v2079, %s2084
        %v2086 = vpop.permute.xlu0 %2085
        %v2087 = vlaneseq
        %v2088 = vshrl.u32 %v2087, 7
        %v2089 = vsub.s32 7, %v2088
        %v2090 = vrot.slane %v847, %v2089
        %2092 = vbcast.lane.b32.xlu0 %v2090, 256
        %v2093 = vpop.permute.xlu0 %2092
        %s2095 = sor.u32 256, 8
        %2096 = vbcast.lane.b32.xlu0 %v2090, %s2095
        %v2097 = vpop.permute.xlu0 %2096
        %v2098 = vlaneseq
        %v2099 = vshrl.u32 %v2098, 7
        %v2100 = vsub.s32 0, %v2099
        %v2101 = vrot.slane %v848, %v2100
        %2103 = vbcast.lane.b32.xlu0 %v2101, 256
        %v2104 = vpop.permute.xlu0 %2103
        %s2106 = sor.u32 256, 8
        %2107 = vbcast.lane.b32.xlu0 %v2101, %s2106
        %v2108 = vpop.permute.xlu0 %2107
        %v2109 = vlaneseq
        %v2110 = vshrl.u32 %v2109, 7
        %v2111 = vsub.s32 1, %v2110
        %v2112 = vrot.slane %v848, %v2111
        %2114 = vbcast.lane.b32.xlu0 %v2112, 256
        %v2115 = vpop.permute.xlu0 %2114
        %s2117 = sor.u32 256, 8
        %2118 = vbcast.lane.b32.xlu0 %v2112, %s2117
        %v2119 = vpop.permute.xlu0 %2118
        %v2120 = vlaneseq
        %v2121 = vshrl.u32 %v2120, 7
        %v2122 = vsub.s32 2, %v2121
        %v2123 = vrot.slane %v848, %v2122
        %2125 = vbcast.lane.b32.xlu0 %v2123, 256
        %v2126 = vpop.permute.xlu0 %2125
        %s2128 = sor.u32 256, 8
        %2129 = vbcast.lane.b32.xlu0 %v2123, %s2128
        %v2130 = vpop.permute.xlu0 %2129
        %v2131 = vlaneseq
        %v2132 = vshrl.u32 %v2131, 7
        %v2133 = vsub.s32 3, %v2132
        %v2134 = vrot.slane %v848, %v2133
        %2136 = vbcast.lane.b32.xlu0 %v2134, 256
        %v2137 = vpop.permute.xlu0 %2136
        %s2139 = sor.u32 256, 8
        %2140 = vbcast.lane.b32.xlu0 %v2134, %s2139
        %v2141 = vpop.permute.xlu0 %2140
        %v2142 = vlaneseq
        %v2143 = vshrl.u32 %v2142, 7
        %v2144 = vsub.s32 4, %v2143
        %v2145 = vrot.slane %v848, %v2144
        %2147 = vbcast.lane.b32.xlu0 %v2145, 256
        %v2148 = vpop.permute.xlu0 %2147
        %s2150 = sor.u32 256, 8
        %2151 = vbcast.lane.b32.xlu0 %v2145, %s2150
        %v2152 = vpop.permute.xlu0 %2151
        %v2153 = vlaneseq
        %v2154 = vshrl.u32 %v2153, 7
        %v2155 = vsub.s32 5, %v2154
        %v2156 = vrot.slane %v848, %v2155
        %2158 = vbcast.lane.b32.xlu0 %v2156, 256
        %v2159 = vpop.permute.xlu0 %2158
        %s2161 = sor.u32 256, 8
        %2162 = vbcast.lane.b32.xlu0 %v2156, %s2161
        %v2163 = vpop.permute.xlu0 %2162
        %v2164 = vlaneseq
        %v2165 = vshrl.u32 %v2164, 7
        %v2166 = vsub.s32 6, %v2165
        %v2167 = vrot.slane %v848, %v2166
        %2169 = vbcast.lane.b32.xlu0 %v2167, 256
        %v2170 = vpop.permute.xlu0 %2169
        %s2172 = sor.u32 256, 8
        %2173 = vbcast.lane.b32.xlu0 %v2167, %s2172
        %v2174 = vpop.permute.xlu0 %2173
        %v2175 = vlaneseq
        %v2176 = vshrl.u32 %v2175, 7
        %v2177 = vsub.s32 7, %v2176
        %v2178 = vrot.slane %v848, %v2177
        %2180 = vbcast.lane.b32.xlu0 %v2178, 256
        %v2181 = vpop.permute.xlu0 %2180
        %s2183 = sor.u32 256, 8
        %2184 = vbcast.lane.b32.xlu0 %v2178, %s2183
        %v2185 = vpop.permute.xlu0 %2184
        %v2186 = vlaneseq
        %v2187 = vshrl.u32 %v2186, 7
        %v2188 = vsub.s32 0, %v2187
        %v2189 = vrot.slane %v849, %v2188
        %2191 = vbcast.lane.b32.xlu0 %v2189, 256
        %v2192 = vpop.permute.xlu0 %2191
        %s2194 = sor.u32 256, 8
        %2195 = vbcast.lane.b32.xlu0 %v2189, %s2194
        %v2196 = vpop.permute.xlu0 %2195
        %v2197 = vlaneseq
        %v2198 = vshrl.u32 %v2197, 7
        %v2199 = vsub.s32 1, %v2198
        %v2200 = vrot.slane %v849, %v2199
        %2202 = vbcast.lane.b32.xlu0 %v2200, 256
        %v2203 = vpop.permute.xlu0 %2202
        %s2205 = sor.u32 256, 8
        %2206 = vbcast.lane.b32.xlu0 %v2200, %s2205
        %v2207 = vpop.permute.xlu0 %2206
        %v2208 = vlaneseq
        %v2209 = vshrl.u32 %v2208, 7
        %v2210 = vsub.s32 2, %v2209
        %v2211 = vrot.slane %v849, %v2210
        %2213 = vbcast.lane.b32.xlu0 %v2211, 256
        %v2214 = vpop.permute.xlu0 %2213
        %s2216 = sor.u32 256, 8
        %2217 = vbcast.lane.b32.xlu0 %v2211, %s2216
        %v2218 = vpop.permute.xlu0 %2217
        %v2219 = vlaneseq
        %v2220 = vshrl.u32 %v2219, 7
        %v2221 = vsub.s32 3, %v2220
        %v2222 = vrot.slane %v849, %v2221
        %2224 = vbcast.lane.b32.xlu0 %v2222, 256
        %v2225 = vpop.permute.xlu0 %2224
        %s2227 = sor.u32 256, 8
        %2228 = vbcast.lane.b32.xlu0 %v2222, %s2227
        %v2229 = vpop.permute.xlu0 %2228
        %v2230 = vlaneseq
        %v2231 = vshrl.u32 %v2230, 7
        %v2232 = vsub.s32 4, %v2231
        %v2233 = vrot.slane %v849, %v2232
        %2235 = vbcast.lane.b32.xlu0 %v2233, 256
        %v2236 = vpop.permute.xlu0 %2235
        %s2238 = sor.u32 256, 8
        %2239 = vbcast.lane.b32.xlu0 %v2233, %s2238
        %v2240 = vpop.permute.xlu0 %2239
        %v2241 = vlaneseq
        %v2242 = vshrl.u32 %v2241, 7
        %v2243 = vsub.s32 5, %v2242
        %v2244 = vrot.slane %v849, %v2243
        %2246 = vbcast.lane.b32.xlu0 %v2244, 256
        %v2247 = vpop.permute.xlu0 %2246
        %s2249 = sor.u32 256, 8
        %2250 = vbcast.lane.b32.xlu0 %v2244, %s2249
        %v2251 = vpop.permute.xlu0 %2250
        %v2252 = vlaneseq
        %v2253 = vshrl.u32 %v2252, 7
        %v2254 = vsub.s32 6, %v2253
        %v2255 = vrot.slane %v849, %v2254
        %2257 = vbcast.lane.b32.xlu0 %v2255, 256
        %v2258 = vpop.permute.xlu0 %2257
        %s2260 = sor.u32 256, 8
        %2261 = vbcast.lane.b32.xlu0 %v2255, %s2260
        %v2262 = vpop.permute.xlu0 %2261
        %v2263 = vlaneseq
        %v2264 = vshrl.u32 %v2263, 7
        %v2265 = vsub.s32 7, %v2264
        %v2266 = vrot.slane %v849, %v2265
        %2268 = vbcast.lane.b32.xlu0 %v2266, 256
        %v2269 = vpop.permute.xlu0 %2268
        %s2271 = sor.u32 256, 8
        %2272 = vbcast.lane.b32.xlu0 %v2266, %s2271
        %v2273 = vpop.permute.xlu0 %2272
        %v2274 = vlaneseq
        %v2275 = vshrl.u32 %v2274, 7
        %v2276 = vsub.s32 0, %v2275
        %v2277 = vrot.slane %v850, %v2276
        %2279 = vbcast.lane.b32.xlu0 %v2277, 256
        %v2280 = vpop.permute.xlu0 %2279
        %s2282 = sor.u32 256, 8
        %2283 = vbcast.lane.b32.xlu0 %v2277, %s2282
        %v2284 = vpop.permute.xlu0 %2283
        %v2285 = vlaneseq
        %v2286 = vshrl.u32 %v2285, 7
        %v2287 = vsub.s32 1, %v2286
        %v2288 = vrot.slane %v850, %v2287
        %2290 = vbcast.lane.b32.xlu0 %v2288, 256
        %v2291 = vpop.permute.xlu0 %2290
        %s2293 = sor.u32 256, 8
        %2294 = vbcast.lane.b32.xlu0 %v2288, %s2293
        %v2295 = vpop.permute.xlu0 %2294
        %v2296 = vlaneseq
        %v2297 = vshrl.u32 %v2296, 7
        %v2298 = vsub.s32 2, %v2297
        %v2299 = vrot.slane %v850, %v2298
        %2301 = vbcast.lane.b32.xlu0 %v2299, 256
        %v2302 = vpop.permute.xlu0 %2301
        %s2304 = sor.u32 256, 8
        %2305 = vbcast.lane.b32.xlu0 %v2299, %s2304
        %v2306 = vpop.permute.xlu0 %2305
        %v2307 = vlaneseq
        %v2308 = vshrl.u32 %v2307, 7
        %v2309 = vsub.s32 3, %v2308
        %v2310 = vrot.slane %v850, %v2309
        %2312 = vbcast.lane.b32.xlu0 %v2310, 256
        %v2313 = vpop.permute.xlu0 %2312
        %s2315 = sor.u32 256, 8
        %2316 = vbcast.lane.b32.xlu0 %v2310, %s2315
        %v2317 = vpop.permute.xlu0 %2316
        %v2318 = vlaneseq
        %v2319 = vshrl.u32 %v2318, 7
        %v2320 = vsub.s32 4, %v2319
        %v2321 = vrot.slane %v850, %v2320
        %2323 = vbcast.lane.b32.xlu0 %v2321, 256
        %v2324 = vpop.permute.xlu0 %2323
        %s2326 = sor.u32 256, 8
        %2327 = vbcast.lane.b32.xlu0 %v2321, %s2326
        %v2328 = vpop.permute.xlu0 %2327
        %v2329 = vlaneseq
        %v2330 = vshrl.u32 %v2329, 7
        %v2331 = vsub.s32 5, %v2330
        %v2332 = vrot.slane %v850, %v2331
        %2334 = vbcast.lane.b32.xlu0 %v2332, 256
        %v2335 = vpop.permute.xlu0 %2334
        %s2337 = sor.u32 256, 8
        %2338 = vbcast.lane.b32.xlu0 %v2332, %s2337
        %v2339 = vpop.permute.xlu0 %2338
        %v2340 = vlaneseq
        %v2341 = vshrl.u32 %v2340, 7
        %v2342 = vsub.s32 6, %v2341
        %v2343 = vrot.slane %v850, %v2342
        %2345 = vbcast.lane.b32.xlu0 %v2343, 256
        %v2346 = vpop.permute.xlu0 %2345
        %s2348 = sor.u32 256, 8
        %2349 = vbcast.lane.b32.xlu0 %v2343, %s2348
        %v2350 = vpop.permute.xlu0 %2349
        %v2351 = vlaneseq
        %v2352 = vshrl.u32 %v2351, 7
        %v2353 = vsub.s32 7, %v2352
        %v2354 = vrot.slane %v850, %v2353
        %2356 = vbcast.lane.b32.xlu0 %v2354, 256
        %v2357 = vpop.permute.xlu0 %2356
        %s2359 = sor.u32 256, 8
        %2360 = vbcast.lane.b32.xlu0 %v2354, %s2359
        %v2361 = vpop.permute.xlu0 %2360
        %v2362 = vlaneseq
        %v2363 = vshrl.u32 %v2362, 7
        %v2364 = vsub.s32 0, %v2363
        %v2365 = vrot.slane %v851, %v2364
        %2367 = vbcast.lane.b32.xlu0 %v2365, 256
        %v2368 = vpop.permute.xlu0 %2367
        %s2370 = sor.u32 256, 8
        %2371 = vbcast.lane.b32.xlu0 %v2365, %s2370
        %v2372 = vpop.permute.xlu0 %2371
        %v2373 = vlaneseq
        %v2374 = vshrl.u32 %v2373, 7
        %v2375 = vsub.s32 1, %v2374
        %v2376 = vrot.slane %v851, %v2375
        %2378 = vbcast.lane.b32.xlu0 %v2376, 256
        %v2379 = vpop.permute.xlu0 %2378
        %s2381 = sor.u32 256, 8
        %2382 = vbcast.lane.b32.xlu0 %v2376, %s2381
        %v2383 = vpop.permute.xlu0 %2382
        %v2384 = vlaneseq
        %v2385 = vshrl.u32 %v2384, 7
        %v2386 = vsub.s32 2, %v2385
        %v2387 = vrot.slane %v851, %v2386
        %2389 = vbcast.lane.b32.xlu0 %v2387, 256
        %v2390 = vpop.permute.xlu0 %2389
        %s2392 = sor.u32 256, 8
        %2393 = vbcast.lane.b32.xlu0 %v2387, %s2392
        %v2394 = vpop.permute.xlu0 %2393
        %v2395 = vlaneseq
        %v2396 = vshrl.u32 %v2395, 7
        %v2397 = vsub.s32 3, %v2396
        %v2398 = vrot.slane %v851, %v2397
        %2400 = vbcast.lane.b32.xlu0 %v2398, 256
        %v2401 = vpop.permute.xlu0 %2400
        %s2403 = sor.u32 256, 8
        %2404 = vbcast.lane.b32.xlu0 %v2398, %s2403
        %v2405 = vpop.permute.xlu0 %2404
        %v2406 = vlaneseq
        %v2407 = vshrl.u32 %v2406, 7
        %v2408 = vsub.s32 4, %v2407
        %v2409 = vrot.slane %v851, %v2408
        %2411 = vbcast.lane.b32.xlu0 %v2409, 256
        %v2412 = vpop.permute.xlu0 %2411
        %s2414 = sor.u32 256, 8
        %2415 = vbcast.lane.b32.xlu0 %v2409, %s2414
        %v2416 = vpop.permute.xlu0 %2415
        %v2417 = vlaneseq
        %v2418 = vshrl.u32 %v2417, 7
        %v2419 = vsub.s32 5, %v2418
        %v2420 = vrot.slane %v851, %v2419
        %2422 = vbcast.lane.b32.xlu0 %v2420, 256
        %v2423 = vpop.permute.xlu0 %2422
        %s2425 = sor.u32 256, 8
        %2426 = vbcast.lane.b32.xlu0 %v2420, %s2425
        %v2427 = vpop.permute.xlu0 %2426
        %v2428 = vlaneseq
        %v2429 = vshrl.u32 %v2428, 7
        %v2430 = vsub.s32 6, %v2429
        %v2431 = vrot.slane %v851, %v2430
        %2433 = vbcast.lane.b32.xlu0 %v2431, 256
        %v2434 = vpop.permute.xlu0 %2433
        %s2436 = sor.u32 256, 8
        %2437 = vbcast.lane.b32.xlu0 %v2431, %s2436
        %v2438 = vpop.permute.xlu0 %2437
        %v2439 = vlaneseq
        %v2440 = vshrl.u32 %v2439, 7
        %v2441 = vsub.s32 7, %v2440
        %v2442 = vrot.slane %v851, %v2441
        %2444 = vbcast.lane.b32.xlu0 %v2442, 256
        %v2445 = vpop.permute.xlu0 %2444
        %s2447 = sor.u32 256, 8
        %2448 = vbcast.lane.b32.xlu0 %v2442, %s2447
        %v2449 = vpop.permute.xlu0 %2448
        %v2450 = vlaneseq
        %v2451 = vshrl.u32 %v2450, 7
        %v2452 = vsub.s32 0, %v2451
        %v2453 = vrot.slane %v852, %v2452
        %2455 = vbcast.lane.b32.xlu0 %v2453, 256
        %v2456 = vpop.permute.xlu0 %2455
        %s2458 = sor.u32 256, 8
        %2459 = vbcast.lane.b32.xlu0 %v2453, %s2458
        %v2460 = vpop.permute.xlu0 %2459
        %v2461 = vlaneseq
        %v2462 = vshrl.u32 %v2461, 7
        %v2463 = vsub.s32 1, %v2462
        %v2464 = vrot.slane %v852, %v2463
        %2466 = vbcast.lane.b32.xlu0 %v2464, 256
        %v2467 = vpop.permute.xlu0 %2466
        %s2469 = sor.u32 256, 8
        %2470 = vbcast.lane.b32.xlu0 %v2464, %s2469
        %v2471 = vpop.permute.xlu0 %2470
        %v2472 = vlaneseq
        %v2473 = vshrl.u32 %v2472, 7
        %v2474 = vsub.s32 2, %v2473
        %v2475 = vrot.slane %v852, %v2474
        %2477 = vbcast.lane.b32.xlu0 %v2475, 256
        %v2478 = vpop.permute.xlu0 %2477
        %s2480 = sor.u32 256, 8
        %2481 = vbcast.lane.b32.xlu0 %v2475, %s2480
        %v2482 = vpop.permute.xlu0 %2481
        %v2483 = vlaneseq
        %v2484 = vshrl.u32 %v2483, 7
        %v2485 = vsub.s32 3, %v2484
        %v2486 = vrot.slane %v852, %v2485
        %2488 = vbcast.lane.b32.xlu0 %v2486, 256
        %v2489 = vpop.permute.xlu0 %2488
        %s2491 = sor.u32 256, 8
        %2492 = vbcast.lane.b32.xlu0 %v2486, %s2491
        %v2493 = vpop.permute.xlu0 %2492
        %v2494 = vlaneseq
        %v2495 = vshrl.u32 %v2494, 7
        %v2496 = vsub.s32 4, %v2495
        %v2497 = vrot.slane %v852, %v2496
        %2499 = vbcast.lane.b32.xlu0 %v2497, 256
        %v2500 = vpop.permute.xlu0 %2499
        %s2502 = sor.u32 256, 8
        %2503 = vbcast.lane.b32.xlu0 %v2497, %s2502
        %v2504 = vpop.permute.xlu0 %2503
        %v2505 = vlaneseq
        %v2506 = vshrl.u32 %v2505, 7
        %v2507 = vsub.s32 5, %v2506
        %v2508 = vrot.slane %v852, %v2507
        %2510 = vbcast.lane.b32.xlu0 %v2508, 256
        %v2511 = vpop.permute.xlu0 %2510
        %s2513 = sor.u32 256, 8
        %2514 = vbcast.lane.b32.xlu0 %v2508, %s2513
        %v2515 = vpop.permute.xlu0 %2514
        %v2516 = vlaneseq
        %v2517 = vshrl.u32 %v2516, 7
        %v2518 = vsub.s32 6, %v2517
        %v2519 = vrot.slane %v852, %v2518
        %2521 = vbcast.lane.b32.xlu0 %v2519, 256
        %v2522 = vpop.permute.xlu0 %2521
        %s2524 = sor.u32 256, 8
        %2525 = vbcast.lane.b32.xlu0 %v2519, %s2524
        %v2526 = vpop.permute.xlu0 %2525
        %v2527 = vlaneseq
        %v2528 = vshrl.u32 %v2527, 7
        %v2529 = vsub.s32 7, %v2528
        %v2530 = vrot.slane %v852, %v2529
        %2532 = vbcast.lane.b32.xlu0 %v2530, 256
        %v2533 = vpop.permute.xlu0 %2532
        %s2535 = sor.u32 256, 8
        %2536 = vbcast.lane.b32.xlu0 %v2530, %s2535
        %v2537 = vpop.permute.xlu0 %2536
        %v2538 = vlaneseq
        %v2539 = vshrl.u32 %v2538, 7
        %v2540 = vsub.s32 0, %v2539
        %v2541 = vrot.slane %v853, %v2540
        %2543 = vbcast.lane.b32.xlu0 %v2541, 256
        %v2544 = vpop.permute.xlu0 %2543
        %s2546 = sor.u32 256, 8
        %2547 = vbcast.lane.b32.xlu0 %v2541, %s2546
        %v2548 = vpop.permute.xlu0 %2547
        %v2549 = vlaneseq
        %v2550 = vshrl.u32 %v2549, 7
        %v2551 = vsub.s32 1, %v2550
        %v2552 = vrot.slane %v853, %v2551
        %2554 = vbcast.lane.b32.xlu0 %v2552, 256
        %v2555 = vpop.permute.xlu0 %2554
        %s2557 = sor.u32 256, 8
        %2558 = vbcast.lane.b32.xlu0 %v2552, %s2557
        %v2559 = vpop.permute.xlu0 %2558
        %v2560 = vlaneseq
        %v2561 = vshrl.u32 %v2560, 7
        %v2562 = vsub.s32 2, %v2561
        %v2563 = vrot.slane %v853, %v2562
        %2565 = vbcast.lane.b32.xlu0 %v2563, 256
        %v2566 = vpop.permute.xlu0 %2565
        %s2568 = sor.u32 256, 8
        %2569 = vbcast.lane.b32.xlu0 %v2563, %s2568
        %v2570 = vpop.permute.xlu0 %2569
        %v2571 = vlaneseq
        %v2572 = vshrl.u32 %v2571, 7
        %v2573 = vsub.s32 3, %v2572
        %v2574 = vrot.slane %v853, %v2573
        %2576 = vbcast.lane.b32.xlu0 %v2574, 256
        %v2577 = vpop.permute.xlu0 %2576
        %s2579 = sor.u32 256, 8
        %2580 = vbcast.lane.b32.xlu0 %v2574, %s2579
        %v2581 = vpop.permute.xlu0 %2580
        %v2582 = vlaneseq
        %v2583 = vshrl.u32 %v2582, 7
        %v2584 = vsub.s32 4, %v2583
        %v2585 = vrot.slane %v853, %v2584
        %2587 = vbcast.lane.b32.xlu0 %v2585, 256
        %v2588 = vpop.permute.xlu0 %2587
        %s2590 = sor.u32 256, 8
        %2591 = vbcast.lane.b32.xlu0 %v2585, %s2590
        %v2592 = vpop.permute.xlu0 %2591
        %v2593 = vlaneseq
        %v2594 = vshrl.u32 %v2593, 7
        %v2595 = vsub.s32 5, %v2594
        %v2596 = vrot.slane %v853, %v2595
        %2598 = vbcast.lane.b32.xlu0 %v2596, 256
        %v2599 = vpop.permute.xlu0 %2598
        %s2601 = sor.u32 256, 8
        %2602 = vbcast.lane.b32.xlu0 %v2596, %s2601
        %v2603 = vpop.permute.xlu0 %2602
        %v2604 = vlaneseq
        %v2605 = vshrl.u32 %v2604, 7
        %v2606 = vsub.s32 6, %v2605
        %v2607 = vrot.slane %v853, %v2606
        %2609 = vbcast.lane.b32.xlu0 %v2607, 256
        %v2610 = vpop.permute.xlu0 %2609
        %s2612 = sor.u32 256, 8
        %2613 = vbcast.lane.b32.xlu0 %v2607, %s2612
        %v2614 = vpop.permute.xlu0 %2613
        %v2615 = vlaneseq
        %v2616 = vshrl.u32 %v2615, 7
        %v2617 = vsub.s32 7, %v2616
        %v2618 = vrot.slane %v853, %v2617
        %2620 = vbcast.lane.b32.xlu0 %v2618, 256
        %v2621 = vpop.permute.xlu0 %2620
        %s2623 = sor.u32 256, 8
        %2624 = vbcast.lane.b32.xlu0 %v2618, %s2623
        %v2625 = vpop.permute.xlu0 %2624
        %v2626 = vlaneseq
        %v2627 = vshrl.u32 %v2626, 7
        %v2628 = vsub.s32 0, %v2627
        %v2629 = vrot.slane %v854, %v2628
        %2631 = vbcast.lane.b32.xlu0 %v2629, 256
        %v2632 = vpop.permute.xlu0 %2631
        %s2634 = sor.u32 256, 8
        %2635 = vbcast.lane.b32.xlu0 %v2629, %s2634
        %v2636 = vpop.permute.xlu0 %2635
        %v2637 = vlaneseq
        %v2638 = vshrl.u32 %v2637, 7
        %v2639 = vsub.s32 1, %v2638
        %v2640 = vrot.slane %v854, %v2639
        %2642 = vbcast.lane.b32.xlu0 %v2640, 256
        %v2643 = vpop.permute.xlu0 %2642
        %s2645 = sor.u32 256, 8
        %2646 = vbcast.lane.b32.xlu0 %v2640, %s2645
        %v2647 = vpop.permute.xlu0 %2646
        %v2648 = vlaneseq
        %v2649 = vshrl.u32 %v2648, 7
        %v2650 = vsub.s32 2, %v2649
        %v2651 = vrot.slane %v854, %v2650
        %2653 = vbcast.lane.b32.xlu0 %v2651, 256
        %v2654 = vpop.permute.xlu0 %2653
        %s2656 = sor.u32 256, 8
        %2657 = vbcast.lane.b32.xlu0 %v2651, %s2656
        %v2658 = vpop.permute.xlu0 %2657
        %v2659 = vlaneseq
        %v2660 = vshrl.u32 %v2659, 7
        %v2661 = vsub.s32 3, %v2660
        %v2662 = vrot.slane %v854, %v2661
        %2664 = vbcast.lane.b32.xlu0 %v2662, 256
        %v2665 = vpop.permute.xlu0 %2664
        %s2667 = sor.u32 256, 8
        %2668 = vbcast.lane.b32.xlu0 %v2662, %s2667
        %v2669 = vpop.permute.xlu0 %2668
        %v2670 = vlaneseq
        %v2671 = vshrl.u32 %v2670, 7
        %v2672 = vsub.s32 4, %v2671
        %v2673 = vrot.slane %v854, %v2672
        %2675 = vbcast.lane.b32.xlu0 %v2673, 256
        %v2676 = vpop.permute.xlu0 %2675
        %s2678 = sor.u32 256, 8
        %2679 = vbcast.lane.b32.xlu0 %v2673, %s2678
        %v2680 = vpop.permute.xlu0 %2679
        %v2681 = vlaneseq
        %v2682 = vshrl.u32 %v2681, 7
        %v2683 = vsub.s32 5, %v2682
        %v2684 = vrot.slane %v854, %v2683
        %2686 = vbcast.lane.b32.xlu0 %v2684, 256
        %v2687 = vpop.permute.xlu0 %2686
        %s2689 = sor.u32 256, 8
        %2690 = vbcast.lane.b32.xlu0 %v2684, %s2689
        %v2691 = vpop.permute.xlu0 %2690
        %v2692 = vlaneseq
        %v2693 = vshrl.u32 %v2692, 7
        %v2694 = vsub.s32 6, %v2693
        %v2695 = vrot.slane %v854, %v2694
        %2697 = vbcast.lane.b32.xlu0 %v2695, 256
        %v2698 = vpop.permute.xlu0 %2697
        %s2700 = sor.u32 256, 8
        %2701 = vbcast.lane.b32.xlu0 %v2695, %s2700
        %v2702 = vpop.permute.xlu0 %2701
        %v2703 = vlaneseq
        %v2704 = vshrl.u32 %v2703, 7
        %v2705 = vsub.s32 7, %v2704
        %v2706 = vrot.slane %v854, %v2705
        %2708 = vbcast.lane.b32.xlu0 %v2706, 256
        %v2709 = vpop.permute.xlu0 %2708
        %s2711 = sor.u32 256, 8
        %2712 = vbcast.lane.b32.xlu0 %v2706, %s2711
        %v2713 = vpop.permute.xlu0 %2712
        %v2714 = vlaneseq
        %v2715 = vshrl.u32 %v2714, 7
        %v2716 = vsub.s32 0, %v2715
        %v2717 = vrot.slane %v855, %v2716
        %2719 = vbcast.lane.b32.xlu0 %v2717, 256
        %v2720 = vpop.permute.xlu0 %2719
        %s2722 = sor.u32 256, 8
        %2723 = vbcast.lane.b32.xlu0 %v2717, %s2722
        %v2724 = vpop.permute.xlu0 %2723
        %v2725 = vlaneseq
        %v2726 = vshrl.u32 %v2725, 7
        %v2727 = vsub.s32 1, %v2726
        %v2728 = vrot.slane %v855, %v2727
        %2730 = vbcast.lane.b32.xlu0 %v2728, 256
        %v2731 = vpop.permute.xlu0 %2730
        %s2733 = sor.u32 256, 8
        %2734 = vbcast.lane.b32.xlu0 %v2728, %s2733
        %v2735 = vpop.permute.xlu0 %2734
        %v2736 = vlaneseq
        %v2737 = vshrl.u32 %v2736, 7
        %v2738 = vsub.s32 2, %v2737
        %v2739 = vrot.slane %v855, %v2738
        %2741 = vbcast.lane.b32.xlu0 %v2739, 256
        %v2742 = vpop.permute.xlu0 %2741
        %s2744 = sor.u32 256, 8
        %2745 = vbcast.lane.b32.xlu0 %v2739, %s2744
        %v2746 = vpop.permute.xlu0 %2745
        %v2747 = vlaneseq
        %v2748 = vshrl.u32 %v2747, 7
        %v2749 = vsub.s32 3, %v2748
        %v2750 = vrot.slane %v855, %v2749
        %2752 = vbcast.lane.b32.xlu0 %v2750, 256
        %v2753 = vpop.permute.xlu0 %2752
        %s2755 = sor.u32 256, 8
        %2756 = vbcast.lane.b32.xlu0 %v2750, %s2755
        %v2757 = vpop.permute.xlu0 %2756
        %v2758 = vlaneseq
        %v2759 = vshrl.u32 %v2758, 7
        %v2760 = vsub.s32 4, %v2759
        %v2761 = vrot.slane %v855, %v2760
        %2763 = vbcast.lane.b32.xlu0 %v2761, 256
        %v2764 = vpop.permute.xlu0 %2763
        %s2766 = sor.u32 256, 8
        %2767 = vbcast.lane.b32.xlu0 %v2761, %s2766
        %v2768 = vpop.permute.xlu0 %2767
        %v2769 = vlaneseq
        %v2770 = vshrl.u32 %v2769, 7
        %v2771 = vsub.s32 5, %v2770
        %v2772 = vrot.slane %v855, %v2771
        %2774 = vbcast.lane.b32.xlu0 %v2772, 256
        %v2775 = vpop.permute.xlu0 %2774
        %s2777 = sor.u32 256, 8
        %2778 = vbcast.lane.b32.xlu0 %v2772, %s2777
        %v2779 = vpop.permute.xlu0 %2778
        %v2780 = vlaneseq
        %v2781 = vshrl.u32 %v2780, 7
        %v2782 = vsub.s32 6, %v2781
        %v2783 = vrot.slane %v855, %v2782
        %2785 = vbcast.lane.b32.xlu0 %v2783, 256
        %v2786 = vpop.permute.xlu0 %2785
        %s2788 = sor.u32 256, 8
        %2789 = vbcast.lane.b32.xlu0 %v2783, %s2788
        %v2790 = vpop.permute.xlu0 %2789
        %v2791 = vlaneseq
        %v2792 = vshrl.u32 %v2791, 7
        %v2793 = vsub.s32 7, %v2792
        %v2794 = vrot.slane %v855, %v2793
        %2796 = vbcast.lane.b32.xlu0 %v2794, 256
        %v2797 = vpop.permute.xlu0 %2796
        %s2799 = sor.u32 256, 8
        %2800 = vbcast.lane.b32.xlu0 %v2794, %s2799
        %v2801 = vpop.permute.xlu0 %2800
        %v2802 = vlaneseq
        %v2803 = vshrl.u32 %v2802, 7
        %v2804 = vsub.s32 0, %v2803
        %v2805 = vrot.slane %v856, %v2804
        %2807 = vbcast.lane.b32.xlu0 %v2805, 256
        %v2808 = vpop.permute.xlu0 %2807
        %s2810 = sor.u32 256, 8
        %2811 = vbcast.lane.b32.xlu0 %v2805, %s2810
        %v2812 = vpop.permute.xlu0 %2811
        %v2813 = vlaneseq
        %v2814 = vshrl.u32 %v2813, 7
        %v2815 = vsub.s32 1, %v2814
        %v2816 = vrot.slane %v856, %v2815
        %2818 = vbcast.lane.b32.xlu0 %v2816, 256
        %v2819 = vpop.permute.xlu0 %2818
        %s2821 = sor.u32 256, 8
        %2822 = vbcast.lane.b32.xlu0 %v2816, %s2821
        %v2823 = vpop.permute.xlu0 %2822
        %v2824 = vlaneseq
        %v2825 = vshrl.u32 %v2824, 7
        %v2826 = vsub.s32 2, %v2825
        %v2827 = vrot.slane %v856, %v2826
        %2829 = vbcast.lane.b32.xlu0 %v2827, 256
        %v2830 = vpop.permute.xlu0 %2829
        %s2832 = sor.u32 256, 8
        %2833 = vbcast.lane.b32.xlu0 %v2827, %s2832
        %v2834 = vpop.permute.xlu0 %2833
        %v2835 = vlaneseq
        %v2836 = vshrl.u32 %v2835, 7
        %v2837 = vsub.s32 3, %v2836
        %v2838 = vrot.slane %v856, %v2837
        %2840 = vbcast.lane.b32.xlu0 %v2838, 256
        %v2841 = vpop.permute.xlu0 %2840
        %s2843 = sor.u32 256, 8
        %2844 = vbcast.lane.b32.xlu0 %v2838, %s2843
        %v2845 = vpop.permute.xlu0 %2844
        %v2846 = vlaneseq
        %v2847 = vshrl.u32 %v2846, 7
        %v2848 = vsub.s32 4, %v2847
        %v2849 = vrot.slane %v856, %v2848
        %2851 = vbcast.lane.b32.xlu0 %v2849, 256
        %v2852 = vpop.permute.xlu0 %2851
        %s2854 = sor.u32 256, 8
        %2855 = vbcast.lane.b32.xlu0 %v2849, %s2854
        %v2856 = vpop.permute.xlu0 %2855
        %v2857 = vlaneseq
        %v2858 = vshrl.u32 %v2857, 7
        %v2859 = vsub.s32 5, %v2858
        %v2860 = vrot.slane %v856, %v2859
        %2862 = vbcast.lane.b32.xlu0 %v2860, 256
        %v2863 = vpop.permute.xlu0 %2862
        %s2865 = sor.u32 256, 8
        %2866 = vbcast.lane.b32.xlu0 %v2860, %s2865
        %v2867 = vpop.permute.xlu0 %2866
        %v2868 = vlaneseq
        %v2869 = vshrl.u32 %v2868, 7
        %v2870 = vsub.s32 6, %v2869
        %v2871 = vrot.slane %v856, %v2870
        %2873 = vbcast.lane.b32.xlu0 %v2871, 256
        %v2874 = vpop.permute.xlu0 %2873
        %s2876 = sor.u32 256, 8
        %2877 = vbcast.lane.b32.xlu0 %v2871, %s2876
        %v2878 = vpop.permute.xlu0 %2877
        %v2879 = vlaneseq
        %v2880 = vshrl.u32 %v2879, 7
        %v2881 = vsub.s32 7, %v2880
        %v2882 = vrot.slane %v856, %v2881
        %2884 = vbcast.lane.b32.xlu0 %v2882, 256
        %v2885 = vpop.permute.xlu0 %2884
        %s2887 = sor.u32 256, 8
        %2888 = vbcast.lane.b32.xlu0 %v2882, %s2887
        %v2889 = vpop.permute.xlu0 %2888
        %v2890 = vlaneseq
        %v2891 = vshrl.u32 %v2890, 7
        %v2892 = vsub.s32 0, %v2891
        %v2893 = vrot.slane %v857, %v2892
        %2895 = vbcast.lane.b32.xlu0 %v2893, 256
        %v2896 = vpop.permute.xlu0 %2895
        %s2898 = sor.u32 256, 8
        %2899 = vbcast.lane.b32.xlu0 %v2893, %s2898
        %v2900 = vpop.permute.xlu0 %2899
        %v2901 = vlaneseq
        %v2902 = vshrl.u32 %v2901, 7
        %v2903 = vsub.s32 1, %v2902
        %v2904 = vrot.slane %v857, %v2903
        %2906 = vbcast.lane.b32.xlu0 %v2904, 256
        %v2907 = vpop.permute.xlu0 %2906
        %s2909 = sor.u32 256, 8
        %2910 = vbcast.lane.b32.xlu0 %v2904, %s2909
        %v2911 = vpop.permute.xlu0 %2910
        %v2912 = vlaneseq
        %v2913 = vshrl.u32 %v2912, 7
        %v2914 = vsub.s32 2, %v2913
        %v2915 = vrot.slane %v857, %v2914
        %2917 = vbcast.lane.b32.xlu0 %v2915, 256
        %v2918 = vpop.permute.xlu0 %2917
        %s2920 = sor.u32 256, 8
        %2921 = vbcast.lane.b32.xlu0 %v2915, %s2920
        %v2922 = vpop.permute.xlu0 %2921
        %v2923 = vlaneseq
        %v2924 = vshrl.u32 %v2923, 7
        %v2925 = vsub.s32 3, %v2924
        %v2926 = vrot.slane %v857, %v2925
        %2928 = vbcast.lane.b32.xlu0 %v2926, 256
        %v2929 = vpop.permute.xlu0 %2928
        %s2931 = sor.u32 256, 8
        %2932 = vbcast.lane.b32.xlu0 %v2926, %s2931
        %v2933 = vpop.permute.xlu0 %2932
        %v2934 = vlaneseq
        %v2935 = vshrl.u32 %v2934, 7
        %v2936 = vsub.s32 4, %v2935
        %v2937 = vrot.slane %v857, %v2936
        %2939 = vbcast.lane.b32.xlu0 %v2937, 256
        %v2940 = vpop.permute.xlu0 %2939
        %s2942 = sor.u32 256, 8
        %2943 = vbcast.lane.b32.xlu0 %v2937, %s2942
        %v2944 = vpop.permute.xlu0 %2943
        %v2945 = vlaneseq
        %v2946 = vshrl.u32 %v2945, 7
        %v2947 = vsub.s32 5, %v2946
        %v2948 = vrot.slane %v857, %v2947
        %2950 = vbcast.lane.b32.xlu0 %v2948, 256
        %v2951 = vpop.permute.xlu0 %2950
        %s2953 = sor.u32 256, 8
        %2954 = vbcast.lane.b32.xlu0 %v2948, %s2953
        %v2955 = vpop.permute.xlu0 %2954
        %v2956 = vlaneseq
        %v2957 = vshrl.u32 %v2956, 7
        %v2958 = vsub.s32 6, %v2957
        %v2959 = vrot.slane %v857, %v2958
        %2961 = vbcast.lane.b32.xlu0 %v2959, 256
        %v2962 = vpop.permute.xlu0 %2961
        %s2964 = sor.u32 256, 8
        %2965 = vbcast.lane.b32.xlu0 %v2959, %s2964
        %v2966 = vpop.permute.xlu0 %2965
        %v2967 = vlaneseq
        %v2968 = vshrl.u32 %v2967, 7
        %v2969 = vsub.s32 7, %v2968
        %v2970 = vrot.slane %v857, %v2969
        %2972 = vbcast.lane.b32.xlu0 %v2970, 256
        %v2973 = vpop.permute.xlu0 %2972
        %s2975 = sor.u32 256, 8
        %2976 = vbcast.lane.b32.xlu0 %v2970, %s2975
        %v2977 = vpop.permute.xlu0 %2976
        %v2978 = vlaneseq
        %v2979 = vshrl.u32 %v2978, 7
        %v2980 = vsub.s32 0, %v2979
        %v2981 = vrot.slane %v858, %v2980
        %2983 = vbcast.lane.b32.xlu0 %v2981, 256
        %v2984 = vpop.permute.xlu0 %2983
        %s2986 = sor.u32 256, 8
        %2987 = vbcast.lane.b32.xlu0 %v2981, %s2986
        %v2988 = vpop.permute.xlu0 %2987
        %v2989 = vlaneseq
        %v2990 = vshrl.u32 %v2989, 7
        %v2991 = vsub.s32 1, %v2990
        %v2992 = vrot.slane %v858, %v2991
        %2994 = vbcast.lane.b32.xlu0 %v2992, 256
        %v2995 = vpop.permute.xlu0 %2994
        %s2997 = sor.u32 256, 8
        %2998 = vbcast.lane.b32.xlu0 %v2992, %s2997
        %v2999 = vpop.permute.xlu0 %2998
        %v3000 = vlaneseq
        %v3001 = vshrl.u32 %v3000, 7
        %v3002 = vsub.s32 2, %v3001
        %v3003 = vrot.slane %v858, %v3002
        %3005 = vbcast.lane.b32.xlu0 %v3003, 256
        %v3006 = vpop.permute.xlu0 %3005
        %s3008 = sor.u32 256, 8
        %3009 = vbcast.lane.b32.xlu0 %v3003, %s3008
        %v3010 = vpop.permute.xlu0 %3009
        %v3011 = vlaneseq
        %v3012 = vshrl.u32 %v3011, 7
        %v3013 = vsub.s32 3, %v3012
        %v3014 = vrot.slane %v858, %v3013
        %3016 = vbcast.lane.b32.xlu0 %v3014, 256
        %v3017 = vpop.permute.xlu0 %3016
        %s3019 = sor.u32 256, 8
        %3020 = vbcast.lane.b32.xlu0 %v3014, %s3019
        %v3021 = vpop.permute.xlu0 %3020
        %v3022 = vlaneseq
        %v3023 = vshrl.u32 %v3022, 7
        %v3024 = vsub.s32 4, %v3023
        %v3025 = vrot.slane %v858, %v3024
        %3027 = vbcast.lane.b32.xlu0 %v3025, 256
        %v3028 = vpop.permute.xlu0 %3027
        %s3030 = sor.u32 256, 8
        %3031 = vbcast.lane.b32.xlu0 %v3025, %s3030
        %v3032 = vpop.permute.xlu0 %3031
        %v3033 = vlaneseq
        %v3034 = vshrl.u32 %v3033, 7
        %v3035 = vsub.s32 5, %v3034
        %v3036 = vrot.slane %v858, %v3035
        %3038 = vbcast.lane.b32.xlu0 %v3036, 256
        %v3039 = vpop.permute.xlu0 %3038
        %s3041 = sor.u32 256, 8
        %3042 = vbcast.lane.b32.xlu0 %v3036, %s3041
        %v3043 = vpop.permute.xlu0 %3042
        %v3044 = vlaneseq
        %v3045 = vshrl.u32 %v3044, 7
        %v3046 = vsub.s32 6, %v3045
        %v3047 = vrot.slane %v858, %v3046
        %3049 = vbcast.lane.b32.xlu0 %v3047, 256
        %v3050 = vpop.permute.xlu0 %3049
        %s3052 = sor.u32 256, 8
        %3053 = vbcast.lane.b32.xlu0 %v3047, %s3052
        %v3054 = vpop.permute.xlu0 %3053
        %v3055 = vlaneseq
        %v3056 = vshrl.u32 %v3055, 7
        %v3057 = vsub.s32 7, %v3056
        %v3058 = vrot.slane %v858, %v3057
        %3060 = vbcast.lane.b32.xlu0 %v3058, 256
        %v3061 = vpop.permute.xlu0 %3060
        %s3063 = sor.u32 256, 8
        %3064 = vbcast.lane.b32.xlu0 %v3058, %s3063
        %v3065 = vpop.permute.xlu0 %3064
        %v3066 = vlaneseq
        %v3067 = vshrl.u32 %v3066, 7
        %v3068 = vsub.s32 0, %v3067
        %v3069 = vrot.slane %v859, %v3068
        %3071 = vbcast.lane.b32.xlu0 %v3069, 256
        %v3072 = vpop.permute.xlu0 %3071
        %s3074 = sor.u32 256, 8
        %3075 = vbcast.lane.b32.xlu0 %v3069, %s3074
        %v3076 = vpop.permute.xlu0 %3075
        %v3077 = vlaneseq
        %v3078 = vshrl.u32 %v3077, 7
        %v3079 = vsub.s32 1, %v3078
        %v3080 = vrot.slane %v859, %v3079
        %3082 = vbcast.lane.b32.xlu0 %v3080, 256
        %v3083 = vpop.permute.xlu0 %3082
        %s3085 = sor.u32 256, 8
        %3086 = vbcast.lane.b32.xlu0 %v3080, %s3085
        %v3087 = vpop.permute.xlu0 %3086
        %v3088 = vlaneseq
        %v3089 = vshrl.u32 %v3088, 7
        %v3090 = vsub.s32 2, %v3089
        %v3091 = vrot.slane %v859, %v3090
        %3093 = vbcast.lane.b32.xlu0 %v3091, 256
        %v3094 = vpop.permute.xlu0 %3093
        %s3096 = sor.u32 256, 8
        %3097 = vbcast.lane.b32.xlu0 %v3091, %s3096
        %v3098 = vpop.permute.xlu0 %3097
        %v3099 = vlaneseq
        %v3100 = vshrl.u32 %v3099, 7
        %v3101 = vsub.s32 3, %v3100
        %v3102 = vrot.slane %v859, %v3101
        %3104 = vbcast.lane.b32.xlu0 %v3102, 256
        %v3105 = vpop.permute.xlu0 %3104
        %s3107 = sor.u32 256, 8
        %3108 = vbcast.lane.b32.xlu0 %v3102, %s3107
        %v3109 = vpop.permute.xlu0 %3108
        %v3110 = vlaneseq
        %v3111 = vshrl.u32 %v3110, 7
        %v3112 = vsub.s32 4, %v3111
        %v3113 = vrot.slane %v859, %v3112
        %3115 = vbcast.lane.b32.xlu0 %v3113, 256
        %v3116 = vpop.permute.xlu0 %3115
        %s3118 = sor.u32 256, 8
        %3119 = vbcast.lane.b32.xlu0 %v3113, %s3118
        %v3120 = vpop.permute.xlu0 %3119
        %v3121 = vlaneseq
        %v3122 = vshrl.u32 %v3121, 7
        %v3123 = vsub.s32 5, %v3122
        %v3124 = vrot.slane %v859, %v3123
        %3126 = vbcast.lane.b32.xlu0 %v3124, 256
        %v3127 = vpop.permute.xlu0 %3126
        %s3129 = sor.u32 256, 8
        %3130 = vbcast.lane.b32.xlu0 %v3124, %s3129
        %v3131 = vpop.permute.xlu0 %3130
        %v3132 = vlaneseq
        %v3133 = vshrl.u32 %v3132, 7
        %v3134 = vsub.s32 6, %v3133
        %v3135 = vrot.slane %v859, %v3134
        %3137 = vbcast.lane.b32.xlu0 %v3135, 256
        %v3138 = vpop.permute.xlu0 %3137
        %s3140 = sor.u32 256, 8
        %3141 = vbcast.lane.b32.xlu0 %v3135, %s3140
        %v3142 = vpop.permute.xlu0 %3141
        %v3143 = vlaneseq
        %v3144 = vshrl.u32 %v3143, 7
        %v3145 = vsub.s32 7, %v3144
        %v3146 = vrot.slane %v859, %v3145
        %3148 = vbcast.lane.b32.xlu0 %v3146, 256
        %v3149 = vpop.permute.xlu0 %3148
        %s3151 = sor.u32 256, 8
        %3152 = vbcast.lane.b32.xlu0 %v3146, %s3151
        %v3153 = vpop.permute.xlu0 %3152
        %v3154 = vlaneseq
        %v3155 = vshrl.u32 %v3154, 7
        %v3156 = vsub.s32 0, %v3155
        %v3157 = vrot.slane %v860, %v3156
        %3159 = vbcast.lane.b32.xlu0 %v3157, 256
        %v3160 = vpop.permute.xlu0 %3159
        %s3162 = sor.u32 256, 8
        %3163 = vbcast.lane.b32.xlu0 %v3157, %s3162
        %v3164 = vpop.permute.xlu0 %3163
        %v3165 = vlaneseq
        %v3166 = vshrl.u32 %v3165, 7
        %v3167 = vsub.s32 1, %v3166
        %v3168 = vrot.slane %v860, %v3167
        %3170 = vbcast.lane.b32.xlu0 %v3168, 256
        %v3171 = vpop.permute.xlu0 %3170
        %s3173 = sor.u32 256, 8
        %3174 = vbcast.lane.b32.xlu0 %v3168, %s3173
        %v3175 = vpop.permute.xlu0 %3174
        %v3176 = vlaneseq
        %v3177 = vshrl.u32 %v3176, 7
        %v3178 = vsub.s32 2, %v3177
        %v3179 = vrot.slane %v860, %v3178
        %3181 = vbcast.lane.b32.xlu0 %v3179, 256
        %v3182 = vpop.permute.xlu0 %3181
        %s3184 = sor.u32 256, 8
        %3185 = vbcast.lane.b32.xlu0 %v3179, %s3184
        %v3186 = vpop.permute.xlu0 %3185
        %v3187 = vlaneseq
        %v3188 = vshrl.u32 %v3187, 7
        %v3189 = vsub.s32 3, %v3188
        %v3190 = vrot.slane %v860, %v3189
        %3192 = vbcast.lane.b32.xlu0 %v3190, 256
        %v3193 = vpop.permute.xlu0 %3192
        %s3195 = sor.u32 256, 8
        %3196 = vbcast.lane.b32.xlu0 %v3190, %s3195
        %v3197 = vpop.permute.xlu0 %3196
        %v3198 = vlaneseq
        %v3199 = vshrl.u32 %v3198, 7
        %v3200 = vsub.s32 4, %v3199
        %v3201 = vrot.slane %v860, %v3200
        %3203 = vbcast.lane.b32.xlu0 %v3201, 256
        %v3204 = vpop.permute.xlu0 %3203
        %s3206 = sor.u32 256, 8
        %3207 = vbcast.lane.b32.xlu0 %v3201, %s3206
        %v3208 = vpop.permute.xlu0 %3207
        %v3209 = vlaneseq
        %v3210 = vshrl.u32 %v3209, 7
        %v3211 = vsub.s32 5, %v3210
        %v3212 = vrot.slane %v860, %v3211
        %3214 = vbcast.lane.b32.xlu0 %v3212, 256
        %v3215 = vpop.permute.xlu0 %3214
        %s3217 = sor.u32 256, 8
        %3218 = vbcast.lane.b32.xlu0 %v3212, %s3217
        %v3219 = vpop.permute.xlu0 %3218
        %v3220 = vlaneseq
        %v3221 = vshrl.u32 %v3220, 7
        %v3222 = vsub.s32 6, %v3221
        %v3223 = vrot.slane %v860, %v3222
        %3225 = vbcast.lane.b32.xlu0 %v3223, 256
        %v3226 = vpop.permute.xlu0 %3225
        %s3228 = sor.u32 256, 8
        %3229 = vbcast.lane.b32.xlu0 %v3223, %s3228
        %v3230 = vpop.permute.xlu0 %3229
        %v3231 = vlaneseq
        %v3232 = vshrl.u32 %v3231, 7
        %v3233 = vsub.s32 7, %v3232
        %v3234 = vrot.slane %v860, %v3233
        %3236 = vbcast.lane.b32.xlu0 %v3234, 256
        %v3237 = vpop.permute.xlu0 %3236
        %s3239 = sor.u32 256, 8
        %3240 = vbcast.lane.b32.xlu0 %v3234, %s3239
        %v3241 = vpop.permute.xlu0 %3240
        %v3242 = vlaneseq
        %v3243 = vshrl.u32 %v3242, 7
        %v3244 = vsub.s32 0, %v3243
        %v3245 = vrot.slane %v861, %v3244
        %3247 = vbcast.lane.b32.xlu0 %v3245, 256
        %v3248 = vpop.permute.xlu0 %3247
        %s3250 = sor.u32 256, 8
        %3251 = vbcast.lane.b32.xlu0 %v3245, %s3250
        %v3252 = vpop.permute.xlu0 %3251
        %v3253 = vlaneseq
        %v3254 = vshrl.u32 %v3253, 7
        %v3255 = vsub.s32 1, %v3254
        %v3256 = vrot.slane %v861, %v3255
        %3258 = vbcast.lane.b32.xlu0 %v3256, 256
        %v3259 = vpop.permute.xlu0 %3258
        %s3261 = sor.u32 256, 8
        %3262 = vbcast.lane.b32.xlu0 %v3256, %s3261
        %v3263 = vpop.permute.xlu0 %3262
        %v3264 = vlaneseq
        %v3265 = vshrl.u32 %v3264, 7
        %v3266 = vsub.s32 2, %v3265
        %v3267 = vrot.slane %v861, %v3266
        %3269 = vbcast.lane.b32.xlu0 %v3267, 256
        %v3270 = vpop.permute.xlu0 %3269
        %s3272 = sor.u32 256, 8
        %3273 = vbcast.lane.b32.xlu0 %v3267, %s3272
        %v3274 = vpop.permute.xlu0 %3273
        %v3275 = vlaneseq
        %v3276 = vshrl.u32 %v3275, 7
        %v3277 = vsub.s32 3, %v3276
        %v3278 = vrot.slane %v861, %v3277
        %3280 = vbcast.lane.b32.xlu0 %v3278, 256
        %v3281 = vpop.permute.xlu0 %3280
        %s3283 = sor.u32 256, 8
        %3284 = vbcast.lane.b32.xlu0 %v3278, %s3283
        %v3285 = vpop.permute.xlu0 %3284
        %v3286 = vlaneseq
        %v3287 = vshrl.u32 %v3286, 7
        %v3288 = vsub.s32 4, %v3287
        %v3289 = vrot.slane %v861, %v3288
        %3291 = vbcast.lane.b32.xlu0 %v3289, 256
        %v3292 = vpop.permute.xlu0 %3291
        %s3294 = sor.u32 256, 8
        %3295 = vbcast.lane.b32.xlu0 %v3289, %s3294
        %v3296 = vpop.permute.xlu0 %3295
        %v3297 = vlaneseq
        %v3298 = vshrl.u32 %v3297, 7
        %v3299 = vsub.s32 5, %v3298
        %v3300 = vrot.slane %v861, %v3299
        %3302 = vbcast.lane.b32.xlu0 %v3300, 256
        %v3303 = vpop.permute.xlu0 %3302
        %s3305 = sor.u32 256, 8
        %3306 = vbcast.lane.b32.xlu0 %v3300, %s3305
        %v3307 = vpop.permute.xlu0 %3306
        %v3308 = vlaneseq
        %v3309 = vshrl.u32 %v3308, 7
        %v3310 = vsub.s32 6, %v3309
        %v3311 = vrot.slane %v861, %v3310
        %3313 = vbcast.lane.b32.xlu0 %v3311, 256
        %v3314 = vpop.permute.xlu0 %3313
        %s3316 = sor.u32 256, 8
        %3317 = vbcast.lane.b32.xlu0 %v3311, %s3316
        %v3318 = vpop.permute.xlu0 %3317
        %v3319 = vlaneseq
        %v3320 = vshrl.u32 %v3319, 7
        %v3321 = vsub.s32 7, %v3320
        %v3322 = vrot.slane %v861, %v3321
        %3324 = vbcast.lane.b32.xlu0 %v3322, 256
        %v3325 = vpop.permute.xlu0 %3324
        %s3327 = sor.u32 256, 8
        %3328 = vbcast.lane.b32.xlu0 %v3322, %s3327
        %v3329 = vpop.permute.xlu0 %3328
        %v3330 = vlaneseq
        %v3331 = vshrl.u32 %v3330, 7
        %v3332 = vsub.s32 0, %v3331
        %v3333 = vrot.slane %v862, %v3332
        %3335 = vbcast.lane.b32.xlu0 %v3333, 256
        %v3336 = vpop.permute.xlu0 %3335
        %s3338 = sor.u32 256, 8
        %3339 = vbcast.lane.b32.xlu0 %v3333, %s3338
        %v3340 = vpop.permute.xlu0 %3339
        %v3341 = vlaneseq
        %v3342 = vshrl.u32 %v3341, 7
        %v3343 = vsub.s32 1, %v3342
        %v3344 = vrot.slane %v862, %v3343
        %3346 = vbcast.lane.b32.xlu0 %v3344, 256
        %v3347 = vpop.permute.xlu0 %3346
        %s3349 = sor.u32 256, 8
        %3350 = vbcast.lane.b32.xlu0 %v3344, %s3349
        %v3351 = vpop.permute.xlu0 %3350
        %v3352 = vlaneseq
        %v3353 = vshrl.u32 %v3352, 7
        %v3354 = vsub.s32 2, %v3353
        %v3355 = vrot.slane %v862, %v3354
        %3357 = vbcast.lane.b32.xlu0 %v3355, 256
        %v3358 = vpop.permute.xlu0 %3357
        %s3360 = sor.u32 256, 8
        %3361 = vbcast.lane.b32.xlu0 %v3355, %s3360
        %v3362 = vpop.permute.xlu0 %3361
        %v3363 = vlaneseq
        %v3364 = vshrl.u32 %v3363, 7
        %v3365 = vsub.s32 3, %v3364
        %v3366 = vrot.slane %v862, %v3365
        %3368 = vbcast.lane.b32.xlu0 %v3366, 256
        %v3369 = vpop.permute.xlu0 %3368
        %s3371 = sor.u32 256, 8
        %3372 = vbcast.lane.b32.xlu0 %v3366, %s3371
        %v3373 = vpop.permute.xlu0 %3372
        %v3374 = vlaneseq
        %v3375 = vshrl.u32 %v3374, 7
        %v3376 = vsub.s32 4, %v3375
        %v3377 = vrot.slane %v862, %v3376
        %3379 = vbcast.lane.b32.xlu0 %v3377, 256
        %v3380 = vpop.permute.xlu0 %3379
        %s3382 = sor.u32 256, 8
        %3383 = vbcast.lane.b32.xlu0 %v3377, %s3382
        %v3384 = vpop.permute.xlu0 %3383
        %v3385 = vlaneseq
        %v3386 = vshrl.u32 %v3385, 7
        %v3387 = vsub.s32 5, %v3386
        %v3388 = vrot.slane %v862, %v3387
        %3390 = vbcast.lane.b32.xlu0 %v3388, 256
        %v3391 = vpop.permute.xlu0 %3390
        %s3393 = sor.u32 256, 8
        %3394 = vbcast.lane.b32.xlu0 %v3388, %s3393
        %v3395 = vpop.permute.xlu0 %3394
        %v3396 = vlaneseq
        %v3397 = vshrl.u32 %v3396, 7
        %v3398 = vsub.s32 6, %v3397
        %v3399 = vrot.slane %v862, %v3398
        %3401 = vbcast.lane.b32.xlu0 %v3399, 256
        %v3402 = vpop.permute.xlu0 %3401
        %s3404 = sor.u32 256, 8
        %3405 = vbcast.lane.b32.xlu0 %v3399, %s3404
        %v3406 = vpop.permute.xlu0 %3405
        %v3407 = vlaneseq
        %v3408 = vshrl.u32 %v3407, 7
        %v3409 = vsub.s32 7, %v3408
        %v3410 = vrot.slane %v862, %v3409
        %3412 = vbcast.lane.b32.xlu0 %v3410, 256
        %v3413 = vpop.permute.xlu0 %3412
        %s3415 = sor.u32 256, 8
        %3416 = vbcast.lane.b32.xlu0 %v3410, %s3415
        %v3417 = vpop.permute.xlu0 %3416
        %v3418 = vlaneseq
        %v3419 = vshrl.u32 %v3418, 7
        %v3420 = vsub.s32 0, %v3419
        %v3421 = vrot.slane %v863, %v3420
        %3423 = vbcast.lane.b32.xlu0 %v3421, 256
        %v3424 = vpop.permute.xlu0 %3423
        %s3426 = sor.u32 256, 8
        %3427 = vbcast.lane.b32.xlu0 %v3421, %s3426
        %v3428 = vpop.permute.xlu0 %3427
        %v3429 = vlaneseq
        %v3430 = vshrl.u32 %v3429, 7
        %v3431 = vsub.s32 1, %v3430
        %v3432 = vrot.slane %v863, %v3431
        %3434 = vbcast.lane.b32.xlu0 %v3432, 256
        %v3435 = vpop.permute.xlu0 %3434
        %s3437 = sor.u32 256, 8
        %3438 = vbcast.lane.b32.xlu0 %v3432, %s3437
        %v3439 = vpop.permute.xlu0 %3438
        %v3440 = vlaneseq
        %v3441 = vshrl.u32 %v3440, 7
        %v3442 = vsub.s32 2, %v3441
        %v3443 = vrot.slane %v863, %v3442
        %3445 = vbcast.lane.b32.xlu0 %v3443, 256
        %v3446 = vpop.permute.xlu0 %3445
        %s3448 = sor.u32 256, 8
        %3449 = vbcast.lane.b32.xlu0 %v3443, %s3448
        %v3450 = vpop.permute.xlu0 %3449
        %v3451 = vlaneseq
        %v3452 = vshrl.u32 %v3451, 7
        %v3453 = vsub.s32 3, %v3452
        %v3454 = vrot.slane %v863, %v3453
        %3456 = vbcast.lane.b32.xlu0 %v3454, 256
        %v3457 = vpop.permute.xlu0 %3456
        %s3459 = sor.u32 256, 8
        %3460 = vbcast.lane.b32.xlu0 %v3454, %s3459
        %v3461 = vpop.permute.xlu0 %3460
        %v3462 = vlaneseq
        %v3463 = vshrl.u32 %v3462, 7
        %v3464 = vsub.s32 4, %v3463
        %v3465 = vrot.slane %v863, %v3464
        %3467 = vbcast.lane.b32.xlu0 %v3465, 256
        %v3468 = vpop.permute.xlu0 %3467
        %s3470 = sor.u32 256, 8
        %3471 = vbcast.lane.b32.xlu0 %v3465, %s3470
        %v3472 = vpop.permute.xlu0 %3471
        %v3473 = vlaneseq
        %v3474 = vshrl.u32 %v3473, 7
        %v3475 = vsub.s32 5, %v3474
        %v3476 = vrot.slane %v863, %v3475
        %3478 = vbcast.lane.b32.xlu0 %v3476, 256
        %v3479 = vpop.permute.xlu0 %3478
        %s3481 = sor.u32 256, 8
        %3482 = vbcast.lane.b32.xlu0 %v3476, %s3481
        %v3483 = vpop.permute.xlu0 %3482
        %v3484 = vlaneseq
        %v3485 = vshrl.u32 %v3484, 7
        %v3486 = vsub.s32 6, %v3485
        %v3487 = vrot.slane %v863, %v3486
        %3489 = vbcast.lane.b32.xlu0 %v3487, 256
        %v3490 = vpop.permute.xlu0 %3489
        %s3492 = sor.u32 256, 8
        %3493 = vbcast.lane.b32.xlu0 %v3487, %s3492
        %v3494 = vpop.permute.xlu0 %3493
        %v3495 = vlaneseq
        %v3496 = vshrl.u32 %v3495, 7
        %v3497 = vsub.s32 7, %v3496
        %v3498 = vrot.slane %v863, %v3497
        %3500 = vbcast.lane.b32.xlu0 %v3498, 256
        %v3501 = vpop.permute.xlu0 %3500
        %s3503 = sor.u32 256, 8
        %3504 = vbcast.lane.b32.xlu0 %v3498, %s3503
        %v3505 = vpop.permute.xlu0 %3504
        %v3506 = vlaneseq
        %v3507 = vshrl.u32 %v3506, 7
        %v3508 = vsub.s32 0, %v3507
        %v3509 = vrot.slane %v864, %v3508
        %3511 = vbcast.lane.b32.xlu0 %v3509, 256
        %v3512 = vpop.permute.xlu0 %3511
        %s3514 = sor.u32 256, 8
        %3515 = vbcast.lane.b32.xlu0 %v3509, %s3514
        %v3516 = vpop.permute.xlu0 %3515
        %v3517 = vlaneseq
        %v3518 = vshrl.u32 %v3517, 7
        %v3519 = vsub.s32 1, %v3518
        %v3520 = vrot.slane %v864, %v3519
        %3522 = vbcast.lane.b32.xlu0 %v3520, 256
        %v3523 = vpop.permute.xlu0 %3522
        %s3525 = sor.u32 256, 8
        %3526 = vbcast.lane.b32.xlu0 %v3520, %s3525
        %v3527 = vpop.permute.xlu0 %3526
        %v3528 = vlaneseq
        %v3529 = vshrl.u32 %v3528, 7
        %v3530 = vsub.s32 2, %v3529
        %v3531 = vrot.slane %v864, %v3530
        %3533 = vbcast.lane.b32.xlu0 %v3531, 256
        %v3534 = vpop.permute.xlu0 %3533
        %s3536 = sor.u32 256, 8
        %3537 = vbcast.lane.b32.xlu0 %v3531, %s3536
        %v3538 = vpop.permute.xlu0 %3537
        %v3539 = vlaneseq
        %v3540 = vshrl.u32 %v3539, 7
        %v3541 = vsub.s32 3, %v3540
        %v3542 = vrot.slane %v864, %v3541
        %3544 = vbcast.lane.b32.xlu0 %v3542, 256
        %v3545 = vpop.permute.xlu0 %3544
        %s3547 = sor.u32 256, 8
        %3548 = vbcast.lane.b32.xlu0 %v3542, %s3547
        %v3549 = vpop.permute.xlu0 %3548
        %v3550 = vlaneseq
        %v3551 = vshrl.u32 %v3550, 7
        %v3552 = vsub.s32 4, %v3551
        %v3553 = vrot.slane %v864, %v3552
        %3555 = vbcast.lane.b32.xlu0 %v3553, 256
        %v3556 = vpop.permute.xlu0 %3555
        %s3558 = sor.u32 256, 8
        %3559 = vbcast.lane.b32.xlu0 %v3553, %s3558
        %v3560 = vpop.permute.xlu0 %3559
        %v3561 = vlaneseq
        %v3562 = vshrl.u32 %v3561, 7
        %v3563 = vsub.s32 5, %v3562
        %v3564 = vrot.slane %v864, %v3563
        %3566 = vbcast.lane.b32.xlu0 %v3564, 256
        %v3567 = vpop.permute.xlu0 %3566
        %s3569 = sor.u32 256, 8
        %3570 = vbcast.lane.b32.xlu0 %v3564, %s3569
        %v3571 = vpop.permute.xlu0 %3570
        %v3572 = vlaneseq
        %v3573 = vshrl.u32 %v3572, 7
        %v3574 = vsub.s32 6, %v3573
        %v3575 = vrot.slane %v864, %v3574
        %3577 = vbcast.lane.b32.xlu0 %v3575, 256
        %v3578 = vpop.permute.xlu0 %3577
        %s3580 = sor.u32 256, 8
        %3581 = vbcast.lane.b32.xlu0 %v3575, %s3580
        %v3582 = vpop.permute.xlu0 %3581
        %v3583 = vlaneseq
        %v3584 = vshrl.u32 %v3583, 7
        %v3585 = vsub.s32 7, %v3584
        %v3586 = vrot.slane %v864, %v3585
        %3588 = vbcast.lane.b32.xlu0 %v3586, 256
        %v3589 = vpop.permute.xlu0 %3588
        %s3591 = sor.u32 256, 8
        %3592 = vbcast.lane.b32.xlu0 %v3586, %s3591
        %v3593 = vpop.permute.xlu0 %3592
        %v3594 = vlaneseq
        %v3595 = vshrl.u32 %v3594, 7
        %v3596 = vsub.s32 0, %v3595
        %v3597 = vrot.slane %v865, %v3596
        %3599 = vbcast.lane.b32.xlu0 %v3597, 256
        %v3600 = vpop.permute.xlu0 %3599
        %s3602 = sor.u32 256, 8
        %3603 = vbcast.lane.b32.xlu0 %v3597, %s3602
        %v3604 = vpop.permute.xlu0 %3603
        %v3605 = vlaneseq
        %v3606 = vshrl.u32 %v3605, 7
        %v3607 = vsub.s32 1, %v3606
        %v3608 = vrot.slane %v865, %v3607
        %3610 = vbcast.lane.b32.xlu0 %v3608, 256
        %v3611 = vpop.permute.xlu0 %3610
        %s3613 = sor.u32 256, 8
        %3614 = vbcast.lane.b32.xlu0 %v3608, %s3613
        %v3615 = vpop.permute.xlu0 %3614
        %v3616 = vlaneseq
        %v3617 = vshrl.u32 %v3616, 7
        %v3618 = vsub.s32 2, %v3617
        %v3619 = vrot.slane %v865, %v3618
        %3621 = vbcast.lane.b32.xlu0 %v3619, 256
        %v3622 = vpop.permute.xlu0 %3621
        %s3624 = sor.u32 256, 8
        %3625 = vbcast.lane.b32.xlu0 %v3619, %s3624
        %v3626 = vpop.permute.xlu0 %3625
        %v3627 = vlaneseq
        %v3628 = vshrl.u32 %v3627, 7
        %v3629 = vsub.s32 3, %v3628
        %v3630 = vrot.slane %v865, %v3629
        %3632 = vbcast.lane.b32.xlu0 %v3630, 256
        %v3633 = vpop.permute.xlu0 %3632
        %s3635 = sor.u32 256, 8
        %3636 = vbcast.lane.b32.xlu0 %v3630, %s3635
        %v3637 = vpop.permute.xlu0 %3636
        %v3638 = vlaneseq
        %v3639 = vshrl.u32 %v3638, 7
        %v3640 = vsub.s32 4, %v3639
        %v3641 = vrot.slane %v865, %v3640
        %3643 = vbcast.lane.b32.xlu0 %v3641, 256
        %v3644 = vpop.permute.xlu0 %3643
        %s3646 = sor.u32 256, 8
        %3647 = vbcast.lane.b32.xlu0 %v3641, %s3646
        %v3648 = vpop.permute.xlu0 %3647
        %v3649 = vlaneseq
        %v3650 = vshrl.u32 %v3649, 7
        %v3651 = vsub.s32 5, %v3650
        %v3652 = vrot.slane %v865, %v3651
        %3654 = vbcast.lane.b32.xlu0 %v3652, 256
        %v3655 = vpop.permute.xlu0 %3654
        %s3657 = sor.u32 256, 8
        %3658 = vbcast.lane.b32.xlu0 %v3652, %s3657
        %v3659 = vpop.permute.xlu0 %3658
        %v3660 = vlaneseq
        %v3661 = vshrl.u32 %v3660, 7
        %v3662 = vsub.s32 6, %v3661
        %v3663 = vrot.slane %v865, %v3662
        %3665 = vbcast.lane.b32.xlu0 %v3663, 256
        %v3666 = vpop.permute.xlu0 %3665
        %s3668 = sor.u32 256, 8
        %3669 = vbcast.lane.b32.xlu0 %v3663, %s3668
        %v3670 = vpop.permute.xlu0 %3669
        %v3671 = vlaneseq
        %v3672 = vshrl.u32 %v3671, 7
        %v3673 = vsub.s32 7, %v3672
        %v3674 = vrot.slane %v865, %v3673
        %3676 = vbcast.lane.b32.xlu0 %v3674, 256
        %v3677 = vpop.permute.xlu0 %3676
        %s3679 = sor.u32 256, 8
        %3680 = vbcast.lane.b32.xlu0 %v3674, %s3679
        %v3681 = vpop.permute.xlu0 %3680
        %v3682 = vmul.f32 %v322, %v872
        %v3683 = vmul.f32 %v323, %v876
        %v3684 = vmul.f32 %v324, %v883
        %v3685 = vmul.f32 %v325, %v887
        %v3686 = vmul.f32 %v326, %v894
        %v3687 = vmul.f32 %v327, %v898
        %v3688 = vmul.f32 %v328, %v905
        %v3689 = vmul.f32 %v329, %v909
        %v3690 = vmul.f32 %v330, %v916
        %v3691 = vmul.f32 %v331, %v920
        %v3692 = vmul.f32 %v332, %v927
        %v3693 = vmul.f32 %v333, %v931
        %v3694 = vmul.f32 %v334, %v938
        %v3695 = vmul.f32 %v335, %v942
        %v3696 = vmul.f32 %v336, %v949
        %v3697 = vmul.f32 %v337, %v953
        %v3698 = vmul.f32 %v338, %v960
        %v3699 = vmul.f32 %v339, %v964
        %v3700 = vmul.f32 %v340, %v971
        %v3701 = vmul.f32 %v341, %v975
        %v3702 = vmul.f32 %v342, %v982
        %v3703 = vmul.f32 %v343, %v986
        %v3704 = vmul.f32 %v344, %v993
        %v3705 = vmul.f32 %v345, %v997
        %v3706 = vmul.f32 %v346, %v1004
        %v3707 = vmul.f32 %v347, %v1008
        %v3708 = vmul.f32 %v348, %v1015
        %v3709 = vmul.f32 %v349, %v1019
        %v3710 = vmul.f32 %v350, %v1026
        %v3711 = vmul.f32 %v351, %v1030
        %v3712 = vmul.f32 %v352, %v1037
        %v3713 = vmul.f32 %v353, %v1041
        %v3714 = vmul.f32 %v354, %v1048
        %v3715 = vmul.f32 %v355, %v1052
        %v3716 = vmul.f32 %v356, %v1059
        %v3717 = vmul.f32 %v357, %v1063
        %v3718 = vmul.f32 %v358, %v1070
        %v3719 = vmul.f32 %v359, %v1074
        %v3720 = vmul.f32 %v360, %v1081
        %v3721 = vmul.f32 %v361, %v1085
        %v3722 = vmul.f32 %v362, %v1092
        %v3723 = vmul.f32 %v363, %v1096
        %v3724 = vmul.f32 %v364, %v1103
        %v3725 = vmul.f32 %v365, %v1107
        %v3726 = vmul.f32 %v366, %v1114
        %v3727 = vmul.f32 %v367, %v1118
        %v3728 = vmul.f32 %v368, %v1125
        %v3729 = vmul.f32 %v369, %v1129
        %v3730 = vmul.f32 %v370, %v1136
        %v3731 = vmul.f32 %v371, %v1140
        %v3732 = vmul.f32 %v372, %v1147
        %v3733 = vmul.f32 %v373, %v1151
        %v3734 = vmul.f32 %v374, %v1158
        %v3735 = vmul.f32 %v375, %v1162
        %v3736 = vmul.f32 %v376, %v1169
        %v3737 = vmul.f32 %v377, %v1173
        %v3738 = vmul.f32 %v378, %v1180
        %v3739 = vmul.f32 %v379, %v1184
        %v3740 = vmul.f32 %v380, %v1191
        %v3741 = vmul.f32 %v381, %v1195
        %v3742 = vmul.f32 %v382, %v1202
        %v3743 = vmul.f32 %v383, %v1206
        %v3744 = vmul.f32 %v384, %v1213
        %v3745 = vmul.f32 %v385, %v1217
        %v3746 = vmul.f32 %v386, %v1224
        %v3747 = vmul.f32 %v387, %v1228
        %v3748 = vmul.f32 %v388, %v1235
        %v3749 = vmul.f32 %v389, %v1239
        %v3750 = vmul.f32 %v390, %v1246
        %v3751 = vmul.f32 %v391, %v1250
        %v3752 = vmul.f32 %v392, %v1257
        %v3753 = vmul.f32 %v393, %v1261
        %v3754 = vmul.f32 %v394, %v1268
        %v3755 = vmul.f32 %v395, %v1272
        %v3756 = vmul.f32 %v396, %v1279
        %v3757 = vmul.f32 %v397, %v1283
        %v3758 = vmul.f32 %v398, %v1290
        %v3759 = vmul.f32 %v399, %v1294
        %v3760 = vmul.f32 %v400, %v1301
        %v3761 = vmul.f32 %v401, %v1305
        %v3762 = vmul.f32 %v402, %v1312
        %v3763 = vmul.f32 %v403, %v1316
        %v3764 = vmul.f32 %v404, %v1323
        %v3765 = vmul.f32 %v405, %v1327
        %v3766 = vmul.f32 %v406, %v1334
        %v3767 = vmul.f32 %v407, %v1338
        %v3768 = vmul.f32 %v408, %v1345
        %v3769 = vmul.f32 %v409, %v1349
        %v3770 = vmul.f32 %v410, %v1356
        %v3771 = vmul.f32 %v411, %v1360
        %v3772 = vmul.f32 %v412, %v1367
        %v3773 = vmul.f32 %v413, %v1371
        %v3774 = vmul.f32 %v414, %v1378
        %v3775 = vmul.f32 %v415, %v1382
        %v3776 = vmul.f32 %v416, %v1389
        %v3777 = vmul.f32 %v417, %v1393
        %v3778 = vmul.f32 %v418, %v1400
        %v3779 = vmul.f32 %v419, %v1404
        %v3780 = vmul.f32 %v420, %v1411
        %v3781 = vmul.f32 %v421, %v1415
        %v3782 = vmul.f32 %v422, %v1422
        %v3783 = vmul.f32 %v423, %v1426
        %v3784 = vmul.f32 %v424, %v1433
        %v3785 = vmul.f32 %v425, %v1437
        %v3786 = vmul.f32 %v426, %v1444
        %v3787 = vmul.f32 %v427, %v1448
        %v3788 = vmul.f32 %v428, %v1455
        %v3789 = vmul.f32 %v429, %v1459
        %v3790 = vmul.f32 %v430, %v1466
        %v3791 = vmul.f32 %v431, %v1470
        %v3792 = vmul.f32 %v432, %v1477
        %v3793 = vmul.f32 %v433, %v1481
        %v3794 = vmul.f32 %v434, %v1488
        %v3795 = vmul.f32 %v435, %v1492
        %v3796 = vmul.f32 %v436, %v1499
        %v3797 = vmul.f32 %v437, %v1503
        %v3798 = vmul.f32 %v438, %v1510
        %v3799 = vmul.f32 %v439, %v1514
        %v3800 = vmul.f32 %v440, %v1521
        %v3801 = vmul.f32 %v441, %v1525
        %v3802 = vmul.f32 %v442, %v1532
        %v3803 = vmul.f32 %v443, %v1536
        %v3804 = vmul.f32 %v444, %v1543
        %v3805 = vmul.f32 %v445, %v1547
        %v3806 = vmul.f32 %v446, %v1554
        %v3807 = vmul.f32 %v447, %v1558
        %v3808 = vmul.f32 %v448, %v1565
        %v3809 = vmul.f32 %v449, %v1569
        %v3810 = vmul.f32 %v450, %v1576
        %v3811 = vmul.f32 %v451, %v1580
        %v3812 = vmul.f32 %v452, %v1587
        %v3813 = vmul.f32 %v453, %v1591
        %v3814 = vmul.f32 %v454, %v1598
        %v3815 = vmul.f32 %v455, %v1602
        %v3816 = vmul.f32 %v456, %v1609
        %v3817 = vmul.f32 %v457, %v1613
        %v3818 = vmul.f32 %v458, %v1620
        %v3819 = vmul.f32 %v459, %v1624
        %v3820 = vmul.f32 %v460, %v1631
        %v3821 = vmul.f32 %v461, %v1635
        %v3822 = vmul.f32 %v462, %v1642
        %v3823 = vmul.f32 %v463, %v1646
        %v3824 = vmul.f32 %v464, %v1653
        %v3825 = vmul.f32 %v465, %v1657
        %v3826 = vmul.f32 %v466, %v1664
        %v3827 = vmul.f32 %v467, %v1668
        %v3828 = vmul.f32 %v468, %v1675
        %v3829 = vmul.f32 %v469, %v1679
        %v3830 = vmul.f32 %v470, %v1686
        %v3831 = vmul.f32 %v471, %v1690
        %v3832 = vmul.f32 %v472, %v1697
        %v3833 = vmul.f32 %v473, %v1701
        %v3834 = vmul.f32 %v474, %v1708
        %v3835 = vmul.f32 %v475, %v1712
        %v3836 = vmul.f32 %v476, %v1719
        %v3837 = vmul.f32 %v477, %v1723
        %v3838 = vmul.f32 %v478, %v1730
        %v3839 = vmul.f32 %v479, %v1734
        %v3840 = vmul.f32 %v480, %v1741
        %v3841 = vmul.f32 %v481, %v1745
        %v3842 = vmul.f32 %v482, %v1752
        %v3843 = vmul.f32 %v483, %v1756
        %v3844 = vmul.f32 %v484, %v1763
        %v3845 = vmul.f32 %v485, %v1767
        %v3846 = vmul.f32 %v486, %v1774
        %v3847 = vmul.f32 %v487, %v1778
        %v3848 = vmul.f32 %v488, %v1785
        %v3849 = vmul.f32 %v489, %v1789
        %v3850 = vmul.f32 %v490, %v1796
        %v3851 = vmul.f32 %v491, %v1800
        %v3852 = vmul.f32 %v492, %v1807
        %v3853 = vmul.f32 %v493, %v1811
        %v3854 = vmul.f32 %v494, %v1818
        %v3855 = vmul.f32 %v495, %v1822
        %v3856 = vmul.f32 %v496, %v1829
        %v3857 = vmul.f32 %v497, %v1833
        %v3858 = vmul.f32 %v498, %v1840
        %v3859 = vmul.f32 %v499, %v1844
        %v3860 = vmul.f32 %v500, %v1851
        %v3861 = vmul.f32 %v501, %v1855
        %v3862 = vmul.f32 %v502, %v1862
        %v3863 = vmul.f32 %v503, %v1866
        %v3864 = vmul.f32 %v504, %v1873
        %v3865 = vmul.f32 %v505, %v1877
        %v3866 = vmul.f32 %v506, %v1884
        %v3867 = vmul.f32 %v507, %v1888
        %v3868 = vmul.f32 %v508, %v1895
        %v3869 = vmul.f32 %v509, %v1899
        %v3870 = vmul.f32 %v510, %v1906
        %v3871 = vmul.f32 %v511, %v1910
        %v3872 = vmul.f32 %v512, %v1917
        %v3873 = vmul.f32 %v513, %v1921
        %v3874 = vmul.f32 %v514, %v1928
        %v3875 = vmul.f32 %v515, %v1932
        %v3876 = vmul.f32 %v516, %v1939
        %v3877 = vmul.f32 %v517, %v1943
        %v3878 = vmul.f32 %v518, %v1950
        %v3879 = vmul.f32 %v519, %v1954
        %v3880 = vmul.f32 %v520, %v1961
        %v3881 = vmul.f32 %v521, %v1965
        %v3882 = vmul.f32 %v522, %v1972
        %v3883 = vmul.f32 %v523, %v1976
        %v3884 = vmul.f32 %v524, %v1983
        %v3885 = vmul.f32 %v525, %v1987
        %v3886 = vmul.f32 %v526, %v1994
        %v3887 = vmul.f32 %v527, %v1998
        %v3888 = vmul.f32 %v528, %v2005
        %v3889 = vmul.f32 %v529, %v2009
        %v3890 = vmul.f32 %v530, %v2016
        %v3891 = vmul.f32 %v531, %v2020
        %v3892 = vmul.f32 %v532, %v2027
        %v3893 = vmul.f32 %v533, %v2031
        %v3894 = vmul.f32 %v534, %v2038
        %v3895 = vmul.f32 %v535, %v2042
        %v3896 = vmul.f32 %v536, %v2049
        %v3897 = vmul.f32 %v537, %v2053
        %v3898 = vmul.f32 %v538, %v2060
        %v3899 = vmul.f32 %v539, %v2064
        %v3900 = vmul.f32 %v540, %v2071
        %v3901 = vmul.f32 %v541, %v2075
        %v3902 = vmul.f32 %v542, %v2082
        %v3903 = vmul.f32 %v543, %v2086
        %v3904 = vmul.f32 %v544, %v2093
        %v3905 = vmul.f32 %v545, %v2097
        %v3906 = vmul.f32 %v546, %v2104
        %v3907 = vmul.f32 %v547, %v2108
        %v3908 = vmul.f32 %v548, %v2115
        %v3909 = vmul.f32 %v549, %v2119
        %v3910 = vmul.f32 %v550, %v2126
        %v3911 = vmul.f32 %v551, %v2130
        %v3912 = vmul.f32 %v552, %v2137
        %v3913 = vmul.f32 %v553, %v2141
        %v3914 = vmul.f32 %v554, %v2148
        %v3915 = vmul.f32 %v555, %v2152
        %v3916 = vmul.f32 %v556, %v2159
        %v3917 = vmul.f32 %v557, %v2163
        %v3918 = vmul.f32 %v558, %v2170
        %v3919 = vmul.f32 %v559, %v2174
        %v3920 = vmul.f32 %v560, %v2181
        %v3921 = vmul.f32 %v561, %v2185
        %v3922 = vmul.f32 %v562, %v2192
        %v3923 = vmul.f32 %v563, %v2196
        %v3924 = vmul.f32 %v564, %v2203
        %v3925 = vmul.f32 %v565, %v2207
        %v3926 = vmul.f32 %v566, %v2214
        %v3927 = vmul.f32 %v567, %v2218
        %v3928 = vmul.f32 %v568, %v2225
        %v3929 = vmul.f32 %v569, %v2229
        %v3930 = vmul.f32 %v570, %v2236
        %v3931 = vmul.f32 %v571, %v2240
        %v3932 = vmul.f32 %v572, %v2247
        %v3933 = vmul.f32 %v573, %v2251
        %v3934 = vmul.f32 %v574, %v2258
        %v3935 = vmul.f32 %v575, %v2262
        %v3936 = vmul.f32 %v576, %v2269
        %v3937 = vmul.f32 %v577, %v2273
        %v3938 = vmul.f32 %v578, %v2280
        %v3939 = vmul.f32 %v579, %v2284
        %v3940 = vmul.f32 %v580, %v2291
        %v3941 = vmul.f32 %v581, %v2295
        %v3942 = vmul.f32 %v582, %v2302
        %v3943 = vmul.f32 %v583, %v2306
        %v3944 = vmul.f32 %v584, %v2313
        %v3945 = vmul.f32 %v585, %v2317
        %v3946 = vmul.f32 %v586, %v2324
        %v3947 = vmul.f32 %v587, %v2328
        %v3948 = vmul.f32 %v588, %v2335
        %v3949 = vmul.f32 %v589, %v2339
        %v3950 = vmul.f32 %v590, %v2346
        %v3951 = vmul.f32 %v591, %v2350
        %v3952 = vmul.f32 %v592, %v2357
        %v3953 = vmul.f32 %v593, %v2361
        %v3954 = vmul.f32 %v594, %v2368
        %v3955 = vmul.f32 %v595, %v2372
        %v3956 = vmul.f32 %v596, %v2379
        %v3957 = vmul.f32 %v597, %v2383
        %v3958 = vmul.f32 %v598, %v2390
        %v3959 = vmul.f32 %v599, %v2394
        %v3960 = vmul.f32 %v600, %v2401
        %v3961 = vmul.f32 %v601, %v2405
        %v3962 = vmul.f32 %v602, %v2412
        %v3963 = vmul.f32 %v603, %v2416
        %v3964 = vmul.f32 %v604, %v2423
        %v3965 = vmul.f32 %v605, %v2427
        %v3966 = vmul.f32 %v606, %v2434
        %v3967 = vmul.f32 %v607, %v2438
        %v3968 = vmul.f32 %v608, %v2445
        %v3969 = vmul.f32 %v609, %v2449
        %v3970 = vmul.f32 %v610, %v2456
        %v3971 = vmul.f32 %v611, %v2460
        %v3972 = vmul.f32 %v612, %v2467
        %v3973 = vmul.f32 %v613, %v2471
        %v3974 = vmul.f32 %v614, %v2478
        %v3975 = vmul.f32 %v615, %v2482
        %v3976 = vmul.f32 %v616, %v2489
        %v3977 = vmul.f32 %v617, %v2493
        %v3978 = vmul.f32 %v618, %v2500
        %v3979 = vmul.f32 %v619, %v2504
        %v3980 = vmul.f32 %v620, %v2511
        %v3981 = vmul.f32 %v621, %v2515
        %v3982 = vmul.f32 %v622, %v2522
        %v3983 = vmul.f32 %v623, %v2526
        %v3984 = vmul.f32 %v624, %v2533
        %v3985 = vmul.f32 %v625, %v2537
        %v3986 = vmul.f32 %v626, %v2544
        %v3987 = vmul.f32 %v627, %v2548
        %v3988 = vmul.f32 %v628, %v2555
        %v3989 = vmul.f32 %v629, %v2559
        %v3990 = vmul.f32 %v630, %v2566
        %v3991 = vmul.f32 %v631, %v2570
        %v3992 = vmul.f32 %v632, %v2577
        %v3993 = vmul.f32 %v633, %v2581
        %v3994 = vmul.f32 %v634, %v2588
        %v3995 = vmul.f32 %v635, %v2592
        %v3996 = vmul.f32 %v636, %v2599
        %v3997 = vmul.f32 %v637, %v2603
        %v3998 = vmul.f32 %v638, %v2610
        %v3999 = vmul.f32 %v639, %v2614
        %v4000 = vmul.f32 %v640, %v2621
        %v4001 = vmul.f32 %v641, %v2625
        %v4002 = vmul.f32 %v642, %v2632
        %v4003 = vmul.f32 %v643, %v2636
        %v4004 = vmul.f32 %v644, %v2643
        %v4005 = vmul.f32 %v645, %v2647
        %v4006 = vmul.f32 %v646, %v2654
        %v4007 = vmul.f32 %v647, %v2658
        %v4008 = vmul.f32 %v648, %v2665
        %v4009 = vmul.f32 %v649, %v2669
        %v4010 = vmul.f32 %v650, %v2676
        %v4011 = vmul.f32 %v651, %v2680
        %v4012 = vmul.f32 %v652, %v2687
        %v4013 = vmul.f32 %v653, %v2691
        %v4014 = vmul.f32 %v654, %v2698
        %v4015 = vmul.f32 %v655, %v2702
        %v4016 = vmul.f32 %v656, %v2709
        %v4017 = vmul.f32 %v657, %v2713
        %v4018 = vmul.f32 %v658, %v2720
        %v4019 = vmul.f32 %v659, %v2724
        %v4020 = vmul.f32 %v660, %v2731
        %v4021 = vmul.f32 %v661, %v2735
        %v4022 = vmul.f32 %v662, %v2742
        %v4023 = vmul.f32 %v663, %v2746
        %v4024 = vmul.f32 %v664, %v2753
        %v4025 = vmul.f32 %v665, %v2757
        %v4026 = vmul.f32 %v666, %v2764
        %v4027 = vmul.f32 %v667, %v2768
        %v4028 = vmul.f32 %v668, %v2775
        %v4029 = vmul.f32 %v669, %v2779
        %v4030 = vmul.f32 %v670, %v2786
        %v4031 = vmul.f32 %v671, %v2790
        %v4032 = vmul.f32 %v672, %v2797
        %v4033 = vmul.f32 %v673, %v2801
        %v4034 = vmul.f32 %v674, %v2808
        %v4035 = vmul.f32 %v675, %v2812
        %v4036 = vmul.f32 %v676, %v2819
        %v4037 = vmul.f32 %v677, %v2823
        %v4038 = vmul.f32 %v678, %v2830
        %v4039 = vmul.f32 %v679, %v2834
        %v4040 = vmul.f32 %v680, %v2841
        %v4041 = vmul.f32 %v681, %v2845
        %v4042 = vmul.f32 %v682, %v2852
        %v4043 = vmul.f32 %v683, %v2856
        %v4044 = vmul.f32 %v684, %v2863
        %v4045 = vmul.f32 %v685, %v2867
        %v4046 = vmul.f32 %v686, %v2874
        %v4047 = vmul.f32 %v687, %v2878
        %v4048 = vmul.f32 %v688, %v2885
        %v4049 = vmul.f32 %v689, %v2889
        %v4050 = vmul.f32 %v690, %v2896
        %v4051 = vmul.f32 %v691, %v2900
        %v4052 = vmul.f32 %v692, %v2907
        %v4053 = vmul.f32 %v693, %v2911
        %v4054 = vmul.f32 %v694, %v2918
        %v4055 = vmul.f32 %v695, %v2922
        %v4056 = vmul.f32 %v696, %v2929
        %v4057 = vmul.f32 %v697, %v2933
        %v4058 = vmul.f32 %v698, %v2940
        %v4059 = vmul.f32 %v699, %v2944
        %v4060 = vmul.f32 %v700, %v2951
        %v4061 = vmul.f32 %v701, %v2955
        %v4062 = vmul.f32 %v702, %v2962
        %v4063 = vmul.f32 %v703, %v2966
        %v4064 = vmul.f32 %v704, %v2973
        %v4065 = vmul.f32 %v705, %v2977
        %v4066 = vmul.f32 %v706, %v2984
        %v4067 = vmul.f32 %v707, %v2988
        %v4068 = vmul.f32 %v708, %v2995
        %v4069 = vmul.f32 %v709, %v2999
        %v4070 = vmul.f32 %v710, %v3006
        %v4071 = vmul.f32 %v711, %v3010
        %v4072 = vmul.f32 %v712, %v3017
        %v4073 = vmul.f32 %v713, %v3021
        %v4074 = vmul.f32 %v714, %v3028
        %v4075 = vmul.f32 %v715, %v3032
        %v4076 = vmul.f32 %v716, %v3039
        %v4077 = vmul.f32 %v717, %v3043
        %v4078 = vmul.f32 %v718, %v3050
        %v4079 = vmul.f32 %v719, %v3054
        %v4080 = vmul.f32 %v720, %v3061
        %v4081 = vmul.f32 %v721, %v3065
        %v4082 = vmul.f32 %v722, %v3072
        %v4083 = vmul.f32 %v723, %v3076
        %v4084 = vmul.f32 %v724, %v3083
        %v4085 = vmul.f32 %v725, %v3087
        %v4086 = vmul.f32 %v726, %v3094
        %v4087 = vmul.f32 %v727, %v3098
        %v4088 = vmul.f32 %v728, %v3105
        %v4089 = vmul.f32 %v729, %v3109
        %v4090 = vmul.f32 %v730, %v3116
        %v4091 = vmul.f32 %v731, %v3120
        %v4092 = vmul.f32 %v732, %v3127
        %v4093 = vmul.f32 %v733, %v3131
        %v4094 = vmul.f32 %v734, %v3138
        %v4095 = vmul.f32 %v735, %v3142
        %v4096 = vmul.f32 %v736, %v3149
        %v4097 = vmul.f32 %v737, %v3153
        %v4098 = vmul.f32 %v738, %v3160
        %v4099 = vmul.f32 %v739, %v3164
        %v4100 = vmul.f32 %v740, %v3171
        %v4101 = vmul.f32 %v741, %v3175
        %v4102 = vmul.f32 %v742, %v3182
        %v4103 = vmul.f32 %v743, %v3186
        %v4104 = vmul.f32 %v744, %v3193
        %v4105 = vmul.f32 %v745, %v3197
        %v4106 = vmul.f32 %v746, %v3204
        %v4107 = vmul.f32 %v747, %v3208
        %v4108 = vmul.f32 %v748, %v3215
        %v4109 = vmul.f32 %v749, %v3219
        %v4110 = vmul.f32 %v750, %v3226
        %v4111 = vmul.f32 %v751, %v3230
        %v4112 = vmul.f32 %v752, %v3237
        %v4113 = vmul.f32 %v753, %v3241
        %v4114 = vmul.f32 %v754, %v3248
        %v4115 = vmul.f32 %v755, %v3252
        %v4116 = vmul.f32 %v756, %v3259
        %v4117 = vmul.f32 %v757, %v3263
        %v4118 = vmul.f32 %v758, %v3270
        %v4119 = vmul.f32 %v759, %v3274
        %v4120 = vmul.f32 %v760, %v3281
        %v4121 = vmul.f32 %v761, %v3285
        %v4122 = vmul.f32 %v762, %v3292
        %v4123 = vmul.f32 %v763, %v3296
        %v4124 = vmul.f32 %v764, %v3303
        %v4125 = vmul.f32 %v765, %v3307
        %v4126 = vmul.f32 %v766, %v3314
        %v4127 = vmul.f32 %v767, %v3318
        %v4128 = vmul.f32 %v768, %v3325
        %v4129 = vmul.f32 %v769, %v3329
        %v4130 = vmul.f32 %v770, %v3336
        %v4131 = vmul.f32 %v771, %v3340
        %v4132 = vmul.f32 %v772, %v3347
        %v4133 = vmul.f32 %v773, %v3351
        %v4134 = vmul.f32 %v774, %v3358
        %v4135 = vmul.f32 %v775, %v3362
        %v4136 = vmul.f32 %v776, %v3369
        %v4137 = vmul.f32 %v777, %v3373
        %v4138 = vmul.f32 %v778, %v3380
        %v4139 = vmul.f32 %v779, %v3384
        %v4140 = vmul.f32 %v780, %v3391
        %v4141 = vmul.f32 %v781, %v3395
        %v4142 = vmul.f32 %v782, %v3402
        %v4143 = vmul.f32 %v783, %v3406
        %v4144 = vmul.f32 %v784, %v3413
        %v4145 = vmul.f32 %v785, %v3417
        %v4146 = vmul.f32 %v786, %v3424
        %v4147 = vmul.f32 %v787, %v3428
        %v4148 = vmul.f32 %v788, %v3435
        %v4149 = vmul.f32 %v789, %v3439
        %v4150 = vmul.f32 %v790, %v3446
        %v4151 = vmul.f32 %v791, %v3450
        %v4152 = vmul.f32 %v792, %v3457
        %v4153 = vmul.f32 %v793, %v3461
        %v4154 = vmul.f32 %v794, %v3468
        %v4155 = vmul.f32 %v795, %v3472
        %v4156 = vmul.f32 %v796, %v3479
        %v4157 = vmul.f32 %v797, %v3483
        %v4158 = vmul.f32 %v798, %v3490
        %v4159 = vmul.f32 %v799, %v3494
        %v4160 = vmul.f32 %v800, %v3501
        %v4161 = vmul.f32 %v801, %v3505
        %v4162 = vmul.f32 %v802, %v3512
        %v4163 = vmul.f32 %v803, %v3516
        %v4164 = vmul.f32 %v804, %v3523
        %v4165 = vmul.f32 %v805, %v3527
        %v4166 = vmul.f32 %v806, %v3534
        %v4167 = vmul.f32 %v807, %v3538
        %v4168 = vmul.f32 %v808, %v3545
        %v4169 = vmul.f32 %v809, %v3549
        %v4170 = vmul.f32 %v810, %v3556
        %v4171 = vmul.f32 %v811, %v3560
        %v4172 = vmul.f32 %v812, %v3567
        %v4173 = vmul.f32 %v813, %v3571
        %v4174 = vmul.f32 %v814, %v3578
        %v4175 = vmul.f32 %v815, %v3582
        %v4176 = vmul.f32 %v816, %v3589
        %v4177 = vmul.f32 %v817, %v3593
        %v4178 = vmul.f32 %v818, %v3600
        %v4179 = vmul.f32 %v819, %v3604
        %v4180 = vmul.f32 %v820, %v3611
        %v4181 = vmul.f32 %v821, %v3615
        %v4182 = vmul.f32 %v822, %v3622
        %v4183 = vmul.f32 %v823, %v3626
        %v4184 = vmul.f32 %v824, %v3633
        %v4185 = vmul.f32 %v825, %v3637
        %v4186 = vmul.f32 %v826, %v3644
        %v4187 = vmul.f32 %v827, %v3648
        %v4188 = vmul.f32 %v828, %v3655
        %v4189 = vmul.f32 %v829, %v3659
        %v4190 = vmul.f32 %v830, %v3666
        %v4191 = vmul.f32 %v831, %v3670
        %v4192 = vmul.f32 %v832, %v3677
        %v4193 = vmul.f32 %v833, %v3681
        %v4194 = vadd.f32 %v3682, %v3683
        %v4195 = vrot.slane %v4194, 4
        %v4196 = vadd.f32 %v4194, %v4195
        %v4197 = vrot.slane %v4196, 2
        %v4198 = vadd.f32 %v4196, %v4197
        %v4199 = vrot.slane %v4198, 1
        %v4200 = vadd.f32 %v4198, %v4199
        %v4201 = vadd.f32 %v3684, %v3685
        %v4202 = vrot.slane %v4201, 4
        %v4203 = vadd.f32 %v4201, %v4202
        %v4204 = vrot.slane %v4203, 2
        %v4205 = vadd.f32 %v4203, %v4204
        %v4206 = vrot.slane %v4205, 1
        %v4207 = vadd.f32 %v4205, %v4206
        %v4208 = vadd.f32 %v3686, %v3687
        %v4209 = vrot.slane %v4208, 4
        %v4210 = vadd.f32 %v4208, %v4209
        %v4211 = vrot.slane %v4210, 2
        %v4212 = vadd.f32 %v4210, %v4211
        %v4213 = vrot.slane %v4212, 1
        %v4214 = vadd.f32 %v4212, %v4213
        %v4215 = vadd.f32 %v3688, %v3689
        %v4216 = vrot.slane %v4215, 4
        %v4217 = vadd.f32 %v4215, %v4216
        %v4218 = vrot.slane %v4217, 2
        %v4219 = vadd.f32 %v4217, %v4218
        %v4220 = vrot.slane %v4219, 1
        %v4221 = vadd.f32 %v4219, %v4220
        %v4222 = vadd.f32 %v3690, %v3691
        %v4223 = vrot.slane %v4222, 4
        %v4224 = vadd.f32 %v4222, %v4223
        %v4225 = vrot.slane %v4224, 2
        %v4226 = vadd.f32 %v4224, %v4225
        %v4227 = vrot.slane %v4226, 1
        %v4228 = vadd.f32 %v4226, %v4227
        %v4229 = vadd.f32 %v3692, %v3693
        %v4230 = vrot.slane %v4229, 4
        %v4231 = vadd.f32 %v4229, %v4230
        %v4232 = vrot.slane %v4231, 2
        %v4233 = vadd.f32 %v4231, %v4232
        %v4234 = vrot.slane %v4233, 1
        %v4235 = vadd.f32 %v4233, %v4234
        %v4236 = vadd.f32 %v3694, %v3695
        %v4237 = vrot.slane %v4236, 4
        %v4238 = vadd.f32 %v4236, %v4237
        %v4239 = vrot.slane %v4238, 2
        %v4240 = vadd.f32 %v4238, %v4239
        %v4241 = vrot.slane %v4240, 1
        %v4242 = vadd.f32 %v4240, %v4241
        %v4243 = vadd.f32 %v3696, %v3697
        %v4244 = vrot.slane %v4243, 4
        %v4245 = vadd.f32 %v4243, %v4244
        %v4246 = vrot.slane %v4245, 2
        %v4247 = vadd.f32 %v4245, %v4246
        %v4248 = vrot.slane %v4247, 1
        %v4249 = vadd.f32 %v4247, %v4248
        %v4250 = vadd.f32 %v3698, %v3699
        %v4251 = vrot.slane %v4250, 4
        %v4252 = vadd.f32 %v4250, %v4251
        %v4253 = vrot.slane %v4252, 2
        %v4254 = vadd.f32 %v4252, %v4253
        %v4255 = vrot.slane %v4254, 1
        %v4256 = vadd.f32 %v4254, %v4255
        %v4257 = vadd.f32 %v3700, %v3701
        %v4258 = vrot.slane %v4257, 4
        %v4259 = vadd.f32 %v4257, %v4258
        %v4260 = vrot.slane %v4259, 2
        %v4261 = vadd.f32 %v4259, %v4260
        %v4262 = vrot.slane %v4261, 1
        %v4263 = vadd.f32 %v4261, %v4262
        %v4264 = vadd.f32 %v3702, %v3703
        %v4265 = vrot.slane %v4264, 4
        %v4266 = vadd.f32 %v4264, %v4265
        %v4267 = vrot.slane %v4266, 2
        %v4268 = vadd.f32 %v4266, %v4267
        %v4269 = vrot.slane %v4268, 1
        %v4270 = vadd.f32 %v4268, %v4269
        %v4271 = vadd.f32 %v3704, %v3705
        %v4272 = vrot.slane %v4271, 4
        %v4273 = vadd.f32 %v4271, %v4272
        %v4274 = vrot.slane %v4273, 2
        %v4275 = vadd.f32 %v4273, %v4274
        %v4276 = vrot.slane %v4275, 1
        %v4277 = vadd.f32 %v4275, %v4276
        %v4278 = vadd.f32 %v3706, %v3707
        %v4279 = vrot.slane %v4278, 4
        %v4280 = vadd.f32 %v4278, %v4279
        %v4281 = vrot.slane %v4280, 2
        %v4282 = vadd.f32 %v4280, %v4281
        %v4283 = vrot.slane %v4282, 1
        %v4284 = vadd.f32 %v4282, %v4283
        %v4285 = vadd.f32 %v3708, %v3709
        %v4286 = vrot.slane %v4285, 4
        %v4287 = vadd.f32 %v4285, %v4286
        %v4288 = vrot.slane %v4287, 2
        %v4289 = vadd.f32 %v4287, %v4288
        %v4290 = vrot.slane %v4289, 1
        %v4291 = vadd.f32 %v4289, %v4290
        %v4292 = vadd.f32 %v3710, %v3711
        %v4293 = vrot.slane %v4292, 4
        %v4294 = vadd.f32 %v4292, %v4293
        %v4295 = vrot.slane %v4294, 2
        %v4296 = vadd.f32 %v4294, %v4295
        %v4297 = vrot.slane %v4296, 1
        %v4298 = vadd.f32 %v4296, %v4297
        %v4299 = vadd.f32 %v3712, %v3713
        %v4300 = vrot.slane %v4299, 4
        %v4301 = vadd.f32 %v4299, %v4300
        %v4302 = vrot.slane %v4301, 2
        %v4303 = vadd.f32 %v4301, %v4302
        %v4304 = vrot.slane %v4303, 1
        %v4305 = vadd.f32 %v4303, %v4304
        %v4306 = vadd.f32 %v3714, %v3715
        %v4307 = vrot.slane %v4306, 4
        %v4308 = vadd.f32 %v4306, %v4307
        %v4309 = vrot.slane %v4308, 2
        %v4310 = vadd.f32 %v4308, %v4309
        %v4311 = vrot.slane %v4310, 1
        %v4312 = vadd.f32 %v4310, %v4311
        %v4313 = vadd.f32 %v3716, %v3717
        %v4314 = vrot.slane %v4313, 4
        %v4315 = vadd.f32 %v4313, %v4314
        %v4316 = vrot.slane %v4315, 2
        %v4317 = vadd.f32 %v4315, %v4316
        %v4318 = vrot.slane %v4317, 1
        %v4319 = vadd.f32 %v4317, %v4318
        %v4320 = vadd.f32 %v3718, %v3719
        %v4321 = vrot.slane %v4320, 4
        %v4322 = vadd.f32 %v4320, %v4321
        %v4323 = vrot.slane %v4322, 2
        %v4324 = vadd.f32 %v4322, %v4323
        %v4325 = vrot.slane %v4324, 1
        %v4326 = vadd.f32 %v4324, %v4325
        %v4327 = vadd.f32 %v3720, %v3721
        %v4328 = vrot.slane %v4327, 4
        %v4329 = vadd.f32 %v4327, %v4328
        %v4330 = vrot.slane %v4329, 2
        %v4331 = vadd.f32 %v4329, %v4330
        %v4332 = vrot.slane %v4331, 1
        %v4333 = vadd.f32 %v4331, %v4332
        %v4334 = vadd.f32 %v3722, %v3723
        %v4335 = vrot.slane %v4334, 4
        %v4336 = vadd.f32 %v4334, %v4335
        %v4337 = vrot.slane %v4336, 2
        %v4338 = vadd.f32 %v4336, %v4337
        %v4339 = vrot.slane %v4338, 1
        %v4340 = vadd.f32 %v4338, %v4339
        %v4341 = vadd.f32 %v3724, %v3725
        %v4342 = vrot.slane %v4341, 4
        %v4343 = vadd.f32 %v4341, %v4342
        %v4344 = vrot.slane %v4343, 2
        %v4345 = vadd.f32 %v4343, %v4344
        %v4346 = vrot.slane %v4345, 1
        %v4347 = vadd.f32 %v4345, %v4346
        %v4348 = vadd.f32 %v3726, %v3727
        %v4349 = vrot.slane %v4348, 4
        %v4350 = vadd.f32 %v4348, %v4349
        %v4351 = vrot.slane %v4350, 2
        %v4352 = vadd.f32 %v4350, %v4351
        %v4353 = vrot.slane %v4352, 1
        %v4354 = vadd.f32 %v4352, %v4353
        %v4355 = vadd.f32 %v3728, %v3729
        %v4356 = vrot.slane %v4355, 4
        %v4357 = vadd.f32 %v4355, %v4356
        %v4358 = vrot.slane %v4357, 2
        %v4359 = vadd.f32 %v4357, %v4358
        %v4360 = vrot.slane %v4359, 1
        %v4361 = vadd.f32 %v4359, %v4360
        %v4362 = vadd.f32 %v3730, %v3731
        %v4363 = vrot.slane %v4362, 4
        %v4364 = vadd.f32 %v4362, %v4363
        %v4365 = vrot.slane %v4364, 2
        %v4366 = vadd.f32 %v4364, %v4365
        %v4367 = vrot.slane %v4366, 1
        %v4368 = vadd.f32 %v4366, %v4367
        %v4369 = vadd.f32 %v3732, %v3733
        %v4370 = vrot.slane %v4369, 4
        %v4371 = vadd.f32 %v4369, %v4370
        %v4372 = vrot.slane %v4371, 2
        %v4373 = vadd.f32 %v4371, %v4372
        %v4374 = vrot.slane %v4373, 1
        %v4375 = vadd.f32 %v4373, %v4374
        %v4376 = vadd.f32 %v3734, %v3735
        %v4377 = vrot.slane %v4376, 4
        %v4378 = vadd.f32 %v4376, %v4377
        %v4379 = vrot.slane %v4378, 2
        %v4380 = vadd.f32 %v4378, %v4379
        %v4381 = vrot.slane %v4380, 1
        %v4382 = vadd.f32 %v4380, %v4381
        %v4383 = vadd.f32 %v3736, %v3737
        %v4384 = vrot.slane %v4383, 4
        %v4385 = vadd.f32 %v4383, %v4384
        %v4386 = vrot.slane %v4385, 2
        %v4387 = vadd.f32 %v4385, %v4386
        %v4388 = vrot.slane %v4387, 1
        %v4389 = vadd.f32 %v4387, %v4388
        %v4390 = vadd.f32 %v3738, %v3739
        %v4391 = vrot.slane %v4390, 4
        %v4392 = vadd.f32 %v4390, %v4391
        %v4393 = vrot.slane %v4392, 2
        %v4394 = vadd.f32 %v4392, %v4393
        %v4395 = vrot.slane %v4394, 1
        %v4396 = vadd.f32 %v4394, %v4395
        %v4397 = vadd.f32 %v3740, %v3741
        %v4398 = vrot.slane %v4397, 4
        %v4399 = vadd.f32 %v4397, %v4398
        %v4400 = vrot.slane %v4399, 2
        %v4401 = vadd.f32 %v4399, %v4400
        %v4402 = vrot.slane %v4401, 1
        %v4403 = vadd.f32 %v4401, %v4402
        %v4404 = vadd.f32 %v3742, %v3743
        %v4405 = vrot.slane %v4404, 4
        %v4406 = vadd.f32 %v4404, %v4405
        %v4407 = vrot.slane %v4406, 2
        %v4408 = vadd.f32 %v4406, %v4407
        %v4409 = vrot.slane %v4408, 1
        %v4410 = vadd.f32 %v4408, %v4409
        %v4411 = vadd.f32 %v3744, %v3745
        %v4412 = vrot.slane %v4411, 4
        %v4413 = vadd.f32 %v4411, %v4412
        %v4414 = vrot.slane %v4413, 2
        %v4415 = vadd.f32 %v4413, %v4414
        %v4416 = vrot.slane %v4415, 1
        %v4417 = vadd.f32 %v4415, %v4416
        %v4418 = vadd.f32 %v3746, %v3747
        %v4419 = vrot.slane %v4418, 4
        %v4420 = vadd.f32 %v4418, %v4419
        %v4421 = vrot.slane %v4420, 2
        %v4422 = vadd.f32 %v4420, %v4421
        %v4423 = vrot.slane %v4422, 1
        %v4424 = vadd.f32 %v4422, %v4423
        %v4425 = vadd.f32 %v3748, %v3749
        %v4426 = vrot.slane %v4425, 4
        %v4427 = vadd.f32 %v4425, %v4426
        %v4428 = vrot.slane %v4427, 2
        %v4429 = vadd.f32 %v4427, %v4428
        %v4430 = vrot.slane %v4429, 1
        %v4431 = vadd.f32 %v4429, %v4430
        %v4432 = vadd.f32 %v3750, %v3751
        %v4433 = vrot.slane %v4432, 4
        %v4434 = vadd.f32 %v4432, %v4433
        %v4435 = vrot.slane %v4434, 2
        %v4436 = vadd.f32 %v4434, %v4435
        %v4437 = vrot.slane %v4436, 1
        %v4438 = vadd.f32 %v4436, %v4437
        %v4439 = vadd.f32 %v3752, %v3753
        %v4440 = vrot.slane %v4439, 4
        %v4441 = vadd.f32 %v4439, %v4440
        %v4442 = vrot.slane %v4441, 2
        %v4443 = vadd.f32 %v4441, %v4442
        %v4444 = vrot.slane %v4443, 1
        %v4445 = vadd.f32 %v4443, %v4444
        %v4446 = vadd.f32 %v3754, %v3755
        %v4447 = vrot.slane %v4446, 4
        %v4448 = vadd.f32 %v4446, %v4447
        %v4449 = vrot.slane %v4448, 2
        %v4450 = vadd.f32 %v4448, %v4449
        %v4451 = vrot.slane %v4450, 1
        %v4452 = vadd.f32 %v4450, %v4451
        %v4453 = vadd.f32 %v3756, %v3757
        %v4454 = vrot.slane %v4453, 4
        %v4455 = vadd.f32 %v4453, %v4454
        %v4456 = vrot.slane %v4455, 2
        %v4457 = vadd.f32 %v4455, %v4456
        %v4458 = vrot.slane %v4457, 1
        %v4459 = vadd.f32 %v4457, %v4458
        %v4460 = vadd.f32 %v3758, %v3759
        %v4461 = vrot.slane %v4460, 4
        %v4462 = vadd.f32 %v4460, %v4461
        %v4463 = vrot.slane %v4462, 2
        %v4464 = vadd.f32 %v4462, %v4463
        %v4465 = vrot.slane %v4464, 1
        %v4466 = vadd.f32 %v4464, %v4465
        %v4467 = vadd.f32 %v3760, %v3761
        %v4468 = vrot.slane %v4467, 4
        %v4469 = vadd.f32 %v4467, %v4468
        %v4470 = vrot.slane %v4469, 2
        %v4471 = vadd.f32 %v4469, %v4470
        %v4472 = vrot.slane %v4471, 1
        %v4473 = vadd.f32 %v4471, %v4472
        %v4474 = vadd.f32 %v3762, %v3763
        %v4475 = vrot.slane %v4474, 4
        %v4476 = vadd.f32 %v4474, %v4475
        %v4477 = vrot.slane %v4476, 2
        %v4478 = vadd.f32 %v4476, %v4477
        %v4479 = vrot.slane %v4478, 1
        %v4480 = vadd.f32 %v4478, %v4479
        %v4481 = vadd.f32 %v3764, %v3765
        %v4482 = vrot.slane %v4481, 4
        %v4483 = vadd.f32 %v4481, %v4482
        %v4484 = vrot.slane %v4483, 2
        %v4485 = vadd.f32 %v4483, %v4484
        %v4486 = vrot.slane %v4485, 1
        %v4487 = vadd.f32 %v4485, %v4486
        %v4488 = vadd.f32 %v3766, %v3767
        %v4489 = vrot.slane %v4488, 4
        %v4490 = vadd.f32 %v4488, %v4489
        %v4491 = vrot.slane %v4490, 2
        %v4492 = vadd.f32 %v4490, %v4491
        %v4493 = vrot.slane %v4492, 1
        %v4494 = vadd.f32 %v4492, %v4493
        %v4495 = vadd.f32 %v3768, %v3769
        %v4496 = vrot.slane %v4495, 4
        %v4497 = vadd.f32 %v4495, %v4496
        %v4498 = vrot.slane %v4497, 2
        %v4499 = vadd.f32 %v4497, %v4498
        %v4500 = vrot.slane %v4499, 1
        %v4501 = vadd.f32 %v4499, %v4500
        %v4502 = vadd.f32 %v3770, %v3771
        %v4503 = vrot.slane %v4502, 4
        %v4504 = vadd.f32 %v4502, %v4503
        %v4505 = vrot.slane %v4504, 2
        %v4506 = vadd.f32 %v4504, %v4505
        %v4507 = vrot.slane %v4506, 1
        %v4508 = vadd.f32 %v4506, %v4507
        %v4509 = vadd.f32 %v3772, %v3773
        %v4510 = vrot.slane %v4509, 4
        %v4511 = vadd.f32 %v4509, %v4510
        %v4512 = vrot.slane %v4511, 2
        %v4513 = vadd.f32 %v4511, %v4512
        %v4514 = vrot.slane %v4513, 1
        %v4515 = vadd.f32 %v4513, %v4514
        %v4516 = vadd.f32 %v3774, %v3775
        %v4517 = vrot.slane %v4516, 4
        %v4518 = vadd.f32 %v4516, %v4517
        %v4519 = vrot.slane %v4518, 2
        %v4520 = vadd.f32 %v4518, %v4519
        %v4521 = vrot.slane %v4520, 1
        %v4522 = vadd.f32 %v4520, %v4521
        %v4523 = vadd.f32 %v3776, %v3777
        %v4524 = vrot.slane %v4523, 4
        %v4525 = vadd.f32 %v4523, %v4524
        %v4526 = vrot.slane %v4525, 2
        %v4527 = vadd.f32 %v4525, %v4526
        %v4528 = vrot.slane %v4527, 1
        %v4529 = vadd.f32 %v4527, %v4528
        %v4530 = vadd.f32 %v3778, %v3779
        %v4531 = vrot.slane %v4530, 4
        %v4532 = vadd.f32 %v4530, %v4531
        %v4533 = vrot.slane %v4532, 2
        %v4534 = vadd.f32 %v4532, %v4533
        %v4535 = vrot.slane %v4534, 1
        %v4536 = vadd.f32 %v4534, %v4535
        %v4537 = vadd.f32 %v3780, %v3781
        %v4538 = vrot.slane %v4537, 4
        %v4539 = vadd.f32 %v4537, %v4538
        %v4540 = vrot.slane %v4539, 2
        %v4541 = vadd.f32 %v4539, %v4540
        %v4542 = vrot.slane %v4541, 1
        %v4543 = vadd.f32 %v4541, %v4542
        %v4544 = vadd.f32 %v3782, %v3783
        %v4545 = vrot.slane %v4544, 4
        %v4546 = vadd.f32 %v4544, %v4545
        %v4547 = vrot.slane %v4546, 2
        %v4548 = vadd.f32 %v4546, %v4547
        %v4549 = vrot.slane %v4548, 1
        %v4550 = vadd.f32 %v4548, %v4549
        %v4551 = vadd.f32 %v3784, %v3785
        %v4552 = vrot.slane %v4551, 4
        %v4553 = vadd.f32 %v4551, %v4552
        %v4554 = vrot.slane %v4553, 2
        %v4555 = vadd.f32 %v4553, %v4554
        %v4556 = vrot.slane %v4555, 1
        %v4557 = vadd.f32 %v4555, %v4556
        %v4558 = vadd.f32 %v3786, %v3787
        %v4559 = vrot.slane %v4558, 4
        %v4560 = vadd.f32 %v4558, %v4559
        %v4561 = vrot.slane %v4560, 2
        %v4562 = vadd.f32 %v4560, %v4561
        %v4563 = vrot.slane %v4562, 1
        %v4564 = vadd.f32 %v4562, %v4563
        %v4565 = vadd.f32 %v3788, %v3789
        %v4566 = vrot.slane %v4565, 4
        %v4567 = vadd.f32 %v4565, %v4566
        %v4568 = vrot.slane %v4567, 2
        %v4569 = vadd.f32 %v4567, %v4568
        %v4570 = vrot.slane %v4569, 1
        %v4571 = vadd.f32 %v4569, %v4570
        %v4572 = vadd.f32 %v3790, %v3791
        %v4573 = vrot.slane %v4572, 4
        %v4574 = vadd.f32 %v4572, %v4573
        %v4575 = vrot.slane %v4574, 2
        %v4576 = vadd.f32 %v4574, %v4575
        %v4577 = vrot.slane %v4576, 1
        %v4578 = vadd.f32 %v4576, %v4577
        %v4579 = vadd.f32 %v3792, %v3793
        %v4580 = vrot.slane %v4579, 4
        %v4581 = vadd.f32 %v4579, %v4580
        %v4582 = vrot.slane %v4581, 2
        %v4583 = vadd.f32 %v4581, %v4582
        %v4584 = vrot.slane %v4583, 1
        %v4585 = vadd.f32 %v4583, %v4584
        %v4586 = vadd.f32 %v3794, %v3795
        %v4587 = vrot.slane %v4586, 4
        %v4588 = vadd.f32 %v4586, %v4587
        %v4589 = vrot.slane %v4588, 2
        %v4590 = vadd.f32 %v4588, %v4589
        %v4591 = vrot.slane %v4590, 1
        %v4592 = vadd.f32 %v4590, %v4591
        %v4593 = vadd.f32 %v3796, %v3797
        %v4594 = vrot.slane %v4593, 4
        %v4595 = vadd.f32 %v4593, %v4594
        %v4596 = vrot.slane %v4595, 2
        %v4597 = vadd.f32 %v4595, %v4596
        %v4598 = vrot.slane %v4597, 1
        %v4599 = vadd.f32 %v4597, %v4598
        %v4600 = vadd.f32 %v3798, %v3799
        %v4601 = vrot.slane %v4600, 4
        %v4602 = vadd.f32 %v4600, %v4601
        %v4603 = vrot.slane %v4602, 2
        %v4604 = vadd.f32 %v4602, %v4603
        %v4605 = vrot.slane %v4604, 1
        %v4606 = vadd.f32 %v4604, %v4605
        %v4607 = vadd.f32 %v3800, %v3801
        %v4608 = vrot.slane %v4607, 4
        %v4609 = vadd.f32 %v4607, %v4608
        %v4610 = vrot.slane %v4609, 2
        %v4611 = vadd.f32 %v4609, %v4610
        %v4612 = vrot.slane %v4611, 1
        %v4613 = vadd.f32 %v4611, %v4612
        %v4614 = vadd.f32 %v3802, %v3803
        %v4615 = vrot.slane %v4614, 4
        %v4616 = vadd.f32 %v4614, %v4615
        %v4617 = vrot.slane %v4616, 2
        %v4618 = vadd.f32 %v4616, %v4617
        %v4619 = vrot.slane %v4618, 1
        %v4620 = vadd.f32 %v4618, %v4619
        %v4621 = vadd.f32 %v3804, %v3805
        %v4622 = vrot.slane %v4621, 4
        %v4623 = vadd.f32 %v4621, %v4622
        %v4624 = vrot.slane %v4623, 2
        %v4625 = vadd.f32 %v4623, %v4624
        %v4626 = vrot.slane %v4625, 1
        %v4627 = vadd.f32 %v4625, %v4626
        %v4628 = vadd.f32 %v3806, %v3807
        %v4629 = vrot.slane %v4628, 4
        %v4630 = vadd.f32 %v4628, %v4629
        %v4631 = vrot.slane %v4630, 2
        %v4632 = vadd.f32 %v4630, %v4631
        %v4633 = vrot.slane %v4632, 1
        %v4634 = vadd.f32 %v4632, %v4633
        %v4635 = vadd.f32 %v3808, %v3809
        %v4636 = vrot.slane %v4635, 4
        %v4637 = vadd.f32 %v4635, %v4636
        %v4638 = vrot.slane %v4637, 2
        %v4639 = vadd.f32 %v4637, %v4638
        %v4640 = vrot.slane %v4639, 1
        %v4641 = vadd.f32 %v4639, %v4640
        %v4642 = vadd.f32 %v3810, %v3811
        %v4643 = vrot.slane %v4642, 4
        %v4644 = vadd.f32 %v4642, %v4643
        %v4645 = vrot.slane %v4644, 2
        %v4646 = vadd.f32 %v4644, %v4645
        %v4647 = vrot.slane %v4646, 1
        %v4648 = vadd.f32 %v4646, %v4647
        %v4649 = vadd.f32 %v3812, %v3813
        %v4650 = vrot.slane %v4649, 4
        %v4651 = vadd.f32 %v4649, %v4650
        %v4652 = vrot.slane %v4651, 2
        %v4653 = vadd.f32 %v4651, %v4652
        %v4654 = vrot.slane %v4653, 1
        %v4655 = vadd.f32 %v4653, %v4654
        %v4656 = vadd.f32 %v3814, %v3815
        %v4657 = vrot.slane %v4656, 4
        %v4658 = vadd.f32 %v4656, %v4657
        %v4659 = vrot.slane %v4658, 2
        %v4660 = vadd.f32 %v4658, %v4659
        %v4661 = vrot.slane %v4660, 1
        %v4662 = vadd.f32 %v4660, %v4661
        %v4663 = vadd.f32 %v3816, %v3817
        %v4664 = vrot.slane %v4663, 4
        %v4665 = vadd.f32 %v4663, %v4664
        %v4666 = vrot.slane %v4665, 2
        %v4667 = vadd.f32 %v4665, %v4666
        %v4668 = vrot.slane %v4667, 1
        %v4669 = vadd.f32 %v4667, %v4668
        %v4670 = vadd.f32 %v3818, %v3819
        %v4671 = vrot.slane %v4670, 4
        %v4672 = vadd.f32 %v4670, %v4671
        %v4673 = vrot.slane %v4672, 2
        %v4674 = vadd.f32 %v4672, %v4673
        %v4675 = vrot.slane %v4674, 1
        %v4676 = vadd.f32 %v4674, %v4675
        %v4677 = vadd.f32 %v3820, %v3821
        %v4678 = vrot.slane %v4677, 4
        %v4679 = vadd.f32 %v4677, %v4678
        %v4680 = vrot.slane %v4679, 2
        %v4681 = vadd.f32 %v4679, %v4680
        %v4682 = vrot.slane %v4681, 1
        %v4683 = vadd.f32 %v4681, %v4682
        %v4684 = vadd.f32 %v3822, %v3823
        %v4685 = vrot.slane %v4684, 4
        %v4686 = vadd.f32 %v4684, %v4685
        %v4687 = vrot.slane %v4686, 2
        %v4688 = vadd.f32 %v4686, %v4687
        %v4689 = vrot.slane %v4688, 1
        %v4690 = vadd.f32 %v4688, %v4689
        %v4691 = vadd.f32 %v3824, %v3825
        %v4692 = vrot.slane %v4691, 4
        %v4693 = vadd.f32 %v4691, %v4692
        %v4694 = vrot.slane %v4693, 2
        %v4695 = vadd.f32 %v4693, %v4694
        %v4696 = vrot.slane %v4695, 1
        %v4697 = vadd.f32 %v4695, %v4696
        %v4698 = vadd.f32 %v3826, %v3827
        %v4699 = vrot.slane %v4698, 4
        %v4700 = vadd.f32 %v4698, %v4699
        %v4701 = vrot.slane %v4700, 2
        %v4702 = vadd.f32 %v4700, %v4701
        %v4703 = vrot.slane %v4702, 1
        %v4704 = vadd.f32 %v4702, %v4703
        %v4705 = vadd.f32 %v3828, %v3829
        %v4706 = vrot.slane %v4705, 4
        %v4707 = vadd.f32 %v4705, %v4706
        %v4708 = vrot.slane %v4707, 2
        %v4709 = vadd.f32 %v4707, %v4708
        %v4710 = vrot.slane %v4709, 1
        %v4711 = vadd.f32 %v4709, %v4710
        %v4712 = vadd.f32 %v3830, %v3831
        %v4713 = vrot.slane %v4712, 4
        %v4714 = vadd.f32 %v4712, %v4713
        %v4715 = vrot.slane %v4714, 2
        %v4716 = vadd.f32 %v4714, %v4715
        %v4717 = vrot.slane %v4716, 1
        %v4718 = vadd.f32 %v4716, %v4717
        %v4719 = vadd.f32 %v3832, %v3833
        %v4720 = vrot.slane %v4719, 4
        %v4721 = vadd.f32 %v4719, %v4720
        %v4722 = vrot.slane %v4721, 2
        %v4723 = vadd.f32 %v4721, %v4722
        %v4724 = vrot.slane %v4723, 1
        %v4725 = vadd.f32 %v4723, %v4724
        %v4726 = vadd.f32 %v3834, %v3835
        %v4727 = vrot.slane %v4726, 4
        %v4728 = vadd.f32 %v4726, %v4727
        %v4729 = vrot.slane %v4728, 2
        %v4730 = vadd.f32 %v4728, %v4729
        %v4731 = vrot.slane %v4730, 1
        %v4732 = vadd.f32 %v4730, %v4731
        %v4733 = vadd.f32 %v3836, %v3837
        %v4734 = vrot.slane %v4733, 4
        %v4735 = vadd.f32 %v4733, %v4734
        %v4736 = vrot.slane %v4735, 2
        %v4737 = vadd.f32 %v4735, %v4736
        %v4738 = vrot.slane %v4737, 1
        %v4739 = vadd.f32 %v4737, %v4738
        %v4740 = vadd.f32 %v3838, %v3839
        %v4741 = vrot.slane %v4740, 4
        %v4742 = vadd.f32 %v4740, %v4741
        %v4743 = vrot.slane %v4742, 2
        %v4744 = vadd.f32 %v4742, %v4743
        %v4745 = vrot.slane %v4744, 1
        %v4746 = vadd.f32 %v4744, %v4745
        %v4747 = vadd.f32 %v3840, %v3841
        %v4748 = vrot.slane %v4747, 4
        %v4749 = vadd.f32 %v4747, %v4748
        %v4750 = vrot.slane %v4749, 2
        %v4751 = vadd.f32 %v4749, %v4750
        %v4752 = vrot.slane %v4751, 1
        %v4753 = vadd.f32 %v4751, %v4752
        %v4754 = vadd.f32 %v3842, %v3843
        %v4755 = vrot.slane %v4754, 4
        %v4756 = vadd.f32 %v4754, %v4755
        %v4757 = vrot.slane %v4756, 2
        %v4758 = vadd.f32 %v4756, %v4757
        %v4759 = vrot.slane %v4758, 1
        %v4760 = vadd.f32 %v4758, %v4759
        %v4761 = vadd.f32 %v3844, %v3845
        %v4762 = vrot.slane %v4761, 4
        %v4763 = vadd.f32 %v4761, %v4762
        %v4764 = vrot.slane %v4763, 2
        %v4765 = vadd.f32 %v4763, %v4764
        %v4766 = vrot.slane %v4765, 1
        %v4767 = vadd.f32 %v4765, %v4766
        %v4768 = vadd.f32 %v3846, %v3847
        %v4769 = vrot.slane %v4768, 4
        %v4770 = vadd.f32 %v4768, %v4769
        %v4771 = vrot.slane %v4770, 2
        %v4772 = vadd.f32 %v4770, %v4771
        %v4773 = vrot.slane %v4772, 1
        %v4774 = vadd.f32 %v4772, %v4773
        %v4775 = vadd.f32 %v3848, %v3849
        %v4776 = vrot.slane %v4775, 4
        %v4777 = vadd.f32 %v4775, %v4776
        %v4778 = vrot.slane %v4777, 2
        %v4779 = vadd.f32 %v4777, %v4778
        %v4780 = vrot.slane %v4779, 1
        %v4781 = vadd.f32 %v4779, %v4780
        %v4782 = vadd.f32 %v3850, %v3851
        %v4783 = vrot.slane %v4782, 4
        %v4784 = vadd.f32 %v4782, %v4783
        %v4785 = vrot.slane %v4784, 2
        %v4786 = vadd.f32 %v4784, %v4785
        %v4787 = vrot.slane %v4786, 1
        %v4788 = vadd.f32 %v4786, %v4787
        %v4789 = vadd.f32 %v3852, %v3853
        %v4790 = vrot.slane %v4789, 4
        %v4791 = vadd.f32 %v4789, %v4790
        %v4792 = vrot.slane %v4791, 2
        %v4793 = vadd.f32 %v4791, %v4792
        %v4794 = vrot.slane %v4793, 1
        %v4795 = vadd.f32 %v4793, %v4794
        %v4796 = vadd.f32 %v3854, %v3855
        %v4797 = vrot.slane %v4796, 4
        %v4798 = vadd.f32 %v4796, %v4797
        %v4799 = vrot.slane %v4798, 2
        %v4800 = vadd.f32 %v4798, %v4799
        %v4801 = vrot.slane %v4800, 1
        %v4802 = vadd.f32 %v4800, %v4801
        %v4803 = vadd.f32 %v3856, %v3857
        %v4804 = vrot.slane %v4803, 4
        %v4805 = vadd.f32 %v4803, %v4804
        %v4806 = vrot.slane %v4805, 2
        %v4807 = vadd.f32 %v4805, %v4806
        %v4808 = vrot.slane %v4807, 1
        %v4809 = vadd.f32 %v4807, %v4808
        %v4810 = vadd.f32 %v3858, %v3859
        %v4811 = vrot.slane %v4810, 4
        %v4812 = vadd.f32 %v4810, %v4811
        %v4813 = vrot.slane %v4812, 2
        %v4814 = vadd.f32 %v4812, %v4813
        %v4815 = vrot.slane %v4814, 1
        %v4816 = vadd.f32 %v4814, %v4815
        %v4817 = vadd.f32 %v3860, %v3861
        %v4818 = vrot.slane %v4817, 4
        %v4819 = vadd.f32 %v4817, %v4818
        %v4820 = vrot.slane %v4819, 2
        %v4821 = vadd.f32 %v4819, %v4820
        %v4822 = vrot.slane %v4821, 1
        %v4823 = vadd.f32 %v4821, %v4822
        %v4824 = vadd.f32 %v3862, %v3863
        %v4825 = vrot.slane %v4824, 4
        %v4826 = vadd.f32 %v4824, %v4825
        %v4827 = vrot.slane %v4826, 2
        %v4828 = vadd.f32 %v4826, %v4827
        %v4829 = vrot.slane %v4828, 1
        %v4830 = vadd.f32 %v4828, %v4829
        %v4831 = vadd.f32 %v3864, %v3865
        %v4832 = vrot.slane %v4831, 4
        %v4833 = vadd.f32 %v4831, %v4832
        %v4834 = vrot.slane %v4833, 2
        %v4835 = vadd.f32 %v4833, %v4834
        %v4836 = vrot.slane %v4835, 1
        %v4837 = vadd.f32 %v4835, %v4836
        %v4838 = vadd.f32 %v3866, %v3867
        %v4839 = vrot.slane %v4838, 4
        %v4840 = vadd.f32 %v4838, %v4839
        %v4841 = vrot.slane %v4840, 2
        %v4842 = vadd.f32 %v4840, %v4841
        %v4843 = vrot.slane %v4842, 1
        %v4844 = vadd.f32 %v4842, %v4843
        %v4845 = vadd.f32 %v3868, %v3869
        %v4846 = vrot.slane %v4845, 4
        %v4847 = vadd.f32 %v4845, %v4846
        %v4848 = vrot.slane %v4847, 2
        %v4849 = vadd.f32 %v4847, %v4848
        %v4850 = vrot.slane %v4849, 1
        %v4851 = vadd.f32 %v4849, %v4850
        %v4852 = vadd.f32 %v3870, %v3871
        %v4853 = vrot.slane %v4852, 4
        %v4854 = vadd.f32 %v4852, %v4853
        %v4855 = vrot.slane %v4854, 2
        %v4856 = vadd.f32 %v4854, %v4855
        %v4857 = vrot.slane %v4856, 1
        %v4858 = vadd.f32 %v4856, %v4857
        %v4859 = vadd.f32 %v3872, %v3873
        %v4860 = vrot.slane %v4859, 4
        %v4861 = vadd.f32 %v4859, %v4860
        %v4862 = vrot.slane %v4861, 2
        %v4863 = vadd.f32 %v4861, %v4862
        %v4864 = vrot.slane %v4863, 1
        %v4865 = vadd.f32 %v4863, %v4864
        %v4866 = vadd.f32 %v3874, %v3875
        %v4867 = vrot.slane %v4866, 4
        %v4868 = vadd.f32 %v4866, %v4867
        %v4869 = vrot.slane %v4868, 2
        %v4870 = vadd.f32 %v4868, %v4869
        %v4871 = vrot.slane %v4870, 1
        %v4872 = vadd.f32 %v4870, %v4871
        %v4873 = vadd.f32 %v3876, %v3877
        %v4874 = vrot.slane %v4873, 4
        %v4875 = vadd.f32 %v4873, %v4874
        %v4876 = vrot.slane %v4875, 2
        %v4877 = vadd.f32 %v4875, %v4876
        %v4878 = vrot.slane %v4877, 1
        %v4879 = vadd.f32 %v4877, %v4878
        %v4880 = vadd.f32 %v3878, %v3879
        %v4881 = vrot.slane %v4880, 4
        %v4882 = vadd.f32 %v4880, %v4881
        %v4883 = vrot.slane %v4882, 2
        %v4884 = vadd.f32 %v4882, %v4883
        %v4885 = vrot.slane %v4884, 1
        %v4886 = vadd.f32 %v4884, %v4885
        %v4887 = vadd.f32 %v3880, %v3881
        %v4888 = vrot.slane %v4887, 4
        %v4889 = vadd.f32 %v4887, %v4888
        %v4890 = vrot.slane %v4889, 2
        %v4891 = vadd.f32 %v4889, %v4890
        %v4892 = vrot.slane %v4891, 1
        %v4893 = vadd.f32 %v4891, %v4892
        %v4894 = vadd.f32 %v3882, %v3883
        %v4895 = vrot.slane %v4894, 4
        %v4896 = vadd.f32 %v4894, %v4895
        %v4897 = vrot.slane %v4896, 2
        %v4898 = vadd.f32 %v4896, %v4897
        %v4899 = vrot.slane %v4898, 1
        %v4900 = vadd.f32 %v4898, %v4899
        %v4901 = vadd.f32 %v3884, %v3885
        %v4902 = vrot.slane %v4901, 4
        %v4903 = vadd.f32 %v4901, %v4902
        %v4904 = vrot.slane %v4903, 2
        %v4905 = vadd.f32 %v4903, %v4904
        %v4906 = vrot.slane %v4905, 1
        %v4907 = vadd.f32 %v4905, %v4906
        %v4908 = vadd.f32 %v3886, %v3887
        %v4909 = vrot.slane %v4908, 4
        %v4910 = vadd.f32 %v4908, %v4909
        %v4911 = vrot.slane %v4910, 2
        %v4912 = vadd.f32 %v4910, %v4911
        %v4913 = vrot.slane %v4912, 1
        %v4914 = vadd.f32 %v4912, %v4913
        %v4915 = vadd.f32 %v3888, %v3889
        %v4916 = vrot.slane %v4915, 4
        %v4917 = vadd.f32 %v4915, %v4916
        %v4918 = vrot.slane %v4917, 2
        %v4919 = vadd.f32 %v4917, %v4918
        %v4920 = vrot.slane %v4919, 1
        %v4921 = vadd.f32 %v4919, %v4920
        %v4922 = vadd.f32 %v3890, %v3891
        %v4923 = vrot.slane %v4922, 4
        %v4924 = vadd.f32 %v4922, %v4923
        %v4925 = vrot.slane %v4924, 2
        %v4926 = vadd.f32 %v4924, %v4925
        %v4927 = vrot.slane %v4926, 1
        %v4928 = vadd.f32 %v4926, %v4927
        %v4929 = vadd.f32 %v3892, %v3893
        %v4930 = vrot.slane %v4929, 4
        %v4931 = vadd.f32 %v4929, %v4930
        %v4932 = vrot.slane %v4931, 2
        %v4933 = vadd.f32 %v4931, %v4932
        %v4934 = vrot.slane %v4933, 1
        %v4935 = vadd.f32 %v4933, %v4934
        %v4936 = vadd.f32 %v3894, %v3895
        %v4937 = vrot.slane %v4936, 4
        %v4938 = vadd.f32 %v4936, %v4937
        %v4939 = vrot.slane %v4938, 2
        %v4940 = vadd.f32 %v4938, %v4939
        %v4941 = vrot.slane %v4940, 1
        %v4942 = vadd.f32 %v4940, %v4941
        %v4943 = vadd.f32 %v3896, %v3897
        %v4944 = vrot.slane %v4943, 4
        %v4945 = vadd.f32 %v4943, %v4944
        %v4946 = vrot.slane %v4945, 2
        %v4947 = vadd.f32 %v4945, %v4946
        %v4948 = vrot.slane %v4947, 1
        %v4949 = vadd.f32 %v4947, %v4948
        %v4950 = vadd.f32 %v3898, %v3899
        %v4951 = vrot.slane %v4950, 4
        %v4952 = vadd.f32 %v4950, %v4951
        %v4953 = vrot.slane %v4952, 2
        %v4954 = vadd.f32 %v4952, %v4953
        %v4955 = vrot.slane %v4954, 1
        %v4956 = vadd.f32 %v4954, %v4955
        %v4957 = vadd.f32 %v3900, %v3901
        %v4958 = vrot.slane %v4957, 4
        %v4959 = vadd.f32 %v4957, %v4958
        %v4960 = vrot.slane %v4959, 2
        %v4961 = vadd.f32 %v4959, %v4960
        %v4962 = vrot.slane %v4961, 1
        %v4963 = vadd.f32 %v4961, %v4962
        %v4964 = vadd.f32 %v3902, %v3903
        %v4965 = vrot.slane %v4964, 4
        %v4966 = vadd.f32 %v4964, %v4965
        %v4967 = vrot.slane %v4966, 2
        %v4968 = vadd.f32 %v4966, %v4967
        %v4969 = vrot.slane %v4968, 1
        %v4970 = vadd.f32 %v4968, %v4969
        %v4971 = vadd.f32 %v3904, %v3905
        %v4972 = vrot.slane %v4971, 4
        %v4973 = vadd.f32 %v4971, %v4972
        %v4974 = vrot.slane %v4973, 2
        %v4975 = vadd.f32 %v4973, %v4974
        %v4976 = vrot.slane %v4975, 1
        %v4977 = vadd.f32 %v4975, %v4976
        %v4978 = vadd.f32 %v3906, %v3907
        %v4979 = vrot.slane %v4978, 4
        %v4980 = vadd.f32 %v4978, %v4979
        %v4981 = vrot.slane %v4980, 2
        %v4982 = vadd.f32 %v4980, %v4981
        %v4983 = vrot.slane %v4982, 1
        %v4984 = vadd.f32 %v4982, %v4983
        %v4985 = vadd.f32 %v3908, %v3909
        %v4986 = vrot.slane %v4985, 4
        %v4987 = vadd.f32 %v4985, %v4986
        %v4988 = vrot.slane %v4987, 2
        %v4989 = vadd.f32 %v4987, %v4988
        %v4990 = vrot.slane %v4989, 1
        %v4991 = vadd.f32 %v4989, %v4990
        %v4992 = vadd.f32 %v3910, %v3911
        %v4993 = vrot.slane %v4992, 4
        %v4994 = vadd.f32 %v4992, %v4993
        %v4995 = vrot.slane %v4994, 2
        %v4996 = vadd.f32 %v4994, %v4995
        %v4997 = vrot.slane %v4996, 1
        %v4998 = vadd.f32 %v4996, %v4997
        %v4999 = vadd.f32 %v3912, %v3913
        %v5000 = vrot.slane %v4999, 4
        %v5001 = vadd.f32 %v4999, %v5000
        %v5002 = vrot.slane %v5001, 2
        %v5003 = vadd.f32 %v5001, %v5002
        %v5004 = vrot.slane %v5003, 1
        %v5005 = vadd.f32 %v5003, %v5004
        %v5006 = vadd.f32 %v3914, %v3915
        %v5007 = vrot.slane %v5006, 4
        %v5008 = vadd.f32 %v5006, %v5007
        %v5009 = vrot.slane %v5008, 2
        %v5010 = vadd.f32 %v5008, %v5009
        %v5011 = vrot.slane %v5010, 1
        %v5012 = vadd.f32 %v5010, %v5011
        %v5013 = vadd.f32 %v3916, %v3917
        %v5014 = vrot.slane %v5013, 4
        %v5015 = vadd.f32 %v5013, %v5014
        %v5016 = vrot.slane %v5015, 2
        %v5017 = vadd.f32 %v5015, %v5016
        %v5018 = vrot.slane %v5017, 1
        %v5019 = vadd.f32 %v5017, %v5018
        %v5020 = vadd.f32 %v3918, %v3919
        %v5021 = vrot.slane %v5020, 4
        %v5022 = vadd.f32 %v5020, %v5021
        %v5023 = vrot.slane %v5022, 2
        %v5024 = vadd.f32 %v5022, %v5023
        %v5025 = vrot.slane %v5024, 1
        %v5026 = vadd.f32 %v5024, %v5025
        %v5027 = vadd.f32 %v3920, %v3921
        %v5028 = vrot.slane %v5027, 4
        %v5029 = vadd.f32 %v5027, %v5028
        %v5030 = vrot.slane %v5029, 2
        %v5031 = vadd.f32 %v5029, %v5030
        %v5032 = vrot.slane %v5031, 1
        %v5033 = vadd.f32 %v5031, %v5032
        %v5034 = vadd.f32 %v3922, %v3923
        %v5035 = vrot.slane %v5034, 4
        %v5036 = vadd.f32 %v5034, %v5035
        %v5037 = vrot.slane %v5036, 2
        %v5038 = vadd.f32 %v5036, %v5037
        %v5039 = vrot.slane %v5038, 1
        %v5040 = vadd.f32 %v5038, %v5039
        %v5041 = vadd.f32 %v3924, %v3925
        %v5042 = vrot.slane %v5041, 4
        %v5043 = vadd.f32 %v5041, %v5042
        %v5044 = vrot.slane %v5043, 2
        %v5045 = vadd.f32 %v5043, %v5044
        %v5046 = vrot.slane %v5045, 1
        %v5047 = vadd.f32 %v5045, %v5046
        %v5048 = vadd.f32 %v3926, %v3927
        %v5049 = vrot.slane %v5048, 4
        %v5050 = vadd.f32 %v5048, %v5049
        %v5051 = vrot.slane %v5050, 2
        %v5052 = vadd.f32 %v5050, %v5051
        %v5053 = vrot.slane %v5052, 1
        %v5054 = vadd.f32 %v5052, %v5053
        %v5055 = vadd.f32 %v3928, %v3929
        %v5056 = vrot.slane %v5055, 4
        %v5057 = vadd.f32 %v5055, %v5056
        %v5058 = vrot.slane %v5057, 2
        %v5059 = vadd.f32 %v5057, %v5058
        %v5060 = vrot.slane %v5059, 1
        %v5061 = vadd.f32 %v5059, %v5060
        %v5062 = vadd.f32 %v3930, %v3931
        %v5063 = vrot.slane %v5062, 4
        %v5064 = vadd.f32 %v5062, %v5063
        %v5065 = vrot.slane %v5064, 2
        %v5066 = vadd.f32 %v5064, %v5065
        %v5067 = vrot.slane %v5066, 1
        %v5068 = vadd.f32 %v5066, %v5067
        %v5069 = vadd.f32 %v3932, %v3933
        %v5070 = vrot.slane %v5069, 4
        %v5071 = vadd.f32 %v5069, %v5070
        %v5072 = vrot.slane %v5071, 2
        %v5073 = vadd.f32 %v5071, %v5072
        %v5074 = vrot.slane %v5073, 1
        %v5075 = vadd.f32 %v5073, %v5074
        %v5076 = vadd.f32 %v3934, %v3935
        %v5077 = vrot.slane %v5076, 4
        %v5078 = vadd.f32 %v5076, %v5077
        %v5079 = vrot.slane %v5078, 2
        %v5080 = vadd.f32 %v5078, %v5079
        %v5081 = vrot.slane %v5080, 1
        %v5082 = vadd.f32 %v5080, %v5081
        %v5083 = vadd.f32 %v3936, %v3937
        %v5084 = vrot.slane %v5083, 4
        %v5085 = vadd.f32 %v5083, %v5084
        %v5086 = vrot.slane %v5085, 2
        %v5087 = vadd.f32 %v5085, %v5086
        %v5088 = vrot.slane %v5087, 1
        %v5089 = vadd.f32 %v5087, %v5088
        %v5090 = vadd.f32 %v3938, %v3939
        %v5091 = vrot.slane %v5090, 4
        %v5092 = vadd.f32 %v5090, %v5091
        %v5093 = vrot.slane %v5092, 2
        %v5094 = vadd.f32 %v5092, %v5093
        %v5095 = vrot.slane %v5094, 1
        %v5096 = vadd.f32 %v5094, %v5095
        %v5097 = vadd.f32 %v3940, %v3941
        %v5098 = vrot.slane %v5097, 4
        %v5099 = vadd.f32 %v5097, %v5098
        %v5100 = vrot.slane %v5099, 2
        %v5101 = vadd.f32 %v5099, %v5100
        %v5102 = vrot.slane %v5101, 1
        %v5103 = vadd.f32 %v5101, %v5102
        %v5104 = vadd.f32 %v3942, %v3943
        %v5105 = vrot.slane %v5104, 4
        %v5106 = vadd.f32 %v5104, %v5105
        %v5107 = vrot.slane %v5106, 2
        %v5108 = vadd.f32 %v5106, %v5107
        %v5109 = vrot.slane %v5108, 1
        %v5110 = vadd.f32 %v5108, %v5109
        %v5111 = vadd.f32 %v3944, %v3945
        %v5112 = vrot.slane %v5111, 4
        %v5113 = vadd.f32 %v5111, %v5112
        %v5114 = vrot.slane %v5113, 2
        %v5115 = vadd.f32 %v5113, %v5114
        %v5116 = vrot.slane %v5115, 1
        %v5117 = vadd.f32 %v5115, %v5116
        %v5118 = vadd.f32 %v3946, %v3947
        %v5119 = vrot.slane %v5118, 4
        %v5120 = vadd.f32 %v5118, %v5119
        %v5121 = vrot.slane %v5120, 2
        %v5122 = vadd.f32 %v5120, %v5121
        %v5123 = vrot.slane %v5122, 1
        %v5124 = vadd.f32 %v5122, %v5123
        %v5125 = vadd.f32 %v3948, %v3949
        %v5126 = vrot.slane %v5125, 4
        %v5127 = vadd.f32 %v5125, %v5126
        %v5128 = vrot.slane %v5127, 2
        %v5129 = vadd.f32 %v5127, %v5128
        %v5130 = vrot.slane %v5129, 1
        %v5131 = vadd.f32 %v5129, %v5130
        %v5132 = vadd.f32 %v3950, %v3951
        %v5133 = vrot.slane %v5132, 4
        %v5134 = vadd.f32 %v5132, %v5133
        %v5135 = vrot.slane %v5134, 2
        %v5136 = vadd.f32 %v5134, %v5135
        %v5137 = vrot.slane %v5136, 1
        %v5138 = vadd.f32 %v5136, %v5137
        %v5139 = vadd.f32 %v3952, %v3953
        %v5140 = vrot.slane %v5139, 4
        %v5141 = vadd.f32 %v5139, %v5140
        %v5142 = vrot.slane %v5141, 2
        %v5143 = vadd.f32 %v5141, %v5142
        %v5144 = vrot.slane %v5143, 1
        %v5145 = vadd.f32 %v5143, %v5144
        %v5146 = vadd.f32 %v3954, %v3955
        %v5147 = vrot.slane %v5146, 4
        %v5148 = vadd.f32 %v5146, %v5147
        %v5149 = vrot.slane %v5148, 2
        %v5150 = vadd.f32 %v5148, %v5149
        %v5151 = vrot.slane %v5150, 1
        %v5152 = vadd.f32 %v5150, %v5151
        %v5153 = vadd.f32 %v3956, %v3957
        %v5154 = vrot.slane %v5153, 4
        %v5155 = vadd.f32 %v5153, %v5154
        %v5156 = vrot.slane %v5155, 2
        %v5157 = vadd.f32 %v5155, %v5156
        %v5158 = vrot.slane %v5157, 1
        %v5159 = vadd.f32 %v5157, %v5158
        %v5160 = vadd.f32 %v3958, %v3959
        %v5161 = vrot.slane %v5160, 4
        %v5162 = vadd.f32 %v5160, %v5161
        %v5163 = vrot.slane %v5162, 2
        %v5164 = vadd.f32 %v5162, %v5163
        %v5165 = vrot.slane %v5164, 1
        %v5166 = vadd.f32 %v5164, %v5165
        %v5167 = vadd.f32 %v3960, %v3961
        %v5168 = vrot.slane %v5167, 4
        %v5169 = vadd.f32 %v5167, %v5168
        %v5170 = vrot.slane %v5169, 2
        %v5171 = vadd.f32 %v5169, %v5170
        %v5172 = vrot.slane %v5171, 1
        %v5173 = vadd.f32 %v5171, %v5172
        %v5174 = vadd.f32 %v3962, %v3963
        %v5175 = vrot.slane %v5174, 4
        %v5176 = vadd.f32 %v5174, %v5175
        %v5177 = vrot.slane %v5176, 2
        %v5178 = vadd.f32 %v5176, %v5177
        %v5179 = vrot.slane %v5178, 1
        %v5180 = vadd.f32 %v5178, %v5179
        %v5181 = vadd.f32 %v3964, %v3965
        %v5182 = vrot.slane %v5181, 4
        %v5183 = vadd.f32 %v5181, %v5182
        %v5184 = vrot.slane %v5183, 2
        %v5185 = vadd.f32 %v5183, %v5184
        %v5186 = vrot.slane %v5185, 1
        %v5187 = vadd.f32 %v5185, %v5186
        %v5188 = vadd.f32 %v3966, %v3967
        %v5189 = vrot.slane %v5188, 4
        %v5190 = vadd.f32 %v5188, %v5189
        %v5191 = vrot.slane %v5190, 2
        %v5192 = vadd.f32 %v5190, %v5191
        %v5193 = vrot.slane %v5192, 1
        %v5194 = vadd.f32 %v5192, %v5193
        %v5195 = vadd.f32 %v3968, %v3969
        %v5196 = vrot.slane %v5195, 4
        %v5197 = vadd.f32 %v5195, %v5196
        %v5198 = vrot.slane %v5197, 2
        %v5199 = vadd.f32 %v5197, %v5198
        %v5200 = vrot.slane %v5199, 1
        %v5201 = vadd.f32 %v5199, %v5200
        %v5202 = vadd.f32 %v3970, %v3971
        %v5203 = vrot.slane %v5202, 4
        %v5204 = vadd.f32 %v5202, %v5203
        %v5205 = vrot.slane %v5204, 2
        %v5206 = vadd.f32 %v5204, %v5205
        %v5207 = vrot.slane %v5206, 1
        %v5208 = vadd.f32 %v5206, %v5207
        %v5209 = vadd.f32 %v3972, %v3973
        %v5210 = vrot.slane %v5209, 4
        %v5211 = vadd.f32 %v5209, %v5210
        %v5212 = vrot.slane %v5211, 2
        %v5213 = vadd.f32 %v5211, %v5212
        %v5214 = vrot.slane %v5213, 1
        %v5215 = vadd.f32 %v5213, %v5214
        %v5216 = vadd.f32 %v3974, %v3975
        %v5217 = vrot.slane %v5216, 4
        %v5218 = vadd.f32 %v5216, %v5217
        %v5219 = vrot.slane %v5218, 2
        %v5220 = vadd.f32 %v5218, %v5219
        %v5221 = vrot.slane %v5220, 1
        %v5222 = vadd.f32 %v5220, %v5221
        %v5223 = vadd.f32 %v3976, %v3977
        %v5224 = vrot.slane %v5223, 4
        %v5225 = vadd.f32 %v5223, %v5224
        %v5226 = vrot.slane %v5225, 2
        %v5227 = vadd.f32 %v5225, %v5226
        %v5228 = vrot.slane %v5227, 1
        %v5229 = vadd.f32 %v5227, %v5228
        %v5230 = vadd.f32 %v3978, %v3979
        %v5231 = vrot.slane %v5230, 4
        %v5232 = vadd.f32 %v5230, %v5231
        %v5233 = vrot.slane %v5232, 2
        %v5234 = vadd.f32 %v5232, %v5233
        %v5235 = vrot.slane %v5234, 1
        %v5236 = vadd.f32 %v5234, %v5235
        %v5237 = vadd.f32 %v3980, %v3981
        %v5238 = vrot.slane %v5237, 4
        %v5239 = vadd.f32 %v5237, %v5238
        %v5240 = vrot.slane %v5239, 2
        %v5241 = vadd.f32 %v5239, %v5240
        %v5242 = vrot.slane %v5241, 1
        %v5243 = vadd.f32 %v5241, %v5242
        %v5244 = vadd.f32 %v3982, %v3983
        %v5245 = vrot.slane %v5244, 4
        %v5246 = vadd.f32 %v5244, %v5245
        %v5247 = vrot.slane %v5246, 2
        %v5248 = vadd.f32 %v5246, %v5247
        %v5249 = vrot.slane %v5248, 1
        %v5250 = vadd.f32 %v5248, %v5249
        %v5251 = vadd.f32 %v3984, %v3985
        %v5252 = vrot.slane %v5251, 4
        %v5253 = vadd.f32 %v5251, %v5252
        %v5254 = vrot.slane %v5253, 2
        %v5255 = vadd.f32 %v5253, %v5254
        %v5256 = vrot.slane %v5255, 1
        %v5257 = vadd.f32 %v5255, %v5256
        %v5258 = vadd.f32 %v3986, %v3987
        %v5259 = vrot.slane %v5258, 4
        %v5260 = vadd.f32 %v5258, %v5259
        %v5261 = vrot.slane %v5260, 2
        %v5262 = vadd.f32 %v5260, %v5261
        %v5263 = vrot.slane %v5262, 1
        %v5264 = vadd.f32 %v5262, %v5263
        %v5265 = vadd.f32 %v3988, %v3989
        %v5266 = vrot.slane %v5265, 4
        %v5267 = vadd.f32 %v5265, %v5266
        %v5268 = vrot.slane %v5267, 2
        %v5269 = vadd.f32 %v5267, %v5268
        %v5270 = vrot.slane %v5269, 1
        %v5271 = vadd.f32 %v5269, %v5270
        %v5272 = vadd.f32 %v3990, %v3991
        %v5273 = vrot.slane %v5272, 4
        %v5274 = vadd.f32 %v5272, %v5273
        %v5275 = vrot.slane %v5274, 2
        %v5276 = vadd.f32 %v5274, %v5275
        %v5277 = vrot.slane %v5276, 1
        %v5278 = vadd.f32 %v5276, %v5277
        %v5279 = vadd.f32 %v3992, %v3993
        %v5280 = vrot.slane %v5279, 4
        %v5281 = vadd.f32 %v5279, %v5280
        %v5282 = vrot.slane %v5281, 2
        %v5283 = vadd.f32 %v5281, %v5282
        %v5284 = vrot.slane %v5283, 1
        %v5285 = vadd.f32 %v5283, %v5284
        %v5286 = vadd.f32 %v3994, %v3995
        %v5287 = vrot.slane %v5286, 4
        %v5288 = vadd.f32 %v5286, %v5287
        %v5289 = vrot.slane %v5288, 2
        %v5290 = vadd.f32 %v5288, %v5289
        %v5291 = vrot.slane %v5290, 1
        %v5292 = vadd.f32 %v5290, %v5291
        %v5293 = vadd.f32 %v3996, %v3997
        %v5294 = vrot.slane %v5293, 4
        %v5295 = vadd.f32 %v5293, %v5294
        %v5296 = vrot.slane %v5295, 2
        %v5297 = vadd.f32 %v5295, %v5296
        %v5298 = vrot.slane %v5297, 1
        %v5299 = vadd.f32 %v5297, %v5298
        %v5300 = vadd.f32 %v3998, %v3999
        %v5301 = vrot.slane %v5300, 4
        %v5302 = vadd.f32 %v5300, %v5301
        %v5303 = vrot.slane %v5302, 2
        %v5304 = vadd.f32 %v5302, %v5303
        %v5305 = vrot.slane %v5304, 1
        %v5306 = vadd.f32 %v5304, %v5305
        %v5307 = vadd.f32 %v4000, %v4001
        %v5308 = vrot.slane %v5307, 4
        %v5309 = vadd.f32 %v5307, %v5308
        %v5310 = vrot.slane %v5309, 2
        %v5311 = vadd.f32 %v5309, %v5310
        %v5312 = vrot.slane %v5311, 1
        %v5313 = vadd.f32 %v5311, %v5312
        %v5314 = vadd.f32 %v4002, %v4003
        %v5315 = vrot.slane %v5314, 4
        %v5316 = vadd.f32 %v5314, %v5315
        %v5317 = vrot.slane %v5316, 2
        %v5318 = vadd.f32 %v5316, %v5317
        %v5319 = vrot.slane %v5318, 1
        %v5320 = vadd.f32 %v5318, %v5319
        %v5321 = vadd.f32 %v4004, %v4005
        %v5322 = vrot.slane %v5321, 4
        %v5323 = vadd.f32 %v5321, %v5322
        %v5324 = vrot.slane %v5323, 2
        %v5325 = vadd.f32 %v5323, %v5324
        %v5326 = vrot.slane %v5325, 1
        %v5327 = vadd.f32 %v5325, %v5326
        %v5328 = vadd.f32 %v4006, %v4007
        %v5329 = vrot.slane %v5328, 4
        %v5330 = vadd.f32 %v5328, %v5329
        %v5331 = vrot.slane %v5330, 2
        %v5332 = vadd.f32 %v5330, %v5331
        %v5333 = vrot.slane %v5332, 1
        %v5334 = vadd.f32 %v5332, %v5333
        %v5335 = vadd.f32 %v4008, %v4009
        %v5336 = vrot.slane %v5335, 4
        %v5337 = vadd.f32 %v5335, %v5336
        %v5338 = vrot.slane %v5337, 2
        %v5339 = vadd.f32 %v5337, %v5338
        %v5340 = vrot.slane %v5339, 1
        %v5341 = vadd.f32 %v5339, %v5340
        %v5342 = vadd.f32 %v4010, %v4011
        %v5343 = vrot.slane %v5342, 4
        %v5344 = vadd.f32 %v5342, %v5343
        %v5345 = vrot.slane %v5344, 2
        %v5346 = vadd.f32 %v5344, %v5345
        %v5347 = vrot.slane %v5346, 1
        %v5348 = vadd.f32 %v5346, %v5347
        %v5349 = vadd.f32 %v4012, %v4013
        %v5350 = vrot.slane %v5349, 4
        %v5351 = vadd.f32 %v5349, %v5350
        %v5352 = vrot.slane %v5351, 2
        %v5353 = vadd.f32 %v5351, %v5352
        %v5354 = vrot.slane %v5353, 1
        %v5355 = vadd.f32 %v5353, %v5354
        %v5356 = vadd.f32 %v4014, %v4015
        %v5357 = vrot.slane %v5356, 4
        %v5358 = vadd.f32 %v5356, %v5357
        %v5359 = vrot.slane %v5358, 2
        %v5360 = vadd.f32 %v5358, %v5359
        %v5361 = vrot.slane %v5360, 1
        %v5362 = vadd.f32 %v5360, %v5361
        %v5363 = vadd.f32 %v4016, %v4017
        %v5364 = vrot.slane %v5363, 4
        %v5365 = vadd.f32 %v5363, %v5364
        %v5366 = vrot.slane %v5365, 2
        %v5367 = vadd.f32 %v5365, %v5366
        %v5368 = vrot.slane %v5367, 1
        %v5369 = vadd.f32 %v5367, %v5368
        %v5370 = vadd.f32 %v4018, %v4019
        %v5371 = vrot.slane %v5370, 4
        %v5372 = vadd.f32 %v5370, %v5371
        %v5373 = vrot.slane %v5372, 2
        %v5374 = vadd.f32 %v5372, %v5373
        %v5375 = vrot.slane %v5374, 1
        %v5376 = vadd.f32 %v5374, %v5375
        %v5377 = vadd.f32 %v4020, %v4021
        %v5378 = vrot.slane %v5377, 4
        %v5379 = vadd.f32 %v5377, %v5378
        %v5380 = vrot.slane %v5379, 2
        %v5381 = vadd.f32 %v5379, %v5380
        %v5382 = vrot.slane %v5381, 1
        %v5383 = vadd.f32 %v5381, %v5382
        %v5384 = vadd.f32 %v4022, %v4023
        %v5385 = vrot.slane %v5384, 4
        %v5386 = vadd.f32 %v5384, %v5385
        %v5387 = vrot.slane %v5386, 2
        %v5388 = vadd.f32 %v5386, %v5387
        %v5389 = vrot.slane %v5388, 1
        %v5390 = vadd.f32 %v5388, %v5389
        %v5391 = vadd.f32 %v4024, %v4025
        %v5392 = vrot.slane %v5391, 4
        %v5393 = vadd.f32 %v5391, %v5392
        %v5394 = vrot.slane %v5393, 2
        %v5395 = vadd.f32 %v5393, %v5394
        %v5396 = vrot.slane %v5395, 1
        %v5397 = vadd.f32 %v5395, %v5396
        %v5398 = vadd.f32 %v4026, %v4027
        %v5399 = vrot.slane %v5398, 4
        %v5400 = vadd.f32 %v5398, %v5399
        %v5401 = vrot.slane %v5400, 2
        %v5402 = vadd.f32 %v5400, %v5401
        %v5403 = vrot.slane %v5402, 1
        %v5404 = vadd.f32 %v5402, %v5403
        %v5405 = vadd.f32 %v4028, %v4029
        %v5406 = vrot.slane %v5405, 4
        %v5407 = vadd.f32 %v5405, %v5406
        %v5408 = vrot.slane %v5407, 2
        %v5409 = vadd.f32 %v5407, %v5408
        %v5410 = vrot.slane %v5409, 1
        %v5411 = vadd.f32 %v5409, %v5410
        %v5412 = vadd.f32 %v4030, %v4031
        %v5413 = vrot.slane %v5412, 4
        %v5414 = vadd.f32 %v5412, %v5413
        %v5415 = vrot.slane %v5414, 2
        %v5416 = vadd.f32 %v5414, %v5415
        %v5417 = vrot.slane %v5416, 1
        %v5418 = vadd.f32 %v5416, %v5417
        %v5419 = vadd.f32 %v4032, %v4033
        %v5420 = vrot.slane %v5419, 4
        %v5421 = vadd.f32 %v5419, %v5420
        %v5422 = vrot.slane %v5421, 2
        %v5423 = vadd.f32 %v5421, %v5422
        %v5424 = vrot.slane %v5423, 1
        %v5425 = vadd.f32 %v5423, %v5424
        %v5426 = vadd.f32 %v4034, %v4035
        %v5427 = vrot.slane %v5426, 4
        %v5428 = vadd.f32 %v5426, %v5427
        %v5429 = vrot.slane %v5428, 2
        %v5430 = vadd.f32 %v5428, %v5429
        %v5431 = vrot.slane %v5430, 1
        %v5432 = vadd.f32 %v5430, %v5431
        %v5433 = vadd.f32 %v4036, %v4037
        %v5434 = vrot.slane %v5433, 4
        %v5435 = vadd.f32 %v5433, %v5434
        %v5436 = vrot.slane %v5435, 2
        %v5437 = vadd.f32 %v5435, %v5436
        %v5438 = vrot.slane %v5437, 1
        %v5439 = vadd.f32 %v5437, %v5438
        %v5440 = vadd.f32 %v4038, %v4039
        %v5441 = vrot.slane %v5440, 4
        %v5442 = vadd.f32 %v5440, %v5441
        %v5443 = vrot.slane %v5442, 2
        %v5444 = vadd.f32 %v5442, %v5443
        %v5445 = vrot.slane %v5444, 1
        %v5446 = vadd.f32 %v5444, %v5445
        %v5447 = vadd.f32 %v4040, %v4041
        %v5448 = vrot.slane %v5447, 4
        %v5449 = vadd.f32 %v5447, %v5448
        %v5450 = vrot.slane %v5449, 2
        %v5451 = vadd.f32 %v5449, %v5450
        %v5452 = vrot.slane %v5451, 1
        %v5453 = vadd.f32 %v5451, %v5452
        %v5454 = vadd.f32 %v4042, %v4043
        %v5455 = vrot.slane %v5454, 4
        %v5456 = vadd.f32 %v5454, %v5455
        %v5457 = vrot.slane %v5456, 2
        %v5458 = vadd.f32 %v5456, %v5457
        %v5459 = vrot.slane %v5458, 1
        %v5460 = vadd.f32 %v5458, %v5459
        %v5461 = vadd.f32 %v4044, %v4045
        %v5462 = vrot.slane %v5461, 4
        %v5463 = vadd.f32 %v5461, %v5462
        %v5464 = vrot.slane %v5463, 2
        %v5465 = vadd.f32 %v5463, %v5464
        %v5466 = vrot.slane %v5465, 1
        %v5467 = vadd.f32 %v5465, %v5466
        %v5468 = vadd.f32 %v4046, %v4047
        %v5469 = vrot.slane %v5468, 4
        %v5470 = vadd.f32 %v5468, %v5469
        %v5471 = vrot.slane %v5470, 2
        %v5472 = vadd.f32 %v5470, %v5471
        %v5473 = vrot.slane %v5472, 1
        %v5474 = vadd.f32 %v5472, %v5473
        %v5475 = vadd.f32 %v4048, %v4049
        %v5476 = vrot.slane %v5475, 4
        %v5477 = vadd.f32 %v5475, %v5476
        %v5478 = vrot.slane %v5477, 2
        %v5479 = vadd.f32 %v5477, %v5478
        %v5480 = vrot.slane %v5479, 1
        %v5481 = vadd.f32 %v5479, %v5480
        %v5482 = vadd.f32 %v4050, %v4051
        %v5483 = vrot.slane %v5482, 4
        %v5484 = vadd.f32 %v5482, %v5483
        %v5485 = vrot.slane %v5484, 2
        %v5486 = vadd.f32 %v5484, %v5485
        %v5487 = vrot.slane %v5486, 1
        %v5488 = vadd.f32 %v5486, %v5487
        %v5489 = vadd.f32 %v4052, %v4053
        %v5490 = vrot.slane %v5489, 4
        %v5491 = vadd.f32 %v5489, %v5490
        %v5492 = vrot.slane %v5491, 2
        %v5493 = vadd.f32 %v5491, %v5492
        %v5494 = vrot.slane %v5493, 1
        %v5495 = vadd.f32 %v5493, %v5494
        %v5496 = vadd.f32 %v4054, %v4055
        %v5497 = vrot.slane %v5496, 4
        %v5498 = vadd.f32 %v5496, %v5497
        %v5499 = vrot.slane %v5498, 2
        %v5500 = vadd.f32 %v5498, %v5499
        %v5501 = vrot.slane %v5500, 1
        %v5502 = vadd.f32 %v5500, %v5501
        %v5503 = vadd.f32 %v4056, %v4057
        %v5504 = vrot.slane %v5503, 4
        %v5505 = vadd.f32 %v5503, %v5504
        %v5506 = vrot.slane %v5505, 2
        %v5507 = vadd.f32 %v5505, %v5506
        %v5508 = vrot.slane %v5507, 1
        %v5509 = vadd.f32 %v5507, %v5508
        %v5510 = vadd.f32 %v4058, %v4059
        %v5511 = vrot.slane %v5510, 4
        %v5512 = vadd.f32 %v5510, %v5511
        %v5513 = vrot.slane %v5512, 2
        %v5514 = vadd.f32 %v5512, %v5513
        %v5515 = vrot.slane %v5514, 1
        %v5516 = vadd.f32 %v5514, %v5515
        %v5517 = vadd.f32 %v4060, %v4061
        %v5518 = vrot.slane %v5517, 4
        %v5519 = vadd.f32 %v5517, %v5518
        %v5520 = vrot.slane %v5519, 2
        %v5521 = vadd.f32 %v5519, %v5520
        %v5522 = vrot.slane %v5521, 1
        %v5523 = vadd.f32 %v5521, %v5522
        %v5524 = vadd.f32 %v4062, %v4063
        %v5525 = vrot.slane %v5524, 4
        %v5526 = vadd.f32 %v5524, %v5525
        %v5527 = vrot.slane %v5526, 2
        %v5528 = vadd.f32 %v5526, %v5527
        %v5529 = vrot.slane %v5528, 1
        %v5530 = vadd.f32 %v5528, %v5529
        %v5531 = vadd.f32 %v4064, %v4065
        %v5532 = vrot.slane %v5531, 4
        %v5533 = vadd.f32 %v5531, %v5532
        %v5534 = vrot.slane %v5533, 2
        %v5535 = vadd.f32 %v5533, %v5534
        %v5536 = vrot.slane %v5535, 1
        %v5537 = vadd.f32 %v5535, %v5536
        %v5538 = vadd.f32 %v4066, %v4067
        %v5539 = vrot.slane %v5538, 4
        %v5540 = vadd.f32 %v5538, %v5539
        %v5541 = vrot.slane %v5540, 2
        %v5542 = vadd.f32 %v5540, %v5541
        %v5543 = vrot.slane %v5542, 1
        %v5544 = vadd.f32 %v5542, %v5543
        %v5545 = vadd.f32 %v4068, %v4069
        %v5546 = vrot.slane %v5545, 4
        %v5547 = vadd.f32 %v5545, %v5546
        %v5548 = vrot.slane %v5547, 2
        %v5549 = vadd.f32 %v5547, %v5548
        %v5550 = vrot.slane %v5549, 1
        %v5551 = vadd.f32 %v5549, %v5550
        %v5552 = vadd.f32 %v4070, %v4071
        %v5553 = vrot.slane %v5552, 4
        %v5554 = vadd.f32 %v5552, %v5553
        %v5555 = vrot.slane %v5554, 2
        %v5556 = vadd.f32 %v5554, %v5555
        %v5557 = vrot.slane %v5556, 1
        %v5558 = vadd.f32 %v5556, %v5557
        %v5559 = vadd.f32 %v4072, %v4073
        %v5560 = vrot.slane %v5559, 4
        %v5561 = vadd.f32 %v5559, %v5560
        %v5562 = vrot.slane %v5561, 2
        %v5563 = vadd.f32 %v5561, %v5562
        %v5564 = vrot.slane %v5563, 1
        %v5565 = vadd.f32 %v5563, %v5564
        %v5566 = vadd.f32 %v4074, %v4075
        %v5567 = vrot.slane %v5566, 4
        %v5568 = vadd.f32 %v5566, %v5567
        %v5569 = vrot.slane %v5568, 2
        %v5570 = vadd.f32 %v5568, %v5569
        %v5571 = vrot.slane %v5570, 1
        %v5572 = vadd.f32 %v5570, %v5571
        %v5573 = vadd.f32 %v4076, %v4077
        %v5574 = vrot.slane %v5573, 4
        %v5575 = vadd.f32 %v5573, %v5574
        %v5576 = vrot.slane %v5575, 2
        %v5577 = vadd.f32 %v5575, %v5576
        %v5578 = vrot.slane %v5577, 1
        %v5579 = vadd.f32 %v5577, %v5578
        %v5580 = vadd.f32 %v4078, %v4079
        %v5581 = vrot.slane %v5580, 4
        %v5582 = vadd.f32 %v5580, %v5581
        %v5583 = vrot.slane %v5582, 2
        %v5584 = vadd.f32 %v5582, %v5583
        %v5585 = vrot.slane %v5584, 1
        %v5586 = vadd.f32 %v5584, %v5585
        %v5587 = vadd.f32 %v4080, %v4081
        %v5588 = vrot.slane %v5587, 4
        %v5589 = vadd.f32 %v5587, %v5588
        %v5590 = vrot.slane %v5589, 2
        %v5591 = vadd.f32 %v5589, %v5590
        %v5592 = vrot.slane %v5591, 1
        %v5593 = vadd.f32 %v5591, %v5592
        %v5594 = vadd.f32 %v4082, %v4083
        %v5595 = vrot.slane %v5594, 4
        %v5596 = vadd.f32 %v5594, %v5595
        %v5597 = vrot.slane %v5596, 2
        %v5598 = vadd.f32 %v5596, %v5597
        %v5599 = vrot.slane %v5598, 1
        %v5600 = vadd.f32 %v5598, %v5599
        %v5601 = vadd.f32 %v4084, %v4085
        %v5602 = vrot.slane %v5601, 4
        %v5603 = vadd.f32 %v5601, %v5602
        %v5604 = vrot.slane %v5603, 2
        %v5605 = vadd.f32 %v5603, %v5604
        %v5606 = vrot.slane %v5605, 1
        %v5607 = vadd.f32 %v5605, %v5606
        %v5608 = vadd.f32 %v4086, %v4087
        %v5609 = vrot.slane %v5608, 4
        %v5610 = vadd.f32 %v5608, %v5609
        %v5611 = vrot.slane %v5610, 2
        %v5612 = vadd.f32 %v5610, %v5611
        %v5613 = vrot.slane %v5612, 1
        %v5614 = vadd.f32 %v5612, %v5613
        %v5615 = vadd.f32 %v4088, %v4089
        %v5616 = vrot.slane %v5615, 4
        %v5617 = vadd.f32 %v5615, %v5616
        %v5618 = vrot.slane %v5617, 2
        %v5619 = vadd.f32 %v5617, %v5618
        %v5620 = vrot.slane %v5619, 1
        %v5621 = vadd.f32 %v5619, %v5620
        %v5622 = vadd.f32 %v4090, %v4091
        %v5623 = vrot.slane %v5622, 4
        %v5624 = vadd.f32 %v5622, %v5623
        %v5625 = vrot.slane %v5624, 2
        %v5626 = vadd.f32 %v5624, %v5625
        %v5627 = vrot.slane %v5626, 1
        %v5628 = vadd.f32 %v5626, %v5627
        %v5629 = vadd.f32 %v4092, %v4093
        %v5630 = vrot.slane %v5629, 4
        %v5631 = vadd.f32 %v5629, %v5630
        %v5632 = vrot.slane %v5631, 2
        %v5633 = vadd.f32 %v5631, %v5632
        %v5634 = vrot.slane %v5633, 1
        %v5635 = vadd.f32 %v5633, %v5634
        %v5636 = vadd.f32 %v4094, %v4095
        %v5637 = vrot.slane %v5636, 4
        %v5638 = vadd.f32 %v5636, %v5637
        %v5639 = vrot.slane %v5638, 2
        %v5640 = vadd.f32 %v5638, %v5639
        %v5641 = vrot.slane %v5640, 1
        %v5642 = vadd.f32 %v5640, %v5641
        %v5643 = vadd.f32 %v4096, %v4097
        %v5644 = vrot.slane %v5643, 4
        %v5645 = vadd.f32 %v5643, %v5644
        %v5646 = vrot.slane %v5645, 2
        %v5647 = vadd.f32 %v5645, %v5646
        %v5648 = vrot.slane %v5647, 1
        %v5649 = vadd.f32 %v5647, %v5648
        %v5650 = vadd.f32 %v4098, %v4099
        %v5651 = vrot.slane %v5650, 4
        %v5652 = vadd.f32 %v5650, %v5651
        %v5653 = vrot.slane %v5652, 2
        %v5654 = vadd.f32 %v5652, %v5653
        %v5655 = vrot.slane %v5654, 1
        %v5656 = vadd.f32 %v5654, %v5655
        %v5657 = vadd.f32 %v4100, %v4101
        %v5658 = vrot.slane %v5657, 4
        %v5659 = vadd.f32 %v5657, %v5658
        %v5660 = vrot.slane %v5659, 2
        %v5661 = vadd.f32 %v5659, %v5660
        %v5662 = vrot.slane %v5661, 1
        %v5663 = vadd.f32 %v5661, %v5662
        %v5664 = vadd.f32 %v4102, %v4103
        %v5665 = vrot.slane %v5664, 4
        %v5666 = vadd.f32 %v5664, %v5665
        %v5667 = vrot.slane %v5666, 2
        %v5668 = vadd.f32 %v5666, %v5667
        %v5669 = vrot.slane %v5668, 1
        %v5670 = vadd.f32 %v5668, %v5669
        %v5671 = vadd.f32 %v4104, %v4105
        %v5672 = vrot.slane %v5671, 4
        %v5673 = vadd.f32 %v5671, %v5672
        %v5674 = vrot.slane %v5673, 2
        %v5675 = vadd.f32 %v5673, %v5674
        %v5676 = vrot.slane %v5675, 1
        %v5677 = vadd.f32 %v5675, %v5676
        %v5678 = vadd.f32 %v4106, %v4107
        %v5679 = vrot.slane %v5678, 4
        %v5680 = vadd.f32 %v5678, %v5679
        %v5681 = vrot.slane %v5680, 2
        %v5682 = vadd.f32 %v5680, %v5681
        %v5683 = vrot.slane %v5682, 1
        %v5684 = vadd.f32 %v5682, %v5683
        %v5685 = vadd.f32 %v4108, %v4109
        %v5686 = vrot.slane %v5685, 4
        %v5687 = vadd.f32 %v5685, %v5686
        %v5688 = vrot.slane %v5687, 2
        %v5689 = vadd.f32 %v5687, %v5688
        %v5690 = vrot.slane %v5689, 1
        %v5691 = vadd.f32 %v5689, %v5690
        %v5692 = vadd.f32 %v4110, %v4111
        %v5693 = vrot.slane %v5692, 4
        %v5694 = vadd.f32 %v5692, %v5693
        %v5695 = vrot.slane %v5694, 2
        %v5696 = vadd.f32 %v5694, %v5695
        %v5697 = vrot.slane %v5696, 1
        %v5698 = vadd.f32 %v5696, %v5697
        %v5699 = vadd.f32 %v4112, %v4113
        %v5700 = vrot.slane %v5699, 4
        %v5701 = vadd.f32 %v5699, %v5700
        %v5702 = vrot.slane %v5701, 2
        %v5703 = vadd.f32 %v5701, %v5702
        %v5704 = vrot.slane %v5703, 1
        %v5705 = vadd.f32 %v5703, %v5704
        %v5706 = vadd.f32 %v4114, %v4115
        %v5707 = vrot.slane %v5706, 4
        %v5708 = vadd.f32 %v5706, %v5707
        %v5709 = vrot.slane %v5708, 2
        %v5710 = vadd.f32 %v5708, %v5709
        %v5711 = vrot.slane %v5710, 1
        %v5712 = vadd.f32 %v5710, %v5711
        %v5713 = vadd.f32 %v4116, %v4117
        %v5714 = vrot.slane %v5713, 4
        %v5715 = vadd.f32 %v5713, %v5714
        %v5716 = vrot.slane %v5715, 2
        %v5717 = vadd.f32 %v5715, %v5716
        %v5718 = vrot.slane %v5717, 1
        %v5719 = vadd.f32 %v5717, %v5718
        %v5720 = vadd.f32 %v4118, %v4119
        %v5721 = vrot.slane %v5720, 4
        %v5722 = vadd.f32 %v5720, %v5721
        %v5723 = vrot.slane %v5722, 2
        %v5724 = vadd.f32 %v5722, %v5723
        %v5725 = vrot.slane %v5724, 1
        %v5726 = vadd.f32 %v5724, %v5725
        %v5727 = vadd.f32 %v4120, %v4121
        %v5728 = vrot.slane %v5727, 4
        %v5729 = vadd.f32 %v5727, %v5728
        %v5730 = vrot.slane %v5729, 2
        %v5731 = vadd.f32 %v5729, %v5730
        %v5732 = vrot.slane %v5731, 1
        %v5733 = vadd.f32 %v5731, %v5732
        %v5734 = vadd.f32 %v4122, %v4123
        %v5735 = vrot.slane %v5734, 4
        %v5736 = vadd.f32 %v5734, %v5735
        %v5737 = vrot.slane %v5736, 2
        %v5738 = vadd.f32 %v5736, %v5737
        %v5739 = vrot.slane %v5738, 1
        %v5740 = vadd.f32 %v5738, %v5739
        %v5741 = vadd.f32 %v4124, %v4125
        %v5742 = vrot.slane %v5741, 4
        %v5743 = vadd.f32 %v5741, %v5742
        %v5744 = vrot.slane %v5743, 2
        %v5745 = vadd.f32 %v5743, %v5744
        %v5746 = vrot.slane %v5745, 1
        %v5747 = vadd.f32 %v5745, %v5746
        %v5748 = vadd.f32 %v4126, %v4127
        %v5749 = vrot.slane %v5748, 4
        %v5750 = vadd.f32 %v5748, %v5749
        %v5751 = vrot.slane %v5750, 2
        %v5752 = vadd.f32 %v5750, %v5751
        %v5753 = vrot.slane %v5752, 1
        %v5754 = vadd.f32 %v5752, %v5753
        %v5755 = vadd.f32 %v4128, %v4129
        %v5756 = vrot.slane %v5755, 4
        %v5757 = vadd.f32 %v5755, %v5756
        %v5758 = vrot.slane %v5757, 2
        %v5759 = vadd.f32 %v5757, %v5758
        %v5760 = vrot.slane %v5759, 1
        %v5761 = vadd.f32 %v5759, %v5760
        %v5762 = vadd.f32 %v4130, %v4131
        %v5763 = vrot.slane %v5762, 4
        %v5764 = vadd.f32 %v5762, %v5763
        %v5765 = vrot.slane %v5764, 2
        %v5766 = vadd.f32 %v5764, %v5765
        %v5767 = vrot.slane %v5766, 1
        %v5768 = vadd.f32 %v5766, %v5767
        %v5769 = vadd.f32 %v4132, %v4133
        %v5770 = vrot.slane %v5769, 4
        %v5771 = vadd.f32 %v5769, %v5770
        %v5772 = vrot.slane %v5771, 2
        %v5773 = vadd.f32 %v5771, %v5772
        %v5774 = vrot.slane %v5773, 1
        %v5775 = vadd.f32 %v5773, %v5774
        %v5776 = vadd.f32 %v4134, %v4135
        %v5777 = vrot.slane %v5776, 4
        %v5778 = vadd.f32 %v5776, %v5777
        %v5779 = vrot.slane %v5778, 2
        %v5780 = vadd.f32 %v5778, %v5779
        %v5781 = vrot.slane %v5780, 1
        %v5782 = vadd.f32 %v5780, %v5781
        %v5783 = vadd.f32 %v4136, %v4137
        %v5784 = vrot.slane %v5783, 4
        %v5785 = vadd.f32 %v5783, %v5784
        %v5786 = vrot.slane %v5785, 2
        %v5787 = vadd.f32 %v5785, %v5786
        %v5788 = vrot.slane %v5787, 1
        %v5789 = vadd.f32 %v5787, %v5788
        %v5790 = vadd.f32 %v4138, %v4139
        %v5791 = vrot.slane %v5790, 4
        %v5792 = vadd.f32 %v5790, %v5791
        %v5793 = vrot.slane %v5792, 2
        %v5794 = vadd.f32 %v5792, %v5793
        %v5795 = vrot.slane %v5794, 1
        %v5796 = vadd.f32 %v5794, %v5795
        %v5797 = vadd.f32 %v4140, %v4141
        %v5798 = vrot.slane %v5797, 4
        %v5799 = vadd.f32 %v5797, %v5798
        %v5800 = vrot.slane %v5799, 2
        %v5801 = vadd.f32 %v5799, %v5800
        %v5802 = vrot.slane %v5801, 1
        %v5803 = vadd.f32 %v5801, %v5802
        %v5804 = vadd.f32 %v4142, %v4143
        %v5805 = vrot.slane %v5804, 4
        %v5806 = vadd.f32 %v5804, %v5805
        %v5807 = vrot.slane %v5806, 2
        %v5808 = vadd.f32 %v5806, %v5807
        %v5809 = vrot.slane %v5808, 1
        %v5810 = vadd.f32 %v5808, %v5809
        %v5811 = vadd.f32 %v4144, %v4145
        %v5812 = vrot.slane %v5811, 4
        %v5813 = vadd.f32 %v5811, %v5812
        %v5814 = vrot.slane %v5813, 2
        %v5815 = vadd.f32 %v5813, %v5814
        %v5816 = vrot.slane %v5815, 1
        %v5817 = vadd.f32 %v5815, %v5816
        %v5818 = vadd.f32 %v4146, %v4147
        %v5819 = vrot.slane %v5818, 4
        %v5820 = vadd.f32 %v5818, %v5819
        %v5821 = vrot.slane %v5820, 2
        %v5822 = vadd.f32 %v5820, %v5821
        %v5823 = vrot.slane %v5822, 1
        %v5824 = vadd.f32 %v5822, %v5823
        %v5825 = vadd.f32 %v4148, %v4149
        %v5826 = vrot.slane %v5825, 4
        %v5827 = vadd.f32 %v5825, %v5826
        %v5828 = vrot.slane %v5827, 2
        %v5829 = vadd.f32 %v5827, %v5828
        %v5830 = vrot.slane %v5829, 1
        %v5831 = vadd.f32 %v5829, %v5830
        %v5832 = vadd.f32 %v4150, %v4151
        %v5833 = vrot.slane %v5832, 4
        %v5834 = vadd.f32 %v5832, %v5833
        %v5835 = vrot.slane %v5834, 2
        %v5836 = vadd.f32 %v5834, %v5835
        %v5837 = vrot.slane %v5836, 1
        %v5838 = vadd.f32 %v5836, %v5837
        %v5839 = vadd.f32 %v4152, %v4153
        %v5840 = vrot.slane %v5839, 4
        %v5841 = vadd.f32 %v5839, %v5840
        %v5842 = vrot.slane %v5841, 2
        %v5843 = vadd.f32 %v5841, %v5842
        %v5844 = vrot.slane %v5843, 1
        %v5845 = vadd.f32 %v5843, %v5844
        %v5846 = vadd.f32 %v4154, %v4155
        %v5847 = vrot.slane %v5846, 4
        %v5848 = vadd.f32 %v5846, %v5847
        %v5849 = vrot.slane %v5848, 2
        %v5850 = vadd.f32 %v5848, %v5849
        %v5851 = vrot.slane %v5850, 1
        %v5852 = vadd.f32 %v5850, %v5851
        %v5853 = vadd.f32 %v4156, %v4157
        %v5854 = vrot.slane %v5853, 4
        %v5855 = vadd.f32 %v5853, %v5854
        %v5856 = vrot.slane %v5855, 2
        %v5857 = vadd.f32 %v5855, %v5856
        %v5858 = vrot.slane %v5857, 1
        %v5859 = vadd.f32 %v5857, %v5858
        %v5860 = vadd.f32 %v4158, %v4159
        %v5861 = vrot.slane %v5860, 4
        %v5862 = vadd.f32 %v5860, %v5861
        %v5863 = vrot.slane %v5862, 2
        %v5864 = vadd.f32 %v5862, %v5863
        %v5865 = vrot.slane %v5864, 1
        %v5866 = vadd.f32 %v5864, %v5865
        %v5867 = vadd.f32 %v4160, %v4161
        %v5868 = vrot.slane %v5867, 4
        %v5869 = vadd.f32 %v5867, %v5868
        %v5870 = vrot.slane %v5869, 2
        %v5871 = vadd.f32 %v5869, %v5870
        %v5872 = vrot.slane %v5871, 1
        %v5873 = vadd.f32 %v5871, %v5872
        %v5874 = vadd.f32 %v4162, %v4163
        %v5875 = vrot.slane %v5874, 4
        %v5876 = vadd.f32 %v5874, %v5875
        %v5877 = vrot.slane %v5876, 2
        %v5878 = vadd.f32 %v5876, %v5877
        %v5879 = vrot.slane %v5878, 1
        %v5880 = vadd.f32 %v5878, %v5879
        %v5881 = vadd.f32 %v4164, %v4165
        %v5882 = vrot.slane %v5881, 4
        %v5883 = vadd.f32 %v5881, %v5882
        %v5884 = vrot.slane %v5883, 2
        %v5885 = vadd.f32 %v5883, %v5884
        %v5886 = vrot.slane %v5885, 1
        %v5887 = vadd.f32 %v5885, %v5886
        %v5888 = vadd.f32 %v4166, %v4167
        %v5889 = vrot.slane %v5888, 4
        %v5890 = vadd.f32 %v5888, %v5889
        %v5891 = vrot.slane %v5890, 2
        %v5892 = vadd.f32 %v5890, %v5891
        %v5893 = vrot.slane %v5892, 1
        %v5894 = vadd.f32 %v5892, %v5893
        %v5895 = vadd.f32 %v4168, %v4169
        %v5896 = vrot.slane %v5895, 4
        %v5897 = vadd.f32 %v5895, %v5896
        %v5898 = vrot.slane %v5897, 2
        %v5899 = vadd.f32 %v5897, %v5898
        %v5900 = vrot.slane %v5899, 1
        %v5901 = vadd.f32 %v5899, %v5900
        %v5902 = vadd.f32 %v4170, %v4171
        %v5903 = vrot.slane %v5902, 4
        %v5904 = vadd.f32 %v5902, %v5903
        %v5905 = vrot.slane %v5904, 2
        %v5906 = vadd.f32 %v5904, %v5905
        %v5907 = vrot.slane %v5906, 1
        %v5908 = vadd.f32 %v5906, %v5907
        %v5909 = vadd.f32 %v4172, %v4173
        %v5910 = vrot.slane %v5909, 4
        %v5911 = vadd.f32 %v5909, %v5910
        %v5912 = vrot.slane %v5911, 2
        %v5913 = vadd.f32 %v5911, %v5912
        %v5914 = vrot.slane %v5913, 1
        %v5915 = vadd.f32 %v5913, %v5914
        %v5916 = vadd.f32 %v4174, %v4175
        %v5917 = vrot.slane %v5916, 4
        %v5918 = vadd.f32 %v5916, %v5917
        %v5919 = vrot.slane %v5918, 2
        %v5920 = vadd.f32 %v5918, %v5919
        %v5921 = vrot.slane %v5920, 1
        %v5922 = vadd.f32 %v5920, %v5921
        %v5923 = vadd.f32 %v4176, %v4177
        %v5924 = vrot.slane %v5923, 4
        %v5925 = vadd.f32 %v5923, %v5924
        %v5926 = vrot.slane %v5925, 2
        %v5927 = vadd.f32 %v5925, %v5926
        %v5928 = vrot.slane %v5927, 1
        %v5929 = vadd.f32 %v5927, %v5928
        %v5930 = vadd.f32 %v4178, %v4179
        %v5931 = vrot.slane %v5930, 4
        %v5932 = vadd.f32 %v5930, %v5931
        %v5933 = vrot.slane %v5932, 2
        %v5934 = vadd.f32 %v5932, %v5933
        %v5935 = vrot.slane %v5934, 1
        %v5936 = vadd.f32 %v5934, %v5935
        %v5937 = vadd.f32 %v4180, %v4181
        %v5938 = vrot.slane %v5937, 4
        %v5939 = vadd.f32 %v5937, %v5938
        %v5940 = vrot.slane %v5939, 2
        %v5941 = vadd.f32 %v5939, %v5940
        %v5942 = vrot.slane %v5941, 1
        %v5943 = vadd.f32 %v5941, %v5942
        %v5944 = vadd.f32 %v4182, %v4183
        %v5945 = vrot.slane %v5944, 4
        %v5946 = vadd.f32 %v5944, %v5945
        %v5947 = vrot.slane %v5946, 2
        %v5948 = vadd.f32 %v5946, %v5947
        %v5949 = vrot.slane %v5948, 1
        %v5950 = vadd.f32 %v5948, %v5949
        %v5951 = vadd.f32 %v4184, %v4185
        %v5952 = vrot.slane %v5951, 4
        %v5953 = vadd.f32 %v5951, %v5952
        %v5954 = vrot.slane %v5953, 2
        %v5955 = vadd.f32 %v5953, %v5954
        %v5956 = vrot.slane %v5955, 1
        %v5957 = vadd.f32 %v5955, %v5956
        %v5958 = vadd.f32 %v4186, %v4187
        %v5959 = vrot.slane %v5958, 4
        %v5960 = vadd.f32 %v5958, %v5959
        %v5961 = vrot.slane %v5960, 2
        %v5962 = vadd.f32 %v5960, %v5961
        %v5963 = vrot.slane %v5962, 1
        %v5964 = vadd.f32 %v5962, %v5963
        %v5965 = vadd.f32 %v4188, %v4189
        %v5966 = vrot.slane %v5965, 4
        %v5967 = vadd.f32 %v5965, %v5966
        %v5968 = vrot.slane %v5967, 2
        %v5969 = vadd.f32 %v5967, %v5968
        %v5970 = vrot.slane %v5969, 1
        %v5971 = vadd.f32 %v5969, %v5970
        %v5972 = vadd.f32 %v4190, %v4191
        %v5973 = vrot.slane %v5972, 4
        %v5974 = vadd.f32 %v5972, %v5973
        %v5975 = vrot.slane %v5974, 2
        %v5976 = vadd.f32 %v5974, %v5975
        %v5977 = vrot.slane %v5976, 1
        %v5978 = vadd.f32 %v5976, %v5977
        %v5979 = vadd.f32 %v4192, %v4193
        %v5980 = vrot.slane %v5979, 4
        %v5981 = vadd.f32 %v5979, %v5980
        %v5982 = vrot.slane %v5981, 2
        %v5983 = vadd.f32 %v5981, %v5982
        %v5984 = vrot.slane %v5983, 1
        %v5985 = vadd.f32 %v5983, %v5984
        %v5986 = vld [vmem:[#allocation2] sm:$0xff]
        %v5987 = vld [vmem:[%s314] sm:$0xff]
        %v5988 = vld [vmem:[%s314 + $0x8] sm:$0xff]
        %v5989 = vld [vmem:[%s314 + $0x10] sm:$0xff]
        %v5990 = vld [vmem:[%s314 + $0x18] sm:$0xff]
        %v5991 = vld [vmem:[%s314 + $0x20] sm:$0xff]
        %v5992 = vld [vmem:[%s314 + $0x28] sm:$0xff]
        %v5993 = vld [vmem:[%s314 + $0x30] sm:$0xff]
        %v5994 = vld [vmem:[%s314 + $0x38] sm:$0xff]
        %v5995 = vld [vmem:[%s314 + $0x40] sm:$0xff]
        %v5996 = vld [vmem:[%s314 + $0x48] sm:$0xff]
        %v5997 = vld [vmem:[%s314 + $0x50] sm:$0xff]
        %v5998 = vld [vmem:[%s314 + $0x58] sm:$0xff]
        %v5999 = vld [vmem:[%s314 + $0x60] sm:$0xff]
        %v6000 = vld [vmem:[%s314 + $0x68] sm:$0xff]
        %v6001 = vld [vmem:[%s314 + $0x70] sm:$0xff]
        %v6002 = vld [vmem:[%s314 + $0x78] sm:$0xff]
        %v6003 = vld [vmem:[%s314 + $0x80] sm:$0xff]
        %v6004 = vld [vmem:[%s314 + $0x88] sm:$0xff]
        %v6005 = vld [vmem:[%s314 + $0x90] sm:$0xff]
        %v6006 = vld [vmem:[%s314 + $0x98] sm:$0xff]
        %v6007 = vld [vmem:[%s314 + $0xa0] sm:$0xff]
        %v6008 = vld [vmem:[%s314 + $0xa8] sm:$0xff]
        %v6009 = vld [vmem:[%s314 + $0xb0] sm:$0xff]
        %v6010 = vld [vmem:[%s314 + $0xb8] sm:$0xff]
        %v6011 = vld [vmem:[%s314 + $0xc0] sm:$0xff]
        %v6012 = vld [vmem:[%s314 + $0xc8] sm:$0xff]
        %v6013 = vld [vmem:[%s314 + $0xd0] sm:$0xff]
        %v6014 = vld [vmem:[%s314 + $0xd8] sm:$0xff]
        %v6015 = vld [vmem:[%s314 + $0xe0] sm:$0xff]
        %v6016 = vld [vmem:[%s314 + $0xe8] sm:$0xff]
        %v6017 = vld [vmem:[%s314 + $0xf0] sm:$0xff]
        %v6018 = vld [vmem:[%s314 + $0xf8] sm:$0xff]
        %6019 = vxpose.xlu0.b32.start [1/16] %v5987, 128
        %6020 = vxpose.xlu0.b32.cont [2/16] %v5988, 128
        %6021 = vxpose.xlu0.b32.cont [3/16] %v5989, 128
        %6022 = vxpose.xlu0.b32.cont [4/16] %v5990, 128
        %6023 = vxpose.xlu0.b32.cont [5/16] %v5991, 128
        %6024 = vxpose.xlu0.b32.cont [6/16] %v5992, 128
        %6025 = vxpose.xlu0.b32.cont [7/16] %v5993, 128
        %6026 = vxpose.xlu0.b32.cont [8/16] %v5994, 128
        %6027 = vxpose.xlu0.b32.cont [9/16] %v5995, 128
        %6028 = vxpose.xlu0.b32.cont [10/16] %v5996, 128
        %6029 = vxpose.xlu0.b32.cont [11/16] %v5997, 128
        %6030 = vxpose.xlu0.b32.cont [12/16] %v5998, 128
        %6031 = vxpose.xlu0.b32.cont [13/16] %v5999, 128
        %6032 = vxpose.xlu0.b32.cont [14/16] %v6000, 128
        %6033 = vxpose.xlu0.b32.cont [15/16] %v6001, 128
        %6034 = vxpose.xlu0.b32.end [16/16] %v6002, 128
        %v6035 = vpop.trf.xlu0
        %v6036 = vpop.trf.xlu0
        %v6037 = vpop.trf.xlu0
        %v6038 = vpop.trf.xlu0
        %v6039 = vpop.trf.xlu0
        %v6040 = vpop.trf.xlu0
        %v6041 = vpop.trf.xlu0
        %v6042 = vpop.trf.xlu0
        %v6043 = vpop.trf.xlu0
        %v6044 = vpop.trf.xlu0
        %v6045 = vpop.trf.xlu0
        %v6046 = vpop.trf.xlu0
        %v6047 = vpop.trf.xlu0
        %v6048 = vpop.trf.xlu0
        %v6049 = vpop.trf.xlu0
        %v6050 = vpop.trf.xlu0
        %6051 = vxpose.xlu0.b32.start [1/16] %v6003, 128
        %6052 = vxpose.xlu0.b32.cont [2/16] %v6004, 128
        %6053 = vxpose.xlu0.b32.cont [3/16] %v6005, 128
        %6054 = vxpose.xlu0.b32.cont [4/16] %v6006, 128
        %6055 = vxpose.xlu0.b32.cont [5/16] %v6007, 128
        %6056 = vxpose.xlu0.b32.cont [6/16] %v6008, 128
        %6057 = vxpose.xlu0.b32.cont [7/16] %v6009, 128
        %6058 = vxpose.xlu0.b32.cont [8/16] %v6010, 128
        %6059 = vxpose.xlu0.b32.cont [9/16] %v6011, 128
        %6060 = vxpose.xlu0.b32.cont [10/16] %v6012, 128
        %6061 = vxpose.xlu0.b32.cont [11/16] %v6013, 128
        %6062 = vxpose.xlu0.b32.cont [12/16] %v6014, 128
        %6063 = vxpose.xlu0.b32.cont [13/16] %v6015, 128
        %6064 = vxpose.xlu0.b32.cont [14/16] %v6016, 128
        %6065 = vxpose.xlu0.b32.cont [15/16] %v6017, 128
        %6066 = vxpose.xlu0.b32.end [16/16] %v6018, 128
        %v6067 = vpop.trf.xlu0
        %v6068 = vpop.trf.xlu0
        %v6069 = vpop.trf.xlu0
        %v6070 = vpop.trf.xlu0
        %v6071 = vpop.trf.xlu0
        %v6072 = vpop.trf.xlu0
        %v6073 = vpop.trf.xlu0
        %v6074 = vpop.trf.xlu0
        %v6075 = vpop.trf.xlu0
        %v6076 = vpop.trf.xlu0
        %v6077 = vpop.trf.xlu0
        %v6078 = vpop.trf.xlu0
        %v6079 = vpop.trf.xlu0
        %v6080 = vpop.trf.xlu0
        %v6081 = vpop.trf.xlu0
        %v6082 = vpop.trf.xlu0
        %vm6339 = vcmask 1041409
        %v6340 = vsel %vm6339, %v4207, %v4200
        %vm6341 = vcmask 1042434
        %v6342 = vsel %vm6341, %v4214, %v6340
        %vm6343 = vcmask 1043459
        %v6344 = vsel %vm6343, %v4221, %v6342
        %vm6345 = vcmask 1044484
        %v6346 = vsel %vm6345, %v4228, %v6344
        %vm6347 = vcmask 1045509
        %v6348 = vsel %vm6347, %v4235, %v6346
        %vm6349 = vcmask 1046534
        %v6350 = vsel %vm6349, %v4242, %v6348
        %vm6351 = vcmask 1047559
        %v6352 = vsel %vm6351, %v4249, %v6350
        %v6353 = vsel %vm6339, %v4263, %v4256
        %v6354 = vsel %vm6341, %v4270, %v6353
        %v6355 = vsel %vm6343, %v4277, %v6354
        %v6356 = vsel %vm6345, %v4284, %v6355
        %v6357 = vsel %vm6347, %v4291, %v6356
        %v6358 = vsel %vm6349, %v4298, %v6357
        %v6359 = vsel %vm6351, %v4305, %v6358
        %v6360 = vsel %vm6339, %v4319, %v4312
        %v6361 = vsel %vm6341, %v4326, %v6360
        %v6362 = vsel %vm6343, %v4333, %v6361
        %v6363 = vsel %vm6345, %v4340, %v6362
        %v6364 = vsel %vm6347, %v4347, %v6363
        %v6365 = vsel %vm6349, %v4354, %v6364
        %v6366 = vsel %vm6351, %v4361, %v6365
        %v6367 = vsel %vm6339, %v4375, %v4368
        %v6368 = vsel %vm6341, %v4382, %v6367
        %v6369 = vsel %vm6343, %v4389, %v6368
        %v6370 = vsel %vm6345, %v4396, %v6369
        %v6371 = vsel %vm6347, %v4403, %v6370
        %v6372 = vsel %vm6349, %v4410, %v6371
        %v6373 = vsel %vm6351, %v4417, %v6372
        %v6374 = vsel %vm6339, %v4431, %v4424
        %v6375 = vsel %vm6341, %v4438, %v6374
        %v6376 = vsel %vm6343, %v4445, %v6375
        %v6377 = vsel %vm6345, %v4452, %v6376
        %v6378 = vsel %vm6347, %v4459, %v6377
        %v6379 = vsel %vm6349, %v4466, %v6378
        %v6380 = vsel %vm6351, %v4473, %v6379
        %v6381 = vsel %vm6339, %v4487, %v4480
        %v6382 = vsel %vm6341, %v4494, %v6381
        %v6383 = vsel %vm6343, %v4501, %v6382
        %v6384 = vsel %vm6345, %v4508, %v6383
        %v6385 = vsel %vm6347, %v4515, %v6384
        %v6386 = vsel %vm6349, %v4522, %v6385
        %v6387 = vsel %vm6351, %v4529, %v6386
        %v6388 = vsel %vm6339, %v4543, %v4536
        %v6389 = vsel %vm6341, %v4550, %v6388
        %v6390 = vsel %vm6343, %v4557, %v6389
        %v6391 = vsel %vm6345, %v4564, %v6390
        %v6392 = vsel %vm6347, %v4571, %v6391
        %v6393 = vsel %vm6349, %v4578, %v6392
        %v6394 = vsel %vm6351, %v4585, %v6393
        %v6395 = vsel %vm6339, %v4599, %v4592
        %v6396 = vsel %vm6341, %v4606, %v6395
        %v6397 = vsel %vm6343, %v4613, %v6396
        %v6398 = vsel %vm6345, %v4620, %v6397
        %v6399 = vsel %vm6347, %v4627, %v6398
        %v6400 = vsel %vm6349, %v4634, %v6399
        %v6401 = vsel %vm6351, %v4641, %v6400
        %v6402 = vsel %vm6339, %v4655, %v4648
        %v6403 = vsel %vm6341, %v4662, %v6402
        %v6404 = vsel %vm6343, %v4669, %v6403
        %v6405 = vsel %vm6345, %v4676, %v6404
        %v6406 = vsel %vm6347, %v4683, %v6405
        %v6407 = vsel %vm6349, %v4690, %v6406
        %v6408 = vsel %vm6351, %v4697, %v6407
        %v6409 = vsel %vm6339, %v4711, %v4704
        %v6410 = vsel %vm6341, %v4718, %v6409
        %v6411 = vsel %vm6343, %v4725, %v6410
        %v6412 = vsel %vm6345, %v4732, %v6411
        %v6413 = vsel %vm6347, %v4739, %v6412
        %v6414 = vsel %vm6349, %v4746, %v6413
        %v6415 = vsel %vm6351, %v4753, %v6414
        %v6416 = vsel %vm6339, %v4767, %v4760
        %v6417 = vsel %vm6341, %v4774, %v6416
        %v6418 = vsel %vm6343, %v4781, %v6417
        %v6419 = vsel %vm6345, %v4788, %v6418
        %v6420 = vsel %vm6347, %v4795, %v6419
        %v6421 = vsel %vm6349, %v4802, %v6420
        %v6422 = vsel %vm6351, %v4809, %v6421
        %v6423 = vsel %vm6339, %v4823, %v4816
        %v6424 = vsel %vm6341, %v4830, %v6423
        %v6425 = vsel %vm6343, %v4837, %v6424
        %v6426 = vsel %vm6345, %v4844, %v6425
        %v6427 = vsel %vm6347, %v4851, %v6426
        %v6428 = vsel %vm6349, %v4858, %v6427
        %v6429 = vsel %vm6351, %v4865, %v6428
        %v6430 = vsel %vm6339, %v4879, %v4872
        %v6431 = vsel %vm6341, %v4886, %v6430
        %v6432 = vsel %vm6343, %v4893, %v6431
        %v6433 = vsel %vm6345, %v4900, %v6432
        %v6434 = vsel %vm6347, %v4907, %v6433
        %v6435 = vsel %vm6349, %v4914, %v6434
        %v6436 = vsel %vm6351, %v4921, %v6435
        %v6437 = vsel %vm6339, %v4935, %v4928
        %v6438 = vsel %vm6341, %v4942, %v6437
        %v6439 = vsel %vm6343, %v4949, %v6438
        %v6440 = vsel %vm6345, %v4956, %v6439
        %v6441 = vsel %vm6347, %v4963, %v6440
        %v6442 = vsel %vm6349, %v4970, %v6441
        %v6443 = vsel %vm6351, %v4977, %v6442
        %v6444 = vsel %vm6339, %v4991, %v4984
        %v6445 = vsel %vm6341, %v4998, %v6444
        %v6446 = vsel %vm6343, %v5005, %v6445
        %v6447 = vsel %vm6345, %v5012, %v6446
        %v6448 = vsel %vm6347, %v5019, %v6447
        %v6449 = vsel %vm6349, %v5026, %v6448
        %v6450 = vsel %vm6351, %v5033, %v6449
        %v6451 = vsel %vm6339, %v5047, %v5040
        %v6452 = vsel %vm6341, %v5054, %v6451
        %v6453 = vsel %vm6343, %v5061, %v6452
        %v6454 = vsel %vm6345, %v5068, %v6453
        %v6455 = vsel %vm6347, %v5075, %v6454
        %v6456 = vsel %vm6349, %v5082, %v6455
        %v6457 = vsel %vm6351, %v5089, %v6456
        %v6458 = vsel %vm6339, %v5103, %v5096
        %v6459 = vsel %vm6341, %v5110, %v6458
        %v6460 = vsel %vm6343, %v5117, %v6459
        %v6461 = vsel %vm6345, %v5124, %v6460
        %v6462 = vsel %vm6347, %v5131, %v6461
        %v6463 = vsel %vm6349, %v5138, %v6462
        %v6464 = vsel %vm6351, %v5145, %v6463
        %v6465 = vsel %vm6339, %v5159, %v5152
        %v6466 = vsel %vm6341, %v5166, %v6465
        %v6467 = vsel %vm6343, %v5173, %v6466
        %v6468 = vsel %vm6345, %v5180, %v6467
        %v6469 = vsel %vm6347, %v5187, %v6468
        %v6470 = vsel %vm6349, %v5194, %v6469
        %v6471 = vsel %vm6351, %v5201, %v6470
        %v6472 = vsel %vm6339, %v5215, %v5208
        %v6473 = vsel %vm6341, %v5222, %v6472
        %v6474 = vsel %vm6343, %v5229, %v6473
        %v6475 = vsel %vm6345, %v5236, %v6474
        %v6476 = vsel %vm6347, %v5243, %v6475
        %v6477 = vsel %vm6349, %v5250, %v6476
        %v6478 = vsel %vm6351, %v5257, %v6477
        %v6479 = vsel %vm6339, %v5271, %v5264
        %v6480 = vsel %vm6341, %v5278, %v6479
        %v6481 = vsel %vm6343, %v5285, %v6480
        %v6482 = vsel %vm6345, %v5292, %v6481
        %v6483 = vsel %vm6347, %v5299, %v6482
        %v6484 = vsel %vm6349, %v5306, %v6483
        %v6485 = vsel %vm6351, %v5313, %v6484
        %v6486 = vsel %vm6339, %v5327, %v5320
        %v6487 = vsel %vm6341, %v5334, %v6486
        %v6488 = vsel %vm6343, %v5341, %v6487
        %v6489 = vsel %vm6345, %v5348, %v6488
        %v6490 = vsel %vm6347, %v5355, %v6489
        %v6491 = vsel %vm6349, %v5362, %v6490
        %v6492 = vsel %vm6351, %v5369, %v6491
        %v6493 = vsel %vm6339, %v5383, %v5376
        %v6494 = vsel %vm6341, %v5390, %v6493
        %v6495 = vsel %vm6343, %v5397, %v6494
        %v6496 = vsel %vm6345, %v5404, %v6495
        %v6497 = vsel %vm6347, %v5411, %v6496
        %v6498 = vsel %vm6349, %v5418, %v6497
        %v6499 = vsel %vm6351, %v5425, %v6498
        %v6500 = vsel %vm6339, %v5439, %v5432
        %v6501 = vsel %vm6341, %v5446, %v6500
        %v6502 = vsel %vm6343, %v5453, %v6501
        %v6503 = vsel %vm6345, %v5460, %v6502
        %v6504 = vsel %vm6347, %v5467, %v6503
        %v6505 = vsel %vm6349, %v5474, %v6504
        %v6506 = vsel %vm6351, %v5481, %v6505
        %v6507 = vsel %vm6339, %v5495, %v5488
        %v6508 = vsel %vm6341, %v5502, %v6507
        %v6509 = vsel %vm6343, %v5509, %v6508
        %v6510 = vsel %vm6345, %v5516, %v6509
        %v6511 = vsel %vm6347, %v5523, %v6510
        %v6512 = vsel %vm6349, %v5530, %v6511
        %v6513 = vsel %vm6351, %v5537, %v6512
        %v6514 = vsel %vm6339, %v5551, %v5544
        %v6515 = vsel %vm6341, %v5558, %v6514
        %v6516 = vsel %vm6343, %v5565, %v6515
        %v6517 = vsel %vm6345, %v5572, %v6516
        %v6518 = vsel %vm6347, %v5579, %v6517
        %v6519 = vsel %vm6349, %v5586, %v6518
        %v6520 = vsel %vm6351, %v5593, %v6519
        %v6521 = vsel %vm6339, %v5607, %v5600
        %v6522 = vsel %vm6341, %v5614, %v6521
        %v6523 = vsel %vm6343, %v5621, %v6522
        %v6524 = vsel %vm6345, %v5628, %v6523
        %v6525 = vsel %vm6347, %v5635, %v6524
        %v6526 = vsel %vm6349, %v5642, %v6525
        %v6527 = vsel %vm6351, %v5649, %v6526
        %v6528 = vsel %vm6339, %v5663, %v5656
        %v6529 = vsel %vm6341, %v5670, %v6528
        %v6530 = vsel %vm6343, %v5677, %v6529
        %v6531 = vsel %vm6345, %v5684, %v6530
        %v6532 = vsel %vm6347, %v5691, %v6531
        %v6533 = vsel %vm6349, %v5698, %v6532
        %v6534 = vsel %vm6351, %v5705, %v6533
        %v6535 = vsel %vm6339, %v5719, %v5712
        %v6536 = vsel %vm6341, %v5726, %v6535
        %v6537 = vsel %vm6343, %v5733, %v6536
        %v6538 = vsel %vm6345, %v5740, %v6537
        %v6539 = vsel %vm6347, %v5747, %v6538
        %v6540 = vsel %vm6349, %v5754, %v6539
        %v6541 = vsel %vm6351, %v5761, %v6540
        %v6542 = vsel %vm6339, %v5775, %v5768
        %v6543 = vsel %vm6341, %v5782, %v6542
        %v6544 = vsel %vm6343, %v5789, %v6543
        %v6545 = vsel %vm6345, %v5796, %v6544
        %v6546 = vsel %vm6347, %v5803, %v6545
        %v6547 = vsel %vm6349, %v5810, %v6546
        %v6548 = vsel %vm6351, %v5817, %v6547
        %v6549 = vsel %vm6339, %v5831, %v5824
        %v6550 = vsel %vm6341, %v5838, %v6549
        %v6551 = vsel %vm6343, %v5845, %v6550
        %v6552 = vsel %vm6345, %v5852, %v6551
        %v6553 = vsel %vm6347, %v5859, %v6552
        %v6554 = vsel %vm6349, %v5866, %v6553
        %v6555 = vsel %vm6351, %v5873, %v6554
        %v6556 = vsel %vm6339, %v5887, %v5880
        %v6557 = vsel %vm6341, %v5894, %v6556
        %v6558 = vsel %vm6343, %v5901, %v6557
        %v6559 = vsel %vm6345, %v5908, %v6558
        %v6560 = vsel %vm6347, %v5915, %v6559
        %v6561 = vsel %vm6349, %v5922, %v6560
        %v6562 = vsel %vm6351, %v5929, %v6561
        %v6563 = vsel %vm6339, %v5943, %v5936
        %v6564 = vsel %vm6341, %v5950, %v6563
        %v6565 = vsel %vm6343, %v5957, %v6564
        %v6566 = vsel %vm6345, %v5964, %v6565
        %v6567 = vsel %vm6347, %v5971, %v6566
        %v6568 = vsel %vm6349, %v5978, %v6567
        %v6569 = vsel %vm6351, %v5985, %v6568
        %6602 = vmatprep.subr.mxu0 0.0
        %6603 = vmatpush1.msra.mxu0 %v6457
        %6604 = vmatprep.subr.mxu0 0.0
        %6605 = vmatpush1.msra.mxu0 %v6450
        %6606 = vmatprep.subr.mxu0 0.0
        %6607 = vmatpush1.msra.mxu0 %v6443
        %6608 = vmatprep.subr.mxu0 0.0
        %6609 = vmatpush1.msra.mxu0 %v6436
        %6610 = vmatprep.subr.mxu0 0.0
        %6611 = vmatpush1.msra.mxu0 %v6429
        %6612 = vmatprep.subr.mxu0 0.0
        %6613 = vmatpush1.msra.mxu0 %v6422
        %6614 = vmatprep.subr.mxu0 0.0
        %6615 = vmatpush1.msra.mxu0 %v6415
        %6616 = vmatprep.subr.mxu0 0.0
        %6617 = vmatpush1.msra.mxu0 %v6408
        %6618 = vmatprep.subr.mxu0 0.0
        %6619 = vmatpush1.msra.mxu0 %v6401
        %6620 = vmatprep.subr.mxu0 0.0
        %6621 = vmatpush1.msra.mxu0 %v6394
        %6622 = vmatprep.subr.mxu0 0.0
        %6623 = vmatpush1.msra.mxu0 %v6387
        %6624 = vmatprep.subr.mxu0 0.0
        %6625 = vmatpush1.msra.mxu0 %v6380
        %6626 = vmatprep.subr.mxu0 0.0
        %6627 = vmatpush1.msra.mxu0 %v6373
        %6628 = vmatprep.subr.mxu0 0.0
        %6629 = vmatpush1.msra.mxu0 %v6366
        %6630 = vmatprep.subr.mxu0 0.0
        %6631 = vmatpush1.msra.mxu0 %v6359
        %6632 = vmatprep.subr.mxu0 0.0
        %6633 = vmatpush1.msra.mxu0 %v6352
        %6634 = vmatprep.subr.mxu0 0.0
        %6635 = vmatpush2.msra.mxu0 %v6569
        %6636 = vmatprep.subr.mxu0 0.0
        %6637 = vmatpush2.msra.mxu0 %v6562
        %6638 = vmatprep.subr.mxu0 0.0
        %6639 = vmatpush2.msra.mxu0 %v6555
        %6640 = vmatprep.subr.mxu0 0.0
        %6641 = vmatpush2.msra.mxu0 %v6548
        %6642 = vmatprep.subr.mxu0 0.0
        %6643 = vmatpush2.msra.mxu0 %v6541
        %6644 = vmatprep.subr.mxu0 0.0
        %6645 = vmatpush2.msra.mxu0 %v6534
        %6646 = vmatprep.subr.mxu0 0.0
        %6647 = vmatpush2.msra.mxu0 %v6527
        %6648 = vmatprep.subr.mxu0 0.0
        %6649 = vmatpush2.msra.mxu0 %v6520
        %6650 = vmatprep.subr.mxu0 0.0
        %6651 = vmatpush2.msra.mxu0 %v6513
        %6652 = vmatprep.subr.mxu0 0.0
        %6653 = vmatpush2.msra.mxu0 %v6506
        %6654 = vmatprep.subr.mxu0 0.0
        %6655 = vmatpush2.msra.mxu0 %v6499
        %6656 = vmatprep.subr.mxu0 0.0
        %6657 = vmatpush2.msra.mxu0 %v6492
        %6658 = vmatprep.subr.mxu0 0.0
        %6659 = vmatpush2.msra.mxu0 %v6485
        %6660 = vmatprep.subr.mxu0 0.0
        %6661 = vmatpush2.msra.mxu0 %v6478
        %6662 = vmatprep.subr.mxu0 0.0
        %6663 = vmatpush2.msra.mxu0 %v6471
        %6664 = vmatprep.subr.mxu0 0.0
        %6665 = vmatpush2.msra.mxu0 %v6464
        %6666 = vmatprep.mubr.f32.mxu0 %v6067
        %6667 = vmatmul.mubr.f32.gmra.mxu0 %v6035
        %v6668 = vpop.f32.mrf.mxu0
        %v6669 = vadd.f32 0.0, %v6668
        %v6670 = vpop.f32.mrf.mxu0
        %6671 = vdwg.mxu0
        %v6672 = vadd.f32 %v5986, %v6669
        %6673 = vst [vmem:[#allocation2] sm:$0xff] %v6672
        %p6674 = scmp.eq.s32.totalorder %s22, 1
        // Predicated region
        $region57: #{tpu_custom_call.1} parent=43 // pred_check
          %p6675 = pneg %p6674
        $region58: #{tpu_custom_call.1} parent=43 // pred_check_branch
          %6677 = sbr.rel (%p6675) target = $region60
        $region59: #{tpu_custom_call.1} parent=43 // pred_region
          %v6678 = vld [vmem:[#allocation2] sm:$0xff]
          %v6679 = vld [vmem:[%s5] sm:$0xff]
          %6681 = vset.pattern.permute.xlu0 0
          %6682 = vperm.xlu0 %6681, %v6679
          %v6683 = vpop.permute.xlu0 %6682
          %v6685 = vmul.f32 %v6678, %v6683
          %v6686 = vld [vmem:[%s3] sm:$0xff]
          %v6687 = vld [vmem:[%s3 + $0x8] sm:$0xff]
          %v6688 = vld [vmem:[%s3 + $0x10] sm:$0xff]
          %v6689 = vld [vmem:[%s3 + $0x18] sm:$0xff]
          %v6690 = vld [vmem:[%s3 + $0x20] sm:$0xff]
          %v6691 = vld [vmem:[%s3 + $0x28] sm:$0xff]
          %v6692 = vld [vmem:[%s3 + $0x30] sm:$0xff]
          %v6693 = vld [vmem:[%s3 + $0x38] sm:$0xff]
          %v6694 = vld [vmem:[%s3 + $0x40] sm:$0xff]
          %v6695 = vld [vmem:[%s3 + $0x48] sm:$0xff]
          %v6696 = vld [vmem:[%s3 + $0x50] sm:$0xff]
          %v6697 = vld [vmem:[%s3 + $0x58] sm:$0xff]
          %v6698 = vld [vmem:[%s3 + $0x60] sm:$0xff]
          %v6699 = vld [vmem:[%s3 + $0x68] sm:$0xff]
          %v6700 = vld [vmem:[%s3 + $0x70] sm:$0xff]
          %v6701 = vld [vmem:[%s3 + $0x78] sm:$0xff]
          %v6702 = vld [vmem:[#allocation6] sm:$0x1]
          %v6704 = vlaneseq
          %v6705 = vshrl.u32 %v6704, 7
          %v6706 = vsub.s32 0, %v6705
          %v6707 = vrot.slane %v6702, %v6706
          %6709 = vmatprep.subr.mxu0 0.0
          %6710 = vmatpush1.msra.mxu0 %v6701
          %6711 = vmatprep.subr.mxu0 0.0
          %6712 = vmatpush1.msra.mxu0 %v6700
          %6713 = vmatprep.subr.mxu0 0.0
          %6714 = vmatpush1.msra.mxu0 %v6699
          %6715 = vmatprep.subr.mxu0 0.0
          %6716 = vmatpush1.msra.mxu0 %v6698
          %6717 = vmatprep.subr.mxu0 0.0
          %6718 = vmatpush1.msra.mxu0 %v6697
          %6719 = vmatprep.subr.mxu0 0.0
          %6720 = vmatpush1.msra.mxu0 %v6696
          %6721 = vmatprep.subr.mxu0 0.0
          %6722 = vmatpush1.msra.mxu0 %v6695
          %6723 = vmatprep.subr.mxu0 0.0
          %6724 = vmatpush1.msra.mxu0 %v6694
          %6725 = vmatprep.subr.mxu0 0.0
          %6726 = vmatpush1.msra.mxu0 %v6693
          %6727 = vmatprep.subr.mxu0 0.0
          %6728 = vmatpush1.msra.mxu0 %v6692
          %6729 = vmatprep.subr.mxu0 0.0
          %6730 = vmatpush1.msra.mxu0 %v6691
          %6731 = vmatprep.subr.mxu0 0.0
          %6732 = vmatpush1.msra.mxu0 %v6690
          %6733 = vmatprep.subr.mxu0 0.0
          %6734 = vmatpush1.msra.mxu0 %v6689
          %6735 = vmatprep.subr.mxu0 0.0
          %6736 = vmatpush1.msra.mxu0 %v6688
          %6737 = vmatprep.subr.mxu0 0.0
          %6738 = vmatpush1.msra.mxu0 %v6687
          %6739 = vmatprep.subr.mxu0 0.0
          %6740 = vmatpush1.msra.mxu0 %v6686
          %6741 = vmatprep.subr.mxu0 0.0
          %6742 = vmatpush2.msra.mxu0 0.0
          %6743 = vmatprep.subr.mxu0 0.0
          %6744 = vmatpush2.msra.mxu0 0.0
          %6745 = vmatprep.subr.mxu0 0.0
          %6746 = vmatpush2.msra.mxu0 0.0
          %6747 = vmatprep.subr.mxu0 0.0
          %6748 = vmatpush2.msra.mxu0 0.0
          %6749 = vmatprep.subr.mxu0 0.0
          %6750 = vmatpush2.msra.mxu0 0.0
          %6751 = vmatprep.subr.mxu0 0.0
          %6752 = vmatpush2.msra.mxu0 0.0
          %6753 = vmatprep.subr.mxu0 0.0
          %6754 = vmatpush2.msra.mxu0 0.0
          %6755 = vmatprep.subr.mxu0 0.0
          %6756 = vmatpush2.msra.mxu0 0.0
          %6757 = vmatprep.subr.mxu0 0.0
          %6758 = vmatpush2.msra.mxu0 0.0
          %6759 = vmatprep.subr.mxu0 0.0
          %6760 = vmatpush2.msra.mxu0 0.0
          %6761 = vmatprep.subr.mxu0 0.0
          %6762 = vmatpush2.msra.mxu0 0.0
          %6763 = vmatprep.subr.mxu0 0.0
          %6764 = vmatpush2.msra.mxu0 0.0
          %6765 = vmatprep.subr.mxu0 0.0
          %6766 = vmatpush2.msra.mxu0 0.0
          %6767 = vmatprep.subr.mxu0 0.0
          %6768 = vmatpush2.msra.mxu0 0.0
          %6769 = vmatprep.subr.mxu0 0.0
          %6770 = vmatpush2.msra.mxu0 0.0
          %6771 = vmatprep.subr.mxu0 0.0
          %6772 = vmatpush2.msra.mxu0 0.0
          %6773 = vmatprep.mubr.f32.mxu0 0.0
          %6774 = vmatmul.mubr.f32.gmra.mxu0 %v6685
          %v6775 = vpop.f32.mrf.mxu0
          %v6776 = vadd.f32 %v6707, %v6775
          %v6777 = vpop.f32.mrf.mxu0
          %6778 = vdwg.mxu0
          %vm6779 = vcmask 64512
          %6780 = vst.msk [vmem:[#allocation8] sm:$0xff] %vm6779, %v6776
        $region60: #{tpu_custom_call.1} parent=43 // pred_fallthru
          _
        // Predicated region
        $region61: #{tpu_custom_call.1} parent=43 // pred_check
          %p6781 = pneg %p176
        $region62: #{tpu_custom_call.1} parent=43 // pred_check_branch
          %6783 = sbr.rel (%p6781) target = $region64
        $region63: #{tpu_custom_call.1} parent=43 // pred_region
          %s6785 = ssub.s32 128, 128
          %6786 = vsyncadd [#allocation5], %s6785
          %s6788 = sshll.u32 [#allocation8], 4
          %s6789 = int_to_ptr.vmem [resolvable:$true] %s6788
          %6791 = dma.vmem_to_hbm [thread:$0]  %s6789, 128, %s6, [#allocation5]
        $region64: #{tpu_custom_call.1} parent=43 // pred_fallthru
          _
        // Predicated region
        $region65: #{tpu_custom_call.1} parent=43 // pred_check
          %p6792 = pneg %p176
        $region66: #{tpu_custom_call.1} parent=43 // pred_check_branch
          %6794 = sbr.rel (%p6792) target = $region68
        $region67: #{tpu_custom_call.1} parent=43 // pred_region
          %6795 = dma.done [#allocation5], 128
        $region68: #{tpu_custom_call.1} parent=43 // pred_fallthru
          _
      $region44: #{tpu_custom_call.1} parent=5 // pred_fallthru
        _
      %p6796 = scmp.le.s32.totalorder 2, %s17
      // Predicated region
      $region69: #{tpu_custom_call.1} parent=5 // pred_check
        %p6797 = pneg %p6796
      $region70: #{tpu_custom_call.1} parent=5 // pred_check_branch
        %6799 = sbr.rel (%p6797) target = $region72
      $region71: #{tpu_custom_call.1} parent=5 // pred_region
        %s6800 = ssub.s32 %s17, 2
      $region72: #{tpu_custom_call.1} parent=5 // pred_fallthru
        _
    $region6: #{tpu_custom_call.1} parent=1 // loop_footer
      %s21 = sadd.s32 1, %s17
    $region7: #{tpu_custom_call.1} parent=1 // loop_footer_branch
      %16 = sbr.rel target = $region3
    $region8: #{tpu_custom_call.1} parent=1 // loop_exit
      _
    %6801 = vsyncpa [#allocation4], 1
    %s6802 = scalar_lea.sflag [#allocation4], 1
    %6803 = vsyncpa %s6802, 1
    %6804 = vsyncpa [#allocation7], 1
    %6805 = vsyncpa [#allocation5], 1
    %s6806 = scalar_lea.sflag [#allocation5], 1
    %6807 = vsyncpa %s6806, 1

</llo_original>
